<compile_context>
chip_gen: v5e
topology: v5e:2x2
jax: 0.10.0
libtpu: 0.0.40
codegen_flags: <defaults>
</compile_context>

<pallas_src>
import functools

import jax
import jax.numpy as jnp
import numpy as np
from jax.experimental import pallas as pl
from jax.experimental.pallas import tpu as pltpu


# ----------------------------------------------------------------------------
# Generation-aware grid sizing.
# ----------------------------------------------------------------------------
def _num_tensorcores_per_chip():
    """Best-effort TensorCores-per-chip detection (used only to pick grid steps)."""
    try:
        kind = jax.devices()[0].device_kind.lower()
    except Exception:
        return 1
    # Dual-TensorCore / megacore chips (v4, v5p, v7x) benefit from a 2-step
    # "parallel" grid; v5e / v6e (Trillium) have a single TC per chip.
    if any(tag in kind for tag in ("v7", "v5p", "v4")):
        return 2
    return 1


def _choose_window_batch(bw, nq, num_cores, max_block_rows=4096):
    """Windows per grid step: one step per TensorCore, large MXU M-dim.

    VMEM is not the binding constraint at these shapes (tens of KiB), so WB is
    sized for step count / M-dim; max_block_rows only guards pathological sizes.
    """
    target_steps = max(1, num_cores)
    wb = -(-bw // target_steps)                        # ceil-div
    max_wb = max(1, max_block_rows // max(nq, 1))
    return max(1, min(wb, max_wb))


# ----------------------------------------------------------------------------
# Pallas kernel: cross-attention for a block of WB (batch*window) slabs.
# ----------------------------------------------------------------------------
def _cross_attn_kernel(
    q_in_ref,    # (WB, Nq, C)   compute dtype (bf16)
    kv_in_ref,   # (WB, Nk, C)   compute dtype
    w_ref,       # (C, 4C)       compute dtype  [Wq*scale | Wk | Wv | Wproj]
    b_ref,       # (1, 4C)       f32            [bq*scale | bk | bv | bproj]
    bias_ref,    # (H, Nq, Nk)   f32            relative position bias (tiled by m)
    o_ref,       # (WB, Nq, C)   f32
    *,
    num_heads: int,
    head_dim: int,
    wb: int,
    nq: int,
    nk: int,
    dim: int,
    compute_dtype,
):
    c = dim

    # Flatten windows into the matmul M dimension (leading-dim merge: layout-safe).
    x_q = q_in_ref[...].reshape(wb * nq, c)        # (WB*Nq, C) bf16
    x_kv = kv_in_ref[...].reshape(wb * nk, c)      # (WB*Nk, C) bf16

    # Fused Q and K|V projections: 2 MXU dispatches with full-C output width
    # (scale is pre-folded into Wq / bq on the host).  f32 accumulation + f32 bias.
    q = (jnp.dot(x_q, w_ref[:, 0:c], preferred_element_type=jnp.float32)
         + b_ref[:, 0:c])                                        # (WB*Nq, C)  f32
    kv = (jnp.dot(x_kv, w_ref[:, c:3 * c], preferred_element_type=jnp.float32)
          + b_ref[:, c:3 * c])                                   # (WB*Nk, 2C) f32

    # Split windows back out (leading-dim split: layout-safe); cast MXU operands.
    q3 = q.reshape(wb, nq, c).astype(compute_dtype)              # (WB, Nq, C)
    k3 = kv[:, 0:c].reshape(wb, nk, c).astype(compute_dtype)     # (WB, Nk, C)
    v3 = kv[:, c:2 * c].reshape(wb, nk, c).astype(compute_dtype) # (WB, Nk, C)

    # Per-head attention on static hd-lane slices; softmax stays in f32.
    o_heads = []
    for h in range(num_heads):
        lo, hi = h * head_dim, (h + 1) * head_dim
        s = jnp.einsum("bqd,bkd->bqk", q3[:, :, lo:hi], k3[:, :, lo:hi],
                       preferred_element_type=jnp.float32)       # (WB, Nq, Nk) f32
        s = s + bias_ref[h][None]                                # rel. pos. bias
        s = s - jnp.max(s, axis=-1, keepdims=True)
        p = jnp.exp(s)
        inv = pl.reciprocal(jnp.sum(p, axis=-1, keepdims=True), approx=True)
        p = p * inv
        o_heads.append(
            jnp.einsum("bqk,bkd->bqd", p.astype(compute_dtype), v3[:, :, lo:hi],
                       preferred_element_type=jnp.float32))      # (WB, Nq, hd) f32

    # Lane-concatenate the heads and run ONE fused output projection (K = C).
    o_cat = jnp.concatenate(o_heads, axis=-1).reshape(wb * nq, c)
    out = (jnp.dot(o_cat.astype(compute_dtype), w_ref[:, 3 * c:4 * c],
                   preferred_element_type=jnp.float32)
           + b_ref[:, 3 * c:4 * c])                              # (WB*Nq, C) f32

    o_ref[...] = out.reshape(wb, nq, c).astype(o_ref.dtype)


def window_cross_attention_pallas(
    gauss_windows,   # (BW, Nq, C) float32
    kv_windows,      # (BW, Nk, C) float32
    w_packed,        # (C, 4C)     float32  [Wq*scale | Wk | Wv | Wproj]
    b_packed,        # (1, 4C)     float32  [bq*scale | bk | bv | bproj]
    rel_bias,        # (H, Nq, Nk) float32
    *, num_heads, head_dim, window_batch, compute_dtype=jnp.bfloat16,
):
    bw, nq, c = gauss_windows.shape
    _, nk, _ = kv_windows.shape
    h = num_heads
    wb = window_batch

    # Pad the window axis up to a multiple of WB (padded windows produce finite
    # garbage that is sliced away) so the MXU M-dim never collapses to Nq.
    padded_bw = -(-bw // wb) * wb
    if padded_bw != bw:
        pad = padded_bw - bw
        gauss_windows = jnp.pad(gauss_windows, ((0, pad), (0, 0), (0, 0)))
        kv_windows = jnp.pad(kv_windows, ((0, pad), (0, 0), (0, 0)))

    kernel = functools.partial(
        _cross_attn_kernel,
        num_heads=num_heads, head_dim=head_dim,
        wb=wb, nq=nq, nk=nk, dim=c, compute_dtype=compute_dtype,
    )

    grid_spec = pltpu.PrefetchScalarGridSpec(
        num_scalar_prefetch=0,
        grid=(padded_bw // wb,),
        in_specs=[
            pl.BlockSpec((wb, nq, c), lambda b: (b, 0, 0)),      # gauss queries
            pl.BlockSpec((wb, nk, c), lambda b: (b, 0, 0)),      # window kv features
            pl.BlockSpec((c, 4 * c), lambda b: (0, 0)),          # packed weights
            pl.BlockSpec((1, 4 * c), lambda b: (0, 0)),          # packed biases
            pl.BlockSpec((h, nq, nk), lambda b: (0, 0, 0)),      # relative pos bias
        ],
        out_specs=pl.BlockSpec((wb, nq, c), lambda b: (b, 0, 0)),
    )

    out = pl.pallas_call(
        kernel,
        out_shape=jax.ShapeDtypeStruct((padded_bw, nq, c), jnp.float32),
        grid_spec=grid_spec,
        compiler_params=pltpu.CompilerParams(
            dimension_semantics=("parallel",),
        ),
    )(
        gauss_windows.astype(compute_dtype),
        kv_windows.astype(compute_dtype),
        w_packed.astype(compute_dtype),
        b_packed.astype(jnp.float32),
        rel_bias.astype(jnp.float32),
    )
    return out[:bw] if padded_bw != bw else out


# ----------------------------------------------------------------------------
# ConditionInjectionBlock wrapper (glue in plain JAX).
# ----------------------------------------------------------------------------
class ConditionInjectionBlockPallas:
    def __init__(self, dim, window_size, num_heads, m, key, compute_dtype=jnp.bfloat16):
        self.dim = dim
        self.window_size = window_size
        self.num_heads = num_heads
        self.m = m
        self.head_dim = dim // num_heads
        self.scale = self.head_dim ** (-0.5)
        self.compute_dtype = compute_dtype

        keys = jax.random.split(key, 8)
        s = 0.02
        # Deterministic synthetic parameters (kernel layout: weights are (in, out)).
        self.wq = jax.random.normal(keys[0], (dim, dim), jnp.float32) * s
        self.bq = jax.random.normal(keys[4], (1, dim), jnp.float32) * s
        self.wkv = jax.random.normal(keys[1], (dim, 2 * dim), jnp.float32) * s
        self.bkv = jax.random.normal(keys[5], (1, 2 * dim), jnp.float32) * s
        self.wp = jax.random.normal(keys[2], (dim, dim), jnp.float32) * s
        self.bp = jax.random.normal(keys[6], (1, dim), jnp.float32) * s
        self.rpb_table = (
            jax.random.truncated_normal(
                keys[3], -2.0, 2.0,
                ((2 * window_size - 1) * (2 * window_size - 1), num_heads),
                jnp.float32,
            ) * 0.02
        )

        # Packed kernel parameters (one-time host transform; scale folded into Wq/bq).
        self.w_packed = jnp.concatenate(
            [self.wq * self.scale, self.wkv, self.wp], axis=1)          # (C, 4C)
        self.b_packed = jnp.concatenate(
            [self.bq * self.scale, self.bkv, self.bp], axis=1)          # (1, 4C)

        # relative_position_index (same construction as the PyTorch module).
        ws = window_size
        coords_h = np.arange(ws)
        coords_w = np.arange(ws)
        coords = np.stack(np.meshgrid(coords_h, coords_w, indexing="ij"), axis=-1)
        coords_flat = coords.reshape(-1, 2)                              # (ws*ws, 2)
        rel = coords_flat[:, None, :] - coords_flat[None, :, :]          # (N, N, 2)
        rel[..., 0] += ws - 1
        rel[..., 1] += ws - 1
        rel[..., 0] *= 2 * ws - 1
        self.rel_pos_index = jnp.asarray(rel.sum(-1), jnp.int32)         # (N, N)

        # Parameter-derived bias, precomputed once (host).
        self.rel_bias = self._relative_position_bias()                   # (H, Nq, Nk)

    def _relative_position_bias(self):
        ws2 = self.window_size * self.window_size
        flat_idx = self.rel_pos_index.reshape(-1)                        # (ws2*ws2,)
        bias = self.rpb_table[flat_idx].reshape(ws2, ws2, self.num_heads)
        bias = jnp.transpose(bias, (2, 0, 1))                            # (H, ws2, ws2)
        bias = jnp.tile(bias, (1, self.m, 1))                            # (H, m*ws2, ws2)
        return bias

    @staticmethod
    def _window_partition(x, ws):
        b, h, w, c = x.shape
        x = x.reshape(b, h // ws, ws, w // ws, ws, c)
        x = jnp.transpose(x, (0, 1, 3, 2, 4, 5))
        return x.reshape(-1, ws * ws, c)

    def __call__(self, gauss_embeds, image_features):
        b1, n1, c1 = gauss_embeds.shape
        b2, h2, w2, c2 = image_features.shape
        ws = self.window_size
        n_windows = (h2 // ws) * (w2 // ws)

        gauss_w = gauss_embeds.reshape(b1 * n_windows, -1, c1)           # (BW, Nq, C)
        kv_w = self._window_partition(image_features, ws)                # (BW, ws*ws, C)

        bw, nq = gauss_w.shape[0], gauss_w.shape[1]
        wb = _choose_window_batch(bw, nq, _num_tensorcores_per_chip())

        out = window_cross_attention_pallas(
            gauss_w, kv_w, self.w_packed, self.b_packed, self.rel_bias,
            num_heads=self.num_heads, head_dim=self.head_dim,
            window_batch=wb, compute_dtype=self.compute_dtype,
        )
        return out.reshape(b1, -1, c1)

    # Pure-JAX f32 reference of the same forward (for correctness check).
    def reference(self, gauss_embeds, image_features):
        b1, n1, c1 = gauss_embeds.shape
        b2, h2, w2, c2 = image_features.shape
        ws = self.window_size
        n_windows = (h2 // ws) * (w2 // ws)
        gauss_w = gauss_embeds.reshape(b1 * n_windows, -1, c1)
        kv_w = self._window_partition(image_features, ws)
        rel_bias = self._relative_position_bias()

        q = gauss_w @ self.wq + self.bq[0]
        kv = kv_w @ self.wkv + self.bkv[0]
        k, v = kv[..., :c1], kv[..., c1:]

        bw, nq, _ = q.shape
        nk = k.shape[1]
        hd = self.head_dim
        qh = q.reshape(bw, nq, self.num_heads, hd).transpose(0, 2, 1, 3) * self.scale
        kh = k.reshape(bw, nk, self.num_heads, hd).transpose(0, 2, 1, 3)
        vh = v.reshape(bw, nk, self.num_heads, hd).transpose(0, 2, 1, 3)
        attn = jnp.einsum("bhqd,bhkd->bhqk", qh, kh) + rel_bias[None]
        attn = jax.nn.softmax(attn, axis=-1)
        out = jnp.einsum("bhqk,bhkd->bhqd", attn, vh)
        out = out.transpose(0, 2, 1, 3).reshape(bw, nq, c1)
        out = out @ self.wp + self.bp[0]
        return out.reshape(b1, -1, c1)


if __name__ == "__main__":
    # Small, consistent shapes:
    #   dim=32, window_size=4 (Nk = 16), num_heads=4 (head_dim=8), m=2 (Nq = 32)
    #   image_features: (2, 8, 8, 32) -> nW = 4 windows per image -> BW = 8
    #   gauss_embeds:   (2, nW * m * ws*ws, 32) = (2, 128, 32)
    dim, window_size, num_heads, m = 32, 4, 4, 2
    B, H, W = 2, 8, 8
    n_windows = (H // window_size) * (W // window_size)
    N1 = n_windows * m * window_size * window_size

    key = jax.random.PRNGKey(0)
    k_params, k_g, k_img = jax.random.split(key, 3)

    block = ConditionInjectionBlockPallas(dim, window_size, num_heads, m, k_params)

    gauss_embeds = jax.random.normal(k_g, (B, N1, dim), jnp.float32)
    image_features = jax.random.normal(k_img, (B, H, W, dim), jnp.float32)

    out = block(gauss_embeds, image_features)
    out = jax.block_until_ready(out)

    ref = block.reference(gauss_embeds, image_features)
    assert out.shape == (B, N1, dim)
    # bf16 MXU operands + approx reciprocal -> slightly looser tolerance than pure f32.
    np.testing.assert_allclose(np.asarray(out), np.asarray(ref), rtol=2e-2, atol=5e-4)

    print("KERNEL_OK")
</pallas_src>

<mosaic_0001>
module attributes {stable_mosaic.version = 11 : i64} {
  func.func @_cross_attn_kernel(%arg0: i32, %arg1: memref<8x32x32xbf16, #tpu.memory_space<vmem>>, %arg2: memref<8x16x32xbf16, #tpu.memory_space<vmem>>, %arg3: memref<32x128xbf16, #tpu.memory_space<vmem>>, %arg4: memref<1x128xf32, #tpu.memory_space<vmem>>, %arg5: memref<4x32x16xf32, #tpu.memory_space<vmem>>, %arg6: memref<8x32x32xf32, #tpu.memory_space<vmem>>) attributes {dimension_semantics = [#tpu.dimension_semantics<parallel>], iteration_bounds = array<i64: 1>, scalar_prefetch = 0 : i64, scratch_operands = 0 : i64, tpu.core_type = #tpu.core_type<tc>, window_params = [{transform_indices = @transform_0, window_bounds = array<i64: 8, 32, 32>}, {transform_indices = @transform_1, window_bounds = array<i64: 8, 16, 32>}, {pipeline_mode = #tpu.pipeline_mode<synchronous>, transform_indices = @transform_2, window_bounds = array<i64: 32, 128>}, {pipeline_mode = #tpu.pipeline_mode<synchronous>, transform_indices = @transform_3, window_bounds = array<i64: 1, 128>}, {pipeline_mode = #tpu.pipeline_mode<synchronous>, transform_indices = @transform_4, window_bounds = array<i64: 4, 32, 16>}, {transform_indices = @transform_5, window_bounds = array<i64: 8, 32, 32>}]} {
    %c0 = arith.constant 0 : index
    %c0_0 = arith.constant 0 : index
    %c0_1 = arith.constant 0 : index
    %0 = vector.load %arg1[%c0, %c0_0, %c0_1] : memref<8x32x32xbf16, #tpu.memory_space<vmem>>, vector<8x32x32xbf16>
    %1 = vector.shape_cast %0 : vector<8x32x32xbf16> to vector<256x32xbf16>
    %c0_2 = arith.constant 0 : index
    %c0_3 = arith.constant 0 : index
    %c0_4 = arith.constant 0 : index
    %2 = vector.load %arg2[%c0_2, %c0_3, %c0_4] : memref<8x16x32xbf16, #tpu.memory_space<vmem>>, vector<8x16x32xbf16>
    %3 = vector.shape_cast %2 : vector<8x16x32xbf16> to vector<128x32xbf16>
    %c0_5 = arith.constant 0 : index
    %c0_6 = arith.constant 0 : index
    %4 = vector.load %arg3[%c0_5, %c0_6] : memref<32x128xbf16, #tpu.memory_space<vmem>>, vector<32x32xbf16>
    %cst = arith.constant dense<0.000000e+00> : vector<256x32xf32>
    %5 = tpu.matmul %1, %4, %cst {dimension_numbers = #tpu.dot_dimension_numbers<[1], [0], [0], [1], [0, 0, 1, 1], [], []>} : vector<256x32xbf16>, vector<32x32xbf16>, vector<256x32xf32> -> vector<256x32xf32>
    %c0_7 = arith.constant 0 : index
    %c0_8 = arith.constant 0 : index
    %6 = vector.load %arg4[%c0_7, %c0_8] : memref<1x128xf32, #tpu.memory_space<vmem>>, vector<1x32xf32>
    %7 = vector.broadcast %6 : vector<1x32xf32> to vector<256x32xf32>
    %8 = arith.addf %5, %7 : vector<256x32xf32>
    %c0_9 = arith.constant 0 : index
    %c32 = arith.constant 32 : index
    %9 = vector.load %arg3[%c0_9, %c32] : memref<32x128xbf16, #tpu.memory_space<vmem>>, vector<32x64xbf16>
    %cst_10 = arith.constant dense<0.000000e+00> : vector<128x64xf32>
    %10 = tpu.matmul %3, %9, %cst_10 {dimension_numbers = #tpu.dot_dimension_numbers<[1], [0], [0], [1], [0, 0, 1, 1], [], []>} : vector<128x32xbf16>, vector<32x64xbf16>, vector<128x64xf32> -> vector<128x64xf32>
    %c0_11 = arith.constant 0 : index
    %c32_12 = arith.constant 32 : index
    %11 = vector.load %arg4[%c0_11, %c32_12] : memref<1x128xf32, #tpu.memory_space<vmem>>, vector<1x64xf32>
    %12 = vector.broadcast %11 : vector<1x64xf32> to vector<128x64xf32>
    %13 = arith.addf %10, %12 : vector<128x64xf32>
    %14 = vector.shape_cast %8 : vector<256x32xf32> to vector<8x32x32xf32>
    %15 = arith.truncf %14 : vector<8x32x32xf32> to vector<8x32x32xbf16>
    %16 = vector.extract_strided_slice %13 {offsets = [0, 0], sizes = [128, 32], strides = [1, 1]} : vector<128x64xf32> to vector<128x32xf32>
    %17 = vector.shape_cast %16 : vector<128x32xf32> to vector<8x16x32xf32>
    %18 = arith.truncf %17 : vector<8x16x32xf32> to vector<8x16x32xbf16>
    %19 = vector.extract_strided_slice %13 {offsets = [0, 32], sizes = [128, 32], strides = [1, 1]} : vector<128x64xf32> to vector<128x32xf32>
    %20 = vector.shape_cast %19 : vector<128x32xf32> to vector<8x16x32xf32>
    %21 = arith.truncf %20 : vector<8x16x32xf32> to vector<8x16x32xbf16>
    %22 = vector.extract_strided_slice %15 {offsets = [0, 0, 0], sizes = [8, 32, 8], strides = [1, 1, 1]} : vector<8x32x32xbf16> to vector<8x32x8xbf16>
    %23 = vector.extract_strided_slice %18 {offsets = [0, 0, 0], sizes = [8, 16, 8], strides = [1, 1, 1]} : vector<8x16x32xbf16> to vector<8x16x8xbf16>
    "tpu.trace_start"() <{level = 10 : i32, message = "bqd,bkd->bqk"}> : () -> ()
    %cst_13 = arith.constant dense<0.000000e+00> : vector<8x32x16xf32>
    %24 = tpu.matmul %22, %23, %cst_13 {dimension_numbers = #tpu.dot_dimension_numbers<[2], [2], [1], [1], [0, 0, 0, 1, 1, 1], [0], [0]>} : vector<8x32x8xbf16>, vector<8x16x8xbf16>, vector<8x32x16xf32> -> vector<8x32x16xf32>
    "tpu.trace_stop"() : () -> ()
    %c0_14 = arith.constant 0 : index
    %c0_15 = arith.constant 0 : index
    %c0_16 = arith.constant 0 : index
    %25 = vector.load %arg5[%c0_14, %c0_15, %c0_16] : memref<4x32x16xf32, #tpu.memory_space<vmem>>, vector<1x32x16xf32>
    %26 = vector.shape_cast %25 : vector<1x32x16xf32> to vector<32x16xf32>
    %27 = vector.shape_cast %26 : vector<32x16xf32> to vector<1x32x16xf32>
    %28 = vector.broadcast %27 : vector<1x32x16xf32> to vector<8x32x16xf32>
    %29 = arith.addf %24, %28 : vector<8x32x16xf32>
    %cst_17 = arith.constant dense<0xFF800000> : vector<8x32xf32>
    %30 = vector.multi_reduction <maximumf>, %29, %cst_17 [2] : vector<8x32x16xf32> to vector<8x32xf32>
    %31 = vector.shape_cast %30 : vector<8x32xf32> to vector<8x32x1xf32>
    %32 = vector.broadcast %31 : vector<8x32x1xf32> to vector<8x32x16xf32>
    %33 = arith.subf %29, %32 : vector<8x32x16xf32>
    %34 = math.exp %33 : vector<8x32x16xf32>
    %cst_18 = arith.constant dense<0.000000e+00> : vector<8x32xf32>
    %35 = vector.multi_reduction <add>, %34, %cst_18 [2] : vector<8x32x16xf32> to vector<8x32xf32>
    %36 = vector.shape_cast %35 : vector<8x32xf32> to vector<8x32x1xf32>
    %37 = tpu.reciprocal %36 {approx = true} : vector<8x32x1xf32> -> vector<8x32x1xf32>
    %38 = vector.broadcast %37 : vector<8x32x1xf32> to vector<8x32x16xf32>
    %39 = arith.mulf %34, %38 : vector<8x32x16xf32>
    %40 = arith.truncf %39 : vector<8x32x16xf32> to vector<8x32x16xbf16>
    %41 = vector.extract_strided_slice %21 {offsets = [0, 0, 0], sizes = [8, 16, 8], strides = [1, 1, 1]} : vector<8x16x32xbf16> to vector<8x16x8xbf16>
    "tpu.trace_start"() <{level = 10 : i32, message = "bqk,bkd->bqd"}> : () -> ()
    %cst_19 = arith.constant dense<0.000000e+00> : vector<8x32x8xf32>
    %42 = tpu.matmul %40, %41, %cst_19 {dimension_numbers = #tpu.dot_dimension_numbers<[2], [1], [1], [2], [0, 0, 0, 1, 1, 2], [0], [0]>} : vector<8x32x16xbf16>, vector<8x16x8xbf16>, vector<8x32x8xf32> -> vector<8x32x8xf32>
    "tpu.trace_stop"() : () -> ()
    %43 = vector.extract_strided_slice %15 {offsets = [0, 0, 8], sizes = [8, 32, 8], strides = [1, 1, 1]} : vector<8x32x32xbf16> to vector<8x32x8xbf16>
    %44 = vector.extract_strided_slice %18 {offsets = [0, 0, 8], sizes = [8, 16, 8], strides = [1, 1, 1]} : vector<8x16x32xbf16> to vector<8x16x8xbf16>
    "tpu.trace_start"() <{level = 10 : i32, message = "bqd,bkd->bqk"}> : () -> ()
    %cst_20 = arith.constant dense<0.000000e+00> : vector<8x32x16xf32>
    %45 = tpu.matmul %43, %44, %cst_20 {dimension_numbers = #tpu.dot_dimension_numbers<[2], [2], [1], [1], [0, 0, 0, 1, 1, 1], [0], [0]>} : vector<8x32x8xbf16>, vector<8x16x8xbf16>, vector<8x32x16xf32> -> vector<8x32x16xf32>
    "tpu.trace_stop"() : () -> ()
    %c1 = arith.constant 1 : index
    %c0_21 = arith.constant 0 : index
    %c0_22 = arith.constant 0 : index
    %46 = vector.load %arg5[%c1, %c0_21, %c0_22] : memref<4x32x16xf32, #tpu.memory_space<vmem>>, vector<1x32x16xf32>
    %47 = vector.shape_cast %46 : vector<1x32x16xf32> to vector<32x16xf32>
    %48 = vector.shape_cast %47 : vector<32x16xf32> to vector<1x32x16xf32>
    %49 = vector.broadcast %48 : vector<1x32x16xf32> to vector<8x32x16xf32>
    %50 = arith.addf %45, %49 : vector<8x32x16xf32>
    %cst_23 = arith.constant dense<0xFF800000> : vector<8x32xf32>
    %51 = vector.multi_reduction <maximumf>, %50, %cst_23 [2] : vector<8x32x16xf32> to vector<8x32xf32>
    %52 = vector.shape_cast %51 : vector<8x32xf32> to vector<8x32x1xf32>
    %53 = vector.broadcast %52 : vector<8x32x1xf32> to vector<8x32x16xf32>
    %54 = arith.subf %50, %53 : vector<8x32x16xf32>
    %55 = math.exp %54 : vector<8x32x16xf32>
    %cst_24 = arith.constant dense<0.000000e+00> : vector<8x32xf32>
    %56 = vector.multi_reduction <add>, %55, %cst_24 [2] : vector<8x32x16xf32> to vector<8x32xf32>
    %57 = vector.shape_cast %56 : vector<8x32xf32> to vector<8x32x1xf32>
    %58 = tpu.reciprocal %57 {approx = true} : vector<8x32x1xf32> -> vector<8x32x1xf32>
    %59 = vector.broadcast %58 : vector<8x32x1xf32> to vector<8x32x16xf32>
    %60 = arith.mulf %55, %59 : vector<8x32x16xf32>
    %61 = arith.truncf %60 : vector<8x32x16xf32> to vector<8x32x16xbf16>
    %62 = vector.extract_strided_slice %21 {offsets = [0, 0, 8], sizes = [8, 16, 8], strides = [1, 1, 1]} : vector<8x16x32xbf16> to vector<8x16x8xbf16>
    "tpu.trace_start"() <{level = 10 : i32, message = "bqk,bkd->bqd"}> : () -> ()
    %cst_25 = arith.constant dense<0.000000e+00> : vector<8x32x8xf32>
    %63 = tpu.matmul %61, %62, %cst_25 {dimension_numbers = #tpu.dot_dimension_numbers<[2], [1], [1], [2], [0, 0, 0, 1, 1, 2], [0], [0]>} : vector<8x32x16xbf16>, vector<8x16x8xbf16>, vector<8x32x8xf32> -> vector<8x32x8xf32>
    "tpu.trace_stop"() : () -> ()
    %64 = vector.extract_strided_slice %15 {offsets = [0, 0, 16], sizes = [8, 32, 8], strides = [1, 1, 1]} : vector<8x32x32xbf16> to vector<8x32x8xbf16>
    %65 = vector.extract_strided_slice %18 {offsets = [0, 0, 16], sizes = [8, 16, 8], strides = [1, 1, 1]} : vector<8x16x32xbf16> to vector<8x16x8xbf16>
    "tpu.trace_start"() <{level = 10 : i32, message = "bqd,bkd->bqk"}> : () -> ()
    %cst_26 = arith.constant dense<0.000000e+00> : vector<8x32x16xf32>
    %66 = tpu.matmul %64, %65, %cst_26 {dimension_numbers = #tpu.dot_dimension_numbers<[2], [2], [1], [1], [0, 0, 0, 1, 1, 1], [0], [0]>} : vector<8x32x8xbf16>, vector<8x16x8xbf16>, vector<8x32x16xf32> -> vector<8x32x16xf32>
    "tpu.trace_stop"() : () -> ()
    %c2 = arith.constant 2 : index
    %c0_27 = arith.constant 0 : index
    %c0_28 = arith.constant 0 : index
    %67 = vector.load %arg5[%c2, %c0_27, %c0_28] : memref<4x32x16xf32, #tpu.memory_space<vmem>>, vector<1x32x16xf32>
    %68 = vector.shape_cast %67 : vector<1x32x16xf32> to vector<32x16xf32>
    %69 = vector.shape_cast %68 : vector<32x16xf32> to vector<1x32x16xf32>
    %70 = vector.broadcast %69 : vector<1x32x16xf32> to vector<8x32x16xf32>
    %71 = arith.addf %66, %70 : vector<8x32x16xf32>
    %cst_29 = arith.constant dense<0xFF800000> : vector<8x32xf32>
    %72 = vector.multi_reduction <maximumf>, %71, %cst_29 [2] : vector<8x32x16xf32> to vector<8x32xf32>
    %73 = vector.shape_cast %72 : vector<8x32xf32> to vector<8x32x1xf32>
    %74 = vector.broadcast %73 : vector<8x32x1xf32> to vector<8x32x16xf32>
    %75 = arith.subf %71, %74 : vector<8x32x16xf32>
    %76 = math.exp %75 : vector<8x32x16xf32>
    %cst_30 = arith.constant dense<0.000000e+00> : vector<8x32xf32>
    %77 = vector.multi_reduction <add>, %76, %cst_30 [2] : vector<8x32x16xf32> to vector<8x32xf32>
    %78 = vector.shape_cast %77 : vector<8x32xf32> to vector<8x32x1xf32>
    %79 = tpu.reciprocal %78 {approx = true} : vector<8x32x1xf32> -> vector<8x32x1xf32>
    %80 = vector.broadcast %79 : vector<8x32x1xf32> to vector<8x32x16xf32>
    %81 = arith.mulf %76, %80 : vector<8x32x16xf32>
    %82 = arith.truncf %81 : vector<8x32x16xf32> to vector<8x32x16xbf16>
    %83 = vector.extract_strided_slice %21 {offsets = [0, 0, 16], sizes = [8, 16, 8], strides = [1, 1, 1]} : vector<8x16x32xbf16> to vector<8x16x8xbf16>
    "tpu.trace_start"() <{level = 10 : i32, message = "bqk,bkd->bqd"}> : () -> ()
    %cst_31 = arith.constant dense<0.000000e+00> : vector<8x32x8xf32>
    %84 = tpu.matmul %82, %83, %cst_31 {dimension_numbers = #tpu.dot_dimension_numbers<[2], [1], [1], [2], [0, 0, 0, 1, 1, 2], [0], [0]>} : vector<8x32x16xbf16>, vector<8x16x8xbf16>, vector<8x32x8xf32> -> vector<8x32x8xf32>
    "tpu.trace_stop"() : () -> ()
    %85 = vector.extract_strided_slice %15 {offsets = [0, 0, 24], sizes = [8, 32, 8], strides = [1, 1, 1]} : vector<8x32x32xbf16> to vector<8x32x8xbf16>
    %86 = vector.extract_strided_slice %18 {offsets = [0, 0, 24], sizes = [8, 16, 8], strides = [1, 1, 1]} : vector<8x16x32xbf16> to vector<8x16x8xbf16>
    "tpu.trace_start"() <{level = 10 : i32, message = "bqd,bkd->bqk"}> : () -> ()
    %cst_32 = arith.constant dense<0.000000e+00> : vector<8x32x16xf32>
    %87 = tpu.matmul %85, %86, %cst_32 {dimension_numbers = #tpu.dot_dimension_numbers<[2], [2], [1], [1], [0, 0, 0, 1, 1, 1], [0], [0]>} : vector<8x32x8xbf16>, vector<8x16x8xbf16>, vector<8x32x16xf32> -> vector<8x32x16xf32>
    "tpu.trace_stop"() : () -> ()
    %c3 = arith.constant 3 : index
    %c0_33 = arith.constant 0 : index
    %c0_34 = arith.constant 0 : index
    %88 = vector.load %arg5[%c3, %c0_33, %c0_34] : memref<4x32x16xf32, #tpu.memory_space<vmem>>, vector<1x32x16xf32>
    %89 = vector.shape_cast %88 : vector<1x32x16xf32> to vector<32x16xf32>
    %90 = vector.shape_cast %89 : vector<32x16xf32> to vector<1x32x16xf32>
    %91 = vector.broadcast %90 : vector<1x32x16xf32> to vector<8x32x16xf32>
    %92 = arith.addf %87, %91 : vector<8x32x16xf32>
    %cst_35 = arith.constant dense<0xFF800000> : vector<8x32xf32>
    %93 = vector.multi_reduction <maximumf>, %92, %cst_35 [2] : vector<8x32x16xf32> to vector<8x32xf32>
    %94 = vector.shape_cast %93 : vector<8x32xf32> to vector<8x32x1xf32>
    %95 = vector.broadcast %94 : vector<8x32x1xf32> to vector<8x32x16xf32>
    %96 = arith.subf %92, %95 : vector<8x32x16xf32>
    %97 = math.exp %96 : vector<8x32x16xf32>
    %cst_36 = arith.constant dense<0.000000e+00> : vector<8x32xf32>
    %98 = vector.multi_reduction <add>, %97, %cst_36 [2] : vector<8x32x16xf32> to vector<8x32xf32>
    %99 = vector.shape_cast %98 : vector<8x32xf32> to vector<8x32x1xf32>
    %100 = tpu.reciprocal %99 {approx = true} : vector<8x32x1xf32> -> vector<8x32x1xf32>
    %101 = vector.broadcast %100 : vector<8x32x1xf32> to vector<8x32x16xf32>
    %102 = arith.mulf %97, %101 : vector<8x32x16xf32>
    %103 = arith.truncf %102 : vector<8x32x16xf32> to vector<8x32x16xbf16>
    %104 = vector.extract_strided_slice %21 {offsets = [0, 0, 24], sizes = [8, 16, 8], strides = [1, 1, 1]} : vector<8x16x32xbf16> to vector<8x16x8xbf16>
    "tpu.trace_start"() <{level = 10 : i32, message = "bqk,bkd->bqd"}> : () -> ()
    %cst_37 = arith.constant dense<0.000000e+00> : vector<8x32x8xf32>
    %105 = tpu.matmul %103, %104, %cst_37 {dimension_numbers = #tpu.dot_dimension_numbers<[2], [1], [1], [2], [0, 0, 0, 1, 1, 2], [0], [0]>} : vector<8x32x16xbf16>, vector<8x16x8xbf16>, vector<8x32x8xf32> -> vector<8x32x8xf32>
    "tpu.trace_stop"() : () -> ()
    %106 = tpu.concatenate %42, %63, %84, %105 in 2 : vector<8x32x8xf32>, vector<8x32x8xf32>, vector<8x32x8xf32>, vector<8x32x8xf32> -> vector<8x32x32xf32>
    %107 = vector.shape_cast %106 : vector<8x32x32xf32> to vector<256x32xf32>
    %108 = arith.truncf %107 : vector<256x32xf32> to vector<256x32xbf16>
    %c0_38 = arith.constant 0 : index
    %c96 = arith.constant 96 : index
    %109 = vector.load %arg3[%c0_38, %c96] : memref<32x128xbf16, #tpu.memory_space<vmem>>, vector<32x32xbf16>
    %cst_39 = arith.constant dense<0.000000e+00> : vector<256x32xf32>
    %110 = tpu.matmul %108, %109, %cst_39 {dimension_numbers = #tpu.dot_dimension_numbers<[1], [0], [0], [1], [0, 0, 1, 1], [], []>} : vector<256x32xbf16>, vector<32x32xbf16>, vector<256x32xf32> -> vector<256x32xf32>
    %c0_40 = arith.constant 0 : index
    %c96_41 = arith.constant 96 : index
    %111 = vector.load %arg4[%c0_40, %c96_41] : memref<1x128xf32, #tpu.memory_space<vmem>>, vector<1x32xf32>
    %112 = vector.broadcast %111 : vector<1x32xf32> to vector<256x32xf32>
    %113 = arith.addf %110, %112 : vector<256x32xf32>
    %114 = vector.shape_cast %113 : vector<256x32xf32> to vector<8x32x32xf32>
    %c0_42 = arith.constant 0 : index
    %c0_43 = arith.constant 0 : index
    %c0_44 = arith.constant 0 : index
    %115 = vector.load %arg6[%c0_42, %c0_43, %c0_44] : memref<8x32x32xf32, #tpu.memory_space<vmem>>, vector<8x32x32xf32>
    tpu.vector_store %arg6[%c0_42, %c0_43, %c0_44], %114 {strides = array<i32>} : memref<8x32x32xf32, #tpu.memory_space<vmem>>, vector<8x32x32xf32>,
    return
  }
  func.func @transform_0(%arg0: i32) -> (i32, i32, i32) {
    %c0_i32 = arith.constant 0 : i32
    %c0_i32_0 = arith.constant 0 : i32
    %c0_i32_1 = arith.constant 0 : i32
    return %arg0, %c0_i32, %c0_i32_0 : i32, i32, i32
  }
  func.func @transform_1(%arg0: i32) -> (i32, i32, i32) {
    %c0_i32 = arith.constant 0 : i32
    %c0_i32_0 = arith.constant 0 : i32
    %c0_i32_1 = arith.constant 0 : i32
    return %arg0, %c0_i32, %c0_i32_0 : i32, i32, i32
  }
  func.func @transform_2(%arg0: i32) -> (i32, i32) {
    %c0_i32 = arith.constant 0 : i32
    %c0_i32_0 = arith.constant 0 : i32
    %c0_i32_1 = arith.constant 0 : i32
    return %c0_i32, %c0_i32_0 : i32, i32
  }
  func.func @transform_3(%arg0: i32) -> (i32, i32) {
    %c0_i32 = arith.constant 0 : i32
    %c0_i32_0 = arith.constant 0 : i32
    %c0_i32_1 = arith.constant 0 : i32
    return %c0_i32, %c0_i32_0 : i32, i32
  }
  func.func @transform_4(%arg0: i32) -> (i32, i32, i32) {
    %c0_i32 = arith.constant 0 : i32
    %c0_i32_0 = arith.constant 0 : i32
    %c0_i32_1 = arith.constant 0 : i32
    %c0_i32_2 = arith.constant 0 : i32
    return %c0_i32, %c0_i32_0, %c0_i32_1 : i32, i32, i32
  }
  func.func @transform_5(%arg0: i32) -> (i32, i32, i32) {
    %c0_i32 = arith.constant 0 : i32
    %c0_i32_0 = arith.constant 0 : i32
    %c0_i32_1 = arith.constant 0 : i32
    return %arg0, %c0_i32, %c0_i32_0 : i32, i32, i32
  }
}

</mosaic_0001>

<llo_original>
// kernel: tpu_custom_call.1
$region0: #{tpu_custom_call.1}
  #allocation0 [shape = 'u32[]', space=smem, size = 0x4, offset = 0x4, fixed_abs, tag = 'smem constant byte address 0x4 - core index']
  #allocation1 [shape = 'u32[72,128]{1,0:T(1,128)}', space=vmem, size = 0x9000, scoped, tag = 'internal scratch']
  %s0 = inlined_call_operand.vmem [shape: bf16[8,32,32], index: 0, kind: input, shape index: {}]
  %s1 = inlined_call_operand.vmem [shape: bf16[8,16,32], index: 1, kind: input, shape index: {}]
  %s2 = inlined_call_operand.hbm [shape: bf16[32,128], index: 2, kind: input, shape index: {}]
  %s3 = inlined_call_operand.vmem [shape: f32[1,128], index: 3, kind: input, shape index: {}]
  %s4 = inlined_call_operand.vmem [shape: f32[4,32,16], index: 4, kind: input, shape index: {}]
  %s5 = inlined_call_operand.hbm [shape: f32[8,32,32], index: 5, kind: output, shape index: {}]
  %s6 = sld [smem:[#allocation0]]
  $region34: #{tpu_custom_call.1} parent=0
    _
  %s8 = ssub.s32 1, %s6
  %s9 = scalar_select 0, %s8, %s6
  $region1: #{tpu_custom_call.1} parent=0
    #allocation2 [shape = 'u8[8192]{0}', space=vmem, size = 0x2000, scoped, tag = 'input window, operand 2, single buffered']
    #allocation3 [shape = 's32[1]{0}', space=sflag, size = 0x4, scoped, tag = 'scoped memory for tpu_custom_call.1']
    #allocation4 [shape = 's32[1]{0}', space=sflag, size = 0x4, scoped, tag = 'scoped memory for tpu_custom_call.1']
    #allocation5 [shape = 'u8[131072]{0}', space=vmem, size = 0x20000, scoped, tag = 'output window, operand 0, single buffered']
    %10 = vsyncpa [#allocation3], 0
    %11 = vsyncpa [#allocation4], 0
    // Predicated region
    $region2: #{tpu_custom_call.1} parent=1 // pred_check
      _
    $region3: #{tpu_custom_call.1} parent=1 // pred_check_branch
      %13 = sbr.rel (0) target = $region5
    $region4: #{tpu_custom_call.1} parent=1 // pred_region
      _
    $region5: #{tpu_custom_call.1} parent=1 // pred_fallthru
      _
    // Predicated region
    $region6: #{tpu_custom_call.1} parent=1 // pred_check
      _
    $region7: #{tpu_custom_call.1} parent=1 // pred_check_branch
      %15 = sbr.rel (0) target = $region9
    $region8: #{tpu_custom_call.1} parent=1 // pred_region
      _
    $region9: #{tpu_custom_call.1} parent=1 // pred_fallthru
      _
    // Predicated region
    $region10: #{tpu_custom_call.1} parent=1 // pred_check
      _
    $region11: #{tpu_custom_call.1} parent=1 // pred_check_branch
      %17 = sbr.rel (0) target = $region13
    $region12: #{tpu_custom_call.1} parent=1 // pred_region
      %19 = vsyncadd [#allocation3], 0
      %s20 = sshll.u32 %s2, 4
      %s21 = int_to_ptr.hbm [resolvable:$true] %s20
      %s22 = sshll.u32 [#allocation2], 4
      %s23 = int_to_ptr.vmem [resolvable:$true] %s22
      %28 = dma.hbm_to_vmem [thread:$0]  %s21, 256, %s23, [#allocation3], 64, 64, 4
    $region13: #{tpu_custom_call.1} parent=1 // pred_fallthru
      _
    // Predicated region
    $region14: #{tpu_custom_call.1} parent=1 // pred_check
      _
    $region15: #{tpu_custom_call.1} parent=1 // pred_check_branch
      %30 = sbr.rel (0) target = $region17
    $region16: #{tpu_custom_call.1} parent=1 // pred_region
      _
    $region17: #{tpu_custom_call.1} parent=1 // pred_fallthru
      _
    // Predicated region
    $region18: #{tpu_custom_call.1} parent=1 // pred_check
      _
    $region19: #{tpu_custom_call.1} parent=1 // pred_check_branch
      %32 = sbr.rel (0) target = $region21
    $region20: #{tpu_custom_call.1} parent=1 // pred_region
      _
    $region21: #{tpu_custom_call.1} parent=1 // pred_fallthru
      _
    // Predicated region
    $region22: #{tpu_custom_call.1} parent=1 // pred_check
      _
    $region23: #{tpu_custom_call.1} parent=1 // pred_check_branch
      %34 = sbr.rel (0) target = $region25
    $region24: #{tpu_custom_call.1} parent=1 // pred_region
      %36 = dma.done [#allocation3], 256
    $region25: #{tpu_custom_call.1} parent=1 // pred_fallthru
      _
    %v38 = vld [vmem:[%s0] sm:$0xf]
    %v39 = vld [vmem:[%s0 + $0x4] sm:$0xf]
    %v40 = vld [vmem:[%s0 + $0x8] sm:$0xf]
    %v41 = vld [vmem:[%s0 + $0xc] sm:$0xf]
    %v42 = vld [vmem:[%s0 + $0x10] sm:$0xf]
    %v43 = vld [vmem:[%s0 + $0x14] sm:$0xf]
    %v44 = vld [vmem:[%s0 + $0x18] sm:$0xf]
    %v45 = vld [vmem:[%s0 + $0x1c] sm:$0xf]
    %v46 = vld [vmem:[%s0 + $0x20] sm:$0xf]
    %v47 = vld [vmem:[%s0 + $0x24] sm:$0xf]
    %v48 = vld [vmem:[%s0 + $0x28] sm:$0xf]
    %v49 = vld [vmem:[%s0 + $0x2c] sm:$0xf]
    %v50 = vld [vmem:[%s0 + $0x30] sm:$0xf]
    %v51 = vld [vmem:[%s0 + $0x34] sm:$0xf]
    %v52 = vld [vmem:[%s0 + $0x38] sm:$0xf]
    %v53 = vld [vmem:[%s0 + $0x3c] sm:$0xf]
    %v54 = vld [vmem:[%s0 + $0x40] sm:$0xf]
    %v55 = vld [vmem:[%s0 + $0x44] sm:$0xf]
    %v56 = vld [vmem:[%s0 + $0x48] sm:$0xf]
    %v57 = vld [vmem:[%s0 + $0x4c] sm:$0xf]
    %v58 = vld [vmem:[%s0 + $0x50] sm:$0xf]
    %v59 = vld [vmem:[%s0 + $0x54] sm:$0xf]
    %v60 = vld [vmem:[%s0 + $0x58] sm:$0xf]
    %v61 = vld [vmem:[%s0 + $0x5c] sm:$0xf]
    %v62 = vld [vmem:[%s0 + $0x60] sm:$0xf]
    %v63 = vld [vmem:[%s0 + $0x64] sm:$0xf]
    %v64 = vld [vmem:[%s0 + $0x68] sm:$0xf]
    %v65 = vld [vmem:[%s0 + $0x6c] sm:$0xf]
    %v66 = vld [vmem:[%s0 + $0x70] sm:$0xf]
    %v67 = vld [vmem:[%s0 + $0x74] sm:$0xf]
    %v68 = vld [vmem:[%s0 + $0x78] sm:$0xf]
    %v69 = vld [vmem:[%s0 + $0x7c] sm:$0xf]
    %v70 = vld [vmem:[%s1] sm:$0xf]
    %v71 = vld [vmem:[%s1 + $0x4] sm:$0xf]
    %v72 = vld [vmem:[%s1 + $0x8] sm:$0xf]
    %v73 = vld [vmem:[%s1 + $0xc] sm:$0xf]
    %v74 = vld [vmem:[%s1 + $0x10] sm:$0xf]
    %v75 = vld [vmem:[%s1 + $0x14] sm:$0xf]
    %v76 = vld [vmem:[%s1 + $0x18] sm:$0xf]
    %v77 = vld [vmem:[%s1 + $0x1c] sm:$0xf]
    %v78 = vld [vmem:[%s1 + $0x20] sm:$0xf]
    %v79 = vld [vmem:[%s1 + $0x24] sm:$0xf]
    %v80 = vld [vmem:[%s1 + $0x28] sm:$0xf]
    %v81 = vld [vmem:[%s1 + $0x2c] sm:$0xf]
    %v82 = vld [vmem:[%s1 + $0x30] sm:$0xf]
    %v83 = vld [vmem:[%s1 + $0x34] sm:$0xf]
    %v84 = vld [vmem:[%s1 + $0x38] sm:$0xf]
    %v85 = vld [vmem:[%s1 + $0x3c] sm:$0xf]
    %v86 = vld [vmem:[#allocation2] sm:$0xf]
    %v87 = vld [vmem:[#allocation2 + $0x4] sm:$0xf]
    %v88 = vld [vmem:[#allocation2 + $0x8] sm:$0xf]
    %v89 = vld [vmem:[#allocation2 + $0xc] sm:$0xf]
    %v90 = vld [vmem:[%s3] sm:$0x1]
    %v92 = vperm.slane %v90, 0
    %v126 = vunpack.c.l.b16 %v38
    %v127 = vunpack.c.l.b16 %v39
    %v128 = vunpack.c.l.b16 %v40
    %v129 = vunpack.c.l.b16 %v41
    %v130 = vunpack.c.l.b16 %v42
    %v131 = vunpack.c.l.b16 %v43
    %v132 = vunpack.c.l.b16 %v44
    %v133 = vunpack.c.l.b16 %v45
    %v134 = vunpack.c.l.b16 %v46
    %v135 = vunpack.c.l.b16 %v47
    %v136 = vunpack.c.l.b16 %v48
    %v137 = vunpack.c.l.b16 %v49
    %v138 = vunpack.c.l.b16 %v50
    %v139 = vunpack.c.l.b16 %v51
    %v140 = vunpack.c.l.b16 %v52
    %v141 = vunpack.c.l.b16 %v53
    %v142 = vunpack.c.l.b16 %v54
    %v143 = vunpack.c.l.b16 %v55
    %v144 = vunpack.c.l.b16 %v56
    %v145 = vunpack.c.l.b16 %v57
    %v146 = vunpack.c.l.b16 %v58
    %v147 = vunpack.c.l.b16 %v59
    %v148 = vunpack.c.l.b16 %v60
    %v149 = vunpack.c.l.b16 %v61
    %v150 = vunpack.c.l.b16 %v62
    %v151 = vunpack.c.l.b16 %v63
    %v152 = vunpack.c.l.b16 %v64
    %v153 = vunpack.c.l.b16 %v65
    %v154 = vunpack.c.l.b16 %v66
    %v155 = vunpack.c.l.b16 %v67
    %v156 = vunpack.c.l.b16 %v68
    %v157 = vunpack.c.l.b16 %v69
    %v158 = vpack.c.b16 %v127, %v126
    %v159 = vpack.c.b16 %v129, %v128
    %v160 = vpack.c.b16 %v131, %v130
    %v161 = vpack.c.b16 %v133, %v132
    %v162 = vpack.c.b16 %v135, %v134
    %v163 = vpack.c.b16 %v137, %v136
    %v164 = vpack.c.b16 %v139, %v138
    %v165 = vpack.c.b16 %v141, %v140
    %v166 = vpack.c.b16 %v143, %v142
    %v167 = vpack.c.b16 %v145, %v144
    %v168 = vpack.c.b16 %v147, %v146
    %v169 = vpack.c.b16 %v149, %v148
    %v170 = vpack.c.b16 %v151, %v150
    %v171 = vpack.c.b16 %v153, %v152
    %v172 = vpack.c.b16 %v155, %v154
    %v173 = vpack.c.b16 %v157, %v156
    %v178 = vunpack.c.l.b16 %v86
    %v179 = vunpack.c.l.b16 %v87
    %v180 = vunpack.c.l.b16 %v88
    %v181 = vunpack.c.l.b16 %v89
    %v182 = vpack.c.b16 %v179, %v178
    %v183 = vpack.c.b16 %v181, %v180
    %vm186 = vcmask 261120
    %v188 = vsel %vm186, %v158, 0
    %v191 = vsel %vm186, %v159, 0
    %v194 = vsel %vm186, %v160, 0
    %v197 = vsel %vm186, %v161, 0
    %v200 = vsel %vm186, %v162, 0
    %v203 = vsel %vm186, %v163, 0
    %v206 = vsel %vm186, %v164, 0
    %v209 = vsel %vm186, %v165, 0
    %v212 = vsel %vm186, %v166, 0
    %v215 = vsel %vm186, %v167, 0
    %v218 = vsel %vm186, %v168, 0
    %v221 = vsel %vm186, %v169, 0
    %v224 = vsel %vm186, %v170, 0
    %v227 = vsel %vm186, %v171, 0
    %v230 = vsel %vm186, %v172, 0
    %v233 = vsel %vm186, %v173, 0
    %235 = vmatpush.bf16.msra.mxu0 0
    %236 = vmatpush.bf16.msra.mxu0 0
    %237 = vmatpush.bf16.msra.mxu0 0
    %238 = vmatpush.bf16.msra.mxu0 0
    %239 = vmatpush.bf16.msra.mxu0 0
    %240 = vmatpush.bf16.msra.mxu0 0
    %241 = vmatpush.bf16.msra.mxu0 %v183
    %242 = vmatpush.bf16.msra.mxu0 %v182
    %243 = vmatmul.bf16.gmra.mxu0 %v188
    %v244 = vpop.f32.mrf.mxu0
    %v245 = vadd.f32 %v92, %v244
    %v246 = vpop.f32.mrf.mxu0
    %v247 = vadd.f32 %v92, %v246
    %248 = vmatmul.bf16.gmra.mxu0 %v191
    %v249 = vpop.f32.mrf.mxu0
    %v250 = vadd.f32 %v92, %v249
    %v251 = vpop.f32.mrf.mxu0
    %v252 = vadd.f32 %v92, %v251
    %253 = vmatmul.bf16.gmra.mxu0 %v194
    %v254 = vpop.f32.mrf.mxu0
    %v255 = vadd.f32 %v92, %v254
    %v256 = vpop.f32.mrf.mxu0
    %v257 = vadd.f32 %v92, %v256
    %258 = vmatmul.bf16.gmra.mxu0 %v197
    %v259 = vpop.f32.mrf.mxu0
    %v260 = vadd.f32 %v92, %v259
    %v261 = vpop.f32.mrf.mxu0
    %v262 = vadd.f32 %v92, %v261
    %263 = vmatmul.bf16.gmra.mxu0 %v200
    %v264 = vpop.f32.mrf.mxu0
    %v265 = vadd.f32 %v92, %v264
    %v266 = vpop.f32.mrf.mxu0
    %v267 = vadd.f32 %v92, %v266
    %268 = vmatmul.bf16.gmra.mxu0 %v203
    %v269 = vpop.f32.mrf.mxu0
    %v270 = vadd.f32 %v92, %v269
    %v271 = vpop.f32.mrf.mxu0
    %v272 = vadd.f32 %v92, %v271
    %273 = vmatmul.bf16.gmra.mxu0 %v206
    %v274 = vpop.f32.mrf.mxu0
    %v275 = vadd.f32 %v92, %v274
    %v276 = vpop.f32.mrf.mxu0
    %v277 = vadd.f32 %v92, %v276
    %278 = vmatmul.bf16.gmra.mxu0 %v209
    %v279 = vpop.f32.mrf.mxu0
    %v280 = vadd.f32 %v92, %v279
    %v281 = vpop.f32.mrf.mxu0
    %v282 = vadd.f32 %v92, %v281
    %283 = vmatmul.bf16.gmra.mxu0 %v212
    %v284 = vpop.f32.mrf.mxu0
    %v285 = vadd.f32 %v92, %v284
    %v286 = vpop.f32.mrf.mxu0
    %v287 = vadd.f32 %v92, %v286
    %288 = vmatmul.bf16.gmra.mxu0 %v215
    %v289 = vpop.f32.mrf.mxu0
    %v290 = vadd.f32 %v92, %v289
    %v291 = vpop.f32.mrf.mxu0
    %v292 = vadd.f32 %v92, %v291
    %293 = vmatmul.bf16.gmra.mxu0 %v218
    %v294 = vpop.f32.mrf.mxu0
    %v295 = vadd.f32 %v92, %v294
    %v296 = vpop.f32.mrf.mxu0
    %v297 = vadd.f32 %v92, %v296
    %298 = vmatmul.bf16.gmra.mxu0 %v221
    %v299 = vpop.f32.mrf.mxu0
    %v300 = vadd.f32 %v92, %v299
    %v301 = vpop.f32.mrf.mxu0
    %v302 = vadd.f32 %v92, %v301
    %303 = vmatmul.bf16.gmra.mxu0 %v224
    %v304 = vpop.f32.mrf.mxu0
    %v305 = vadd.f32 %v92, %v304
    %v306 = vpop.f32.mrf.mxu0
    %v307 = vadd.f32 %v92, %v306
    %308 = vmatmul.bf16.gmra.mxu0 %v227
    %v309 = vpop.f32.mrf.mxu0
    %v310 = vadd.f32 %v92, %v309
    %v311 = vpop.f32.mrf.mxu0
    %v312 = vadd.f32 %v92, %v311
    %313 = vmatmul.bf16.gmra.mxu0 %v230
    %v314 = vpop.f32.mrf.mxu0
    %v315 = vadd.f32 %v92, %v314
    %v316 = vpop.f32.mrf.mxu0
    %v317 = vadd.f32 %v92, %v316
    %318 = vmatmul.bf16.gmra.mxu0 %v233
    %v319 = vpop.f32.mrf.mxu0
    %v320 = vadd.f32 %v92, %v319
    %v321 = vpop.f32.mrf.mxu0
    %v322 = vadd.f32 %v92, %v321
    %323 = vdwg.mxu0
    %v340 = vunpack.c.l.b16 %v70
    %v341 = vunpack.c.l.b16 %v71
    %v342 = vunpack.c.l.b16 %v72
    %v343 = vunpack.c.l.b16 %v73
    %v344 = vunpack.c.l.b16 %v74
    %v345 = vunpack.c.l.b16 %v75
    %v346 = vunpack.c.l.b16 %v76
    %v347 = vunpack.c.l.b16 %v77
    %v348 = vunpack.c.l.b16 %v78
    %v349 = vunpack.c.l.b16 %v79
    %v350 = vunpack.c.l.b16 %v80
    %v351 = vunpack.c.l.b16 %v81
    %v352 = vunpack.c.l.b16 %v82
    %v353 = vunpack.c.l.b16 %v83
    %v354 = vunpack.c.l.b16 %v84
    %v355 = vunpack.c.l.b16 %v85
    %v356 = vpack.c.b16 %v341, %v340
    %v357 = vpack.c.b16 %v343, %v342
    %v358 = vpack.c.b16 %v345, %v344
    %v359 = vpack.c.b16 %v347, %v346
    %v360 = vpack.c.b16 %v349, %v348
    %v361 = vpack.c.b16 %v351, %v350
    %v362 = vpack.c.b16 %v353, %v352
    %v363 = vpack.c.b16 %v355, %v354
    %364 = vrot.lane.b32.xlu0 %v182, 96
    %v365 = vpop.permute.xlu0 %364
    %366 = vrot.lane.b32.xlu0 %v183, 96
    %v367 = vpop.permute.xlu0 %366
    %370 = vrot.lane.b32.xlu0 %v92, 96
    %v371 = vpop.permute.xlu0 %370
    %v374 = vsel %vm186, %v356, 0
    %v377 = vsel %vm186, %v357, 0
    %v380 = vsel %vm186, %v358, 0
    %v383 = vsel %vm186, %v359, 0
    %v386 = vsel %vm186, %v360, 0
    %v389 = vsel %vm186, %v361, 0
    %v392 = vsel %vm186, %v362, 0
    %v395 = vsel %vm186, %v363, 0
    %397 = vmatpush.bf16.msra.mxu0 0
    %398 = vmatpush.bf16.msra.mxu0 0
    %399 = vmatpush.bf16.msra.mxu0 0
    %400 = vmatpush.bf16.msra.mxu0 0
    %401 = vmatpush.bf16.msra.mxu0 0
    %402 = vmatpush.bf16.msra.mxu0 0
    %403 = vmatpush.bf16.msra.mxu0 %v367
    %404 = vmatpush.bf16.msra.mxu0 %v365
    %405 = vmatmul.bf16.gmra.mxu0 %v374
    %v406 = vpop.f32.mrf.mxu0
    %v407 = vadd.f32 %v371, %v406
    %v408 = vpop.f32.mrf.mxu0
    %v409 = vadd.f32 %v371, %v408
    %410 = vmatmul.bf16.gmra.mxu0 %v377
    %v411 = vpop.f32.mrf.mxu0
    %v412 = vadd.f32 %v371, %v411
    %v413 = vpop.f32.mrf.mxu0
    %v414 = vadd.f32 %v371, %v413
    %415 = vmatmul.bf16.gmra.mxu0 %v380
    %v416 = vpop.f32.mrf.mxu0
    %v417 = vadd.f32 %v371, %v416
    %v418 = vpop.f32.mrf.mxu0
    %v419 = vadd.f32 %v371, %v418
    %420 = vmatmul.bf16.gmra.mxu0 %v383
    %v421 = vpop.f32.mrf.mxu0
    %v422 = vadd.f32 %v371, %v421
    %v423 = vpop.f32.mrf.mxu0
    %v424 = vadd.f32 %v371, %v423
    %425 = vmatmul.bf16.gmra.mxu0 %v386
    %v426 = vpop.f32.mrf.mxu0
    %v427 = vadd.f32 %v371, %v426
    %v428 = vpop.f32.mrf.mxu0
    %v429 = vadd.f32 %v371, %v428
    %430 = vmatmul.bf16.gmra.mxu0 %v389
    %v431 = vpop.f32.mrf.mxu0
    %v432 = vadd.f32 %v371, %v431
    %v433 = vpop.f32.mrf.mxu0
    %v434 = vadd.f32 %v371, %v433
    %435 = vmatmul.bf16.gmra.mxu0 %v392
    %v436 = vpop.f32.mrf.mxu0
    %v437 = vadd.f32 %v371, %v436
    %v438 = vpop.f32.mrf.mxu0
    %v439 = vadd.f32 %v371, %v438
    %440 = vmatmul.bf16.gmra.mxu0 %v395
    %v441 = vpop.f32.mrf.mxu0
    %v442 = vadd.f32 %v371, %v441
    %v443 = vpop.f32.mrf.mxu0
    %v444 = vadd.f32 %v371, %v443
    %445 = vdwg.mxu0
    %v446 = vpack.c.bf16 %v245, %v245
    %v447 = vpack.c.bf16 %v247, %v247
    %v448 = vpack.c.bf16 %v250, %v250
    %v449 = vpack.c.bf16 %v252, %v252
    %v450 = vpack.c.bf16 %v255, %v255
    %v451 = vpack.c.bf16 %v257, %v257
    %v452 = vpack.c.bf16 %v260, %v260
    %v453 = vpack.c.bf16 %v262, %v262
    %v454 = vpack.c.bf16 %v265, %v265
    %v455 = vpack.c.bf16 %v267, %v267
    %v456 = vpack.c.bf16 %v270, %v270
    %v457 = vpack.c.bf16 %v272, %v272
    %v458 = vpack.c.bf16 %v275, %v275
    %v459 = vpack.c.bf16 %v277, %v277
    %v460 = vpack.c.bf16 %v280, %v280
    %v461 = vpack.c.bf16 %v282, %v282
    %v462 = vpack.c.bf16 %v285, %v285
    %v463 = vpack.c.bf16 %v287, %v287
    %v464 = vpack.c.bf16 %v290, %v290
    %v465 = vpack.c.bf16 %v292, %v292
    %v466 = vpack.c.bf16 %v295, %v295
    %v467 = vpack.c.bf16 %v297, %v297
    %v468 = vpack.c.bf16 %v300, %v300
    %v469 = vpack.c.bf16 %v302, %v302
    %v470 = vpack.c.bf16 %v305, %v305
    %v471 = vpack.c.bf16 %v307, %v307
    %v472 = vpack.c.bf16 %v310, %v310
    %v473 = vpack.c.bf16 %v312, %v312
    %v474 = vpack.c.bf16 %v315, %v315
    %v475 = vpack.c.bf16 %v317, %v317
    %v476 = vpack.c.bf16 %v320, %v320
    %v477 = vpack.c.bf16 %v322, %v322
    %v478 = vpack.c.bf16 %v407, %v407
    %v479 = vpack.c.bf16 %v409, %v409
    %v480 = vpack.c.bf16 %v412, %v412
    %v481 = vpack.c.bf16 %v414, %v414
    %v482 = vpack.c.bf16 %v417, %v417
    %v483 = vpack.c.bf16 %v419, %v419
    %v484 = vpack.c.bf16 %v422, %v422
    %v485 = vpack.c.bf16 %v424, %v424
    %v486 = vpack.c.bf16 %v427, %v427
    %v487 = vpack.c.bf16 %v429, %v429
    %v488 = vpack.c.bf16 %v432, %v432
    %v489 = vpack.c.bf16 %v434, %v434
    %v490 = vpack.c.bf16 %v437, %v437
    %v491 = vpack.c.bf16 %v439, %v439
    %v492 = vpack.c.bf16 %v442, %v442
    %v493 = vpack.c.bf16 %v444, %v444
    %v494 = vld [vmem:[%s4] sm:$0xff]
    %v495 = vld [vmem:[%s4 + $0x8] sm:$0xff]
    %v496 = vld [vmem:[%s4 + $0x10] sm:$0xff]
    %v497 = vld [vmem:[%s4 + $0x18] sm:$0xff]
    %v502 = vunpack.c.l.b16 %v446
    %v503 = vunpack.c.l.b16 %v447
    %v504 = vunpack.c.l.b16 %v448
    %v505 = vunpack.c.l.b16 %v449
    %v506 = vpack.c.b16 %v503, %v502
    %v507 = vpack.c.b16 %v505, %v504
    %v510 = vunpack.c.l.b16 %v478
    %v511 = vunpack.c.l.b16 %v479
    %v512 = vpack.c.b16 %v511, %v510
    %vm513 = vcmask 64512
    %v515 = vsel %vm513, %v506, 0
    %v518 = vsel %vm513, %v507, 0
    %v521 = vsel %vm513, %v512, 0
    %523 = vmatpush.bf16.xpose.msra.mxu0 0
    %524 = vmatpush.bf16.xpose.msra.mxu0 0
    %525 = vmatpush.bf16.xpose.msra.mxu0 0
    %526 = vmatpush.bf16.xpose.msra.mxu0 0
    %527 = vmatpush.bf16.xpose.msra.mxu0 0
    %528 = vmatpush.bf16.xpose.msra.mxu0 0
    %529 = vmatpush.bf16.xpose.msra.mxu0 0
    %530 = vmatpush.bf16.xpose.msra.mxu0 %v521
    %531 = vmatmul.bf16.gmra.mxu0 %v515
    %v532 = vpop.f32.mrf.mxu0
    %v533 = vadd.f32 %v494, %v532
    %v534 = vpop.f32.mrf.mxu0
    %v535 = vadd.f32 %v495, %v534
    %536 = vmatmul.bf16.gmra.mxu0 %v518
    %v537 = vpop.f32.mrf.mxu0
    %v538 = vadd.f32 %v496, %v537
    %v539 = vpop.f32.mrf.mxu0
    %v540 = vadd.f32 %v497, %v539
    %541 = vdwg.mxu0
    %v546 = vunpack.c.l.b16 %v450
    %v547 = vunpack.c.l.b16 %v451
    %v548 = vunpack.c.l.b16 %v452
    %v549 = vunpack.c.l.b16 %v453
    %v550 = vpack.c.b16 %v547, %v546
    %v551 = vpack.c.b16 %v549, %v548
    %v554 = vunpack.c.l.b16 %v480
    %v555 = vunpack.c.l.b16 %v481
    %v556 = vpack.c.b16 %v555, %v554
    %v558 = vsel %vm513, %v550, 0
    %v561 = vsel %vm513, %v551, 0
    %v564 = vsel %vm513, %v556, 0
    %566 = vmatpush.bf16.xpose.msra.mxu0 0
    %567 = vmatpush.bf16.xpose.msra.mxu0 0
    %568 = vmatpush.bf16.xpose.msra.mxu0 0
    %569 = vmatpush.bf16.xpose.msra.mxu0 0
    %570 = vmatpush.bf16.xpose.msra.mxu0 0
    %571 = vmatpush.bf16.xpose.msra.mxu0 0
    %572 = vmatpush.bf16.xpose.msra.mxu0 0
    %573 = vmatpush.bf16.xpose.msra.mxu0 %v564
    %574 = vmatmul.bf16.gmra.mxu0 %v558
    %v575 = vpop.f32.mrf.mxu0
    %v576 = vadd.f32 %v494, %v575
    %v577 = vpop.f32.mrf.mxu0
    %v578 = vadd.f32 %v495, %v577
    %579 = vmatmul.bf16.gmra.mxu0 %v561
    %v580 = vpop.f32.mrf.mxu0
    %v581 = vadd.f32 %v496, %v580
    %v582 = vpop.f32.mrf.mxu0
    %v583 = vadd.f32 %v497, %v582
    %584 = vdwg.mxu0
    %v589 = vunpack.c.l.b16 %v454
    %v590 = vunpack.c.l.b16 %v455
    %v591 = vunpack.c.l.b16 %v456
    %v592 = vunpack.c.l.b16 %v457
    %v593 = vpack.c.b16 %v590, %v589
    %v594 = vpack.c.b16 %v592, %v591
    %v597 = vunpack.c.l.b16 %v482
    %v598 = vunpack.c.l.b16 %v483
    %v599 = vpack.c.b16 %v598, %v597
    %v601 = vsel %vm513, %v593, 0
    %v604 = vsel %vm513, %v594, 0
    %v607 = vsel %vm513, %v599, 0
    %609 = vmatpush.bf16.xpose.msra.mxu0 0
    %610 = vmatpush.bf16.xpose.msra.mxu0 0
    %611 = vmatpush.bf16.xpose.msra.mxu0 0
    %612 = vmatpush.bf16.xpose.msra.mxu0 0
    %613 = vmatpush.bf16.xpose.msra.mxu0 0
    %614 = vmatpush.bf16.xpose.msra.mxu0 0
    %615 = vmatpush.bf16.xpose.msra.mxu0 0
    %616 = vmatpush.bf16.xpose.msra.mxu0 %v607
    %617 = vmatmul.bf16.gmra.mxu0 %v601
    %v618 = vpop.f32.mrf.mxu0
    %v619 = vadd.f32 %v494, %v618
    %v620 = vpop.f32.mrf.mxu0
    %v621 = vadd.f32 %v495, %v620
    %622 = vmatmul.bf16.gmra.mxu0 %v604
    %v623 = vpop.f32.mrf.mxu0
    %v624 = vadd.f32 %v496, %v623
    %v625 = vpop.f32.mrf.mxu0
    %v626 = vadd.f32 %v497, %v625
    %627 = vdwg.mxu0
    %v632 = vunpack.c.l.b16 %v458
    %v633 = vunpack.c.l.b16 %v459
    %v634 = vunpack.c.l.b16 %v460
    %v635 = vunpack.c.l.b16 %v461
    %v636 = vpack.c.b16 %v633, %v632
    %v637 = vpack.c.b16 %v635, %v634
    %v640 = vunpack.c.l.b16 %v484
    %v641 = vunpack.c.l.b16 %v485
    %v642 = vpack.c.b16 %v641, %v640
    %v644 = vsel %vm513, %v636, 0
    %v647 = vsel %vm513, %v637, 0
    %v650 = vsel %vm513, %v642, 0
    %652 = vmatpush.bf16.xpose.msra.mxu0 0
    %653 = vmatpush.bf16.xpose.msra.mxu0 0
    %654 = vmatpush.bf16.xpose.msra.mxu0 0
    %655 = vmatpush.bf16.xpose.msra.mxu0 0
    %656 = vmatpush.bf16.xpose.msra.mxu0 0
    %657 = vmatpush.bf16.xpose.msra.mxu0 0
    %658 = vmatpush.bf16.xpose.msra.mxu0 0
    %659 = vmatpush.bf16.xpose.msra.mxu0 %v650
    %660 = vmatmul.bf16.gmra.mxu0 %v644
    %v661 = vpop.f32.mrf.mxu0
    %v662 = vadd.f32 %v494, %v661
    %v663 = vpop.f32.mrf.mxu0
    %v664 = vadd.f32 %v495, %v663
    %665 = vmatmul.bf16.gmra.mxu0 %v647
    %v666 = vpop.f32.mrf.mxu0
    %v667 = vadd.f32 %v496, %v666
    %v668 = vpop.f32.mrf.mxu0
    %v669 = vadd.f32 %v497, %v668
    %670 = vdwg.mxu0
    %v675 = vunpack.c.l.b16 %v462
    %v676 = vunpack.c.l.b16 %v463
    %v677 = vunpack.c.l.b16 %v464
    %v678 = vunpack.c.l.b16 %v465
    %v679 = vpack.c.b16 %v676, %v675
    %v680 = vpack.c.b16 %v678, %v677
    %v683 = vunpack.c.l.b16 %v486
    %v684 = vunpack.c.l.b16 %v487
    %v685 = vpack.c.b16 %v684, %v683
    %v687 = vsel %vm513, %v679, 0
    %v690 = vsel %vm513, %v680, 0
    %v693 = vsel %vm513, %v685, 0
    %695 = vmatpush.bf16.xpose.msra.mxu0 0
    %696 = vmatpush.bf16.xpose.msra.mxu0 0
    %697 = vmatpush.bf16.xpose.msra.mxu0 0
    %698 = vmatpush.bf16.xpose.msra.mxu0 0
    %699 = vmatpush.bf16.xpose.msra.mxu0 0
    %700 = vmatpush.bf16.xpose.msra.mxu0 0
    %701 = vmatpush.bf16.xpose.msra.mxu0 0
    %702 = vmatpush.bf16.xpose.msra.mxu0 %v693
    %703 = vmatmul.bf16.gmra.mxu0 %v687
    %v704 = vpop.f32.mrf.mxu0
    %v705 = vadd.f32 %v494, %v704
    %v706 = vpop.f32.mrf.mxu0
    %v707 = vadd.f32 %v495, %v706
    %708 = vmatmul.bf16.gmra.mxu0 %v690
    %v709 = vpop.f32.mrf.mxu0
    %v710 = vadd.f32 %v496, %v709
    %v711 = vpop.f32.mrf.mxu0
    %v712 = vadd.f32 %v497, %v711
    %713 = vdwg.mxu0
    %v718 = vunpack.c.l.b16 %v466
    %v719 = vunpack.c.l.b16 %v467
    %v720 = vunpack.c.l.b16 %v468
    %v721 = vunpack.c.l.b16 %v469
    %v722 = vpack.c.b16 %v719, %v718
    %v723 = vpack.c.b16 %v721, %v720
    %v726 = vunpack.c.l.b16 %v488
    %v727 = vunpack.c.l.b16 %v489
    %v728 = vpack.c.b16 %v727, %v726
    %v730 = vsel %vm513, %v722, 0
    %v733 = vsel %vm513, %v723, 0
    %v736 = vsel %vm513, %v728, 0
    %738 = vmatpush.bf16.xpose.msra.mxu0 0
    %739 = vmatpush.bf16.xpose.msra.mxu0 0
    %740 = vmatpush.bf16.xpose.msra.mxu0 0
    %741 = vmatpush.bf16.xpose.msra.mxu0 0
    %742 = vmatpush.bf16.xpose.msra.mxu0 0
    %743 = vmatpush.bf16.xpose.msra.mxu0 0
    %744 = vmatpush.bf16.xpose.msra.mxu0 0
    %745 = vmatpush.bf16.xpose.msra.mxu0 %v736
    %746 = vmatmul.bf16.gmra.mxu0 %v730
    %v747 = vpop.f32.mrf.mxu0
    %v748 = vadd.f32 %v494, %v747
    %v749 = vpop.f32.mrf.mxu0
    %v750 = vadd.f32 %v495, %v749
    %751 = vmatmul.bf16.gmra.mxu0 %v733
    %v752 = vpop.f32.mrf.mxu0
    %v753 = vadd.f32 %v496, %v752
    %v754 = vpop.f32.mrf.mxu0
    %v755 = vadd.f32 %v497, %v754
    %756 = vdwg.mxu0
    %v761 = vunpack.c.l.b16 %v470
    %v762 = vunpack.c.l.b16 %v471
    %v763 = vunpack.c.l.b16 %v472
    %v764 = vunpack.c.l.b16 %v473
    %v765 = vpack.c.b16 %v762, %v761
    %v766 = vpack.c.b16 %v764, %v763
    %v769 = vunpack.c.l.b16 %v490
    %v770 = vunpack.c.l.b16 %v491
    %v771 = vpack.c.b16 %v770, %v769
    %v773 = vsel %vm513, %v765, 0
    %v776 = vsel %vm513, %v766, 0
    %v779 = vsel %vm513, %v771, 0
    %781 = vmatpush.bf16.xpose.msra.mxu0 0
    %782 = vmatpush.bf16.xpose.msra.mxu0 0
    %783 = vmatpush.bf16.xpose.msra.mxu0 0
    %784 = vmatpush.bf16.xpose.msra.mxu0 0
    %785 = vmatpush.bf16.xpose.msra.mxu0 0
    %786 = vmatpush.bf16.xpose.msra.mxu0 0
    %787 = vmatpush.bf16.xpose.msra.mxu0 0
    %788 = vmatpush.bf16.xpose.msra.mxu0 %v779
    %789 = vmatmul.bf16.gmra.mxu0 %v773
    %v790 = vpop.f32.mrf.mxu0
    %v791 = vadd.f32 %v494, %v790
    %v792 = vpop.f32.mrf.mxu0
    %v793 = vadd.f32 %v495, %v792
    %794 = vmatmul.bf16.gmra.mxu0 %v776
    %v795 = vpop.f32.mrf.mxu0
    %v796 = vadd.f32 %v496, %v795
    %v797 = vpop.f32.mrf.mxu0
    %v798 = vadd.f32 %v497, %v797
    %799 = vdwg.mxu0
    %v804 = vunpack.c.l.b16 %v474
    %v805 = vunpack.c.l.b16 %v475
    %v806 = vunpack.c.l.b16 %v476
    %v807 = vunpack.c.l.b16 %v477
    %v808 = vpack.c.b16 %v805, %v804
    %v809 = vpack.c.b16 %v807, %v806
    %v812 = vunpack.c.l.b16 %v492
    %v813 = vunpack.c.l.b16 %v493
    %v814 = vpack.c.b16 %v813, %v812
    %v816 = vsel %vm513, %v808, 0
    %v819 = vsel %vm513, %v809, 0
    %v822 = vsel %vm513, %v814, 0
    %824 = vmatpush.bf16.xpose.msra.mxu0 0
    %825 = vmatpush.bf16.xpose.msra.mxu0 0
    %826 = vmatpush.bf16.xpose.msra.mxu0 0
    %827 = vmatpush.bf16.xpose.msra.mxu0 0
    %828 = vmatpush.bf16.xpose.msra.mxu0 0
    %829 = vmatpush.bf16.xpose.msra.mxu0 0
    %830 = vmatpush.bf16.xpose.msra.mxu0 0
    %831 = vmatpush.bf16.xpose.msra.mxu0 %v822
    %832 = vmatmul.bf16.gmra.mxu0 %v816
    %v833 = vpop.f32.mrf.mxu0
    %v834 = vadd.f32 %v494, %v833
    %v835 = vpop.f32.mrf.mxu0
    %v836 = vadd.f32 %v495, %v835
    %837 = vmatmul.bf16.gmra.mxu0 %v819
    %v838 = vpop.f32.mrf.mxu0
    %v839 = vadd.f32 %v496, %v838
    %v840 = vpop.f32.mrf.mxu0
    %v841 = vadd.f32 %v497, %v840
    %842 = vdwg.mxu0
    %vm843 = vcmask 130048
    %v844 = vsel %vm843, %v533, -inf
    %845 = vmax.xlane.f32.xlu0 %v844
    %v846 = vpop.xlane.xlu0 %845
    %v847 = vsel %vm843, %v535, -inf
    %848 = vmax.xlane.f32.xlu0 %v847
    %v849 = vpop.xlane.xlu0 %848
    %v850 = vsel %vm843, %v538, -inf
    %851 = vmax.xlane.f32.xlu0 %v850
    %v852 = vpop.xlane.xlu0 %851
    %v853 = vsel %vm843, %v540, -inf
    %854 = vmax.xlane.f32.xlu0 %v853
    %v855 = vpop.xlane.xlu0 %854
    %v856 = vsel %vm843, %v576, -inf
    %857 = vmax.xlane.f32.xlu0 %v856
    %v858 = vpop.xlane.xlu0 %857
    %v859 = vsel %vm843, %v578, -inf
    %860 = vmax.xlane.f32.xlu0 %v859
    %v861 = vpop.xlane.xlu0 %860
    %v862 = vsel %vm843, %v581, -inf
    %863 = vmax.xlane.f32.xlu0 %v862
    %v864 = vpop.xlane.xlu0 %863
    %v865 = vsel %vm843, %v583, -inf
    %866 = vmax.xlane.f32.xlu0 %v865
    %v867 = vpop.xlane.xlu0 %866
    %v868 = vsel %vm843, %v619, -inf
    %869 = vmax.xlane.f32.xlu0 %v868
    %v870 = vpop.xlane.xlu0 %869
    %v871 = vsel %vm843, %v621, -inf
    %872 = vmax.xlane.f32.xlu0 %v871
    %v873 = vpop.xlane.xlu0 %872
    %v874 = vsel %vm843, %v624, -inf
    %875 = vmax.xlane.f32.xlu0 %v874
    %v876 = vpop.xlane.xlu0 %875
    %v877 = vsel %vm843, %v626, -inf
    %878 = vmax.xlane.f32.xlu0 %v877
    %v879 = vpop.xlane.xlu0 %878
    %v880 = vsel %vm843, %v662, -inf
    %881 = vmax.xlane.f32.xlu0 %v880
    %v882 = vpop.xlane.xlu0 %881
    %v883 = vsel %vm843, %v664, -inf
    %884 = vmax.xlane.f32.xlu0 %v883
    %v885 = vpop.xlane.xlu0 %884
    %v886 = vsel %vm843, %v667, -inf
    %887 = vmax.xlane.f32.xlu0 %v886
    %v888 = vpop.xlane.xlu0 %887
    %v889 = vsel %vm843, %v669, -inf
    %890 = vmax.xlane.f32.xlu0 %v889
    %v891 = vpop.xlane.xlu0 %890
    %v892 = vsel %vm843, %v705, -inf
    %893 = vmax.xlane.f32.xlu0 %v892
    %v894 = vpop.xlane.xlu0 %893
    %v895 = vsel %vm843, %v707, -inf
    %896 = vmax.xlane.f32.xlu0 %v895
    %v897 = vpop.xlane.xlu0 %896
    %v898 = vsel %vm843, %v710, -inf
    %899 = vmax.xlane.f32.xlu0 %v898
    %v900 = vpop.xlane.xlu0 %899
    %v901 = vsel %vm843, %v712, -inf
    %902 = vmax.xlane.f32.xlu0 %v901
    %v903 = vpop.xlane.xlu0 %902
    %v904 = vsel %vm843, %v748, -inf
    %905 = vmax.xlane.f32.xlu0 %v904
    %v906 = vpop.xlane.xlu0 %905
    %v907 = vsel %vm843, %v750, -inf
    %908 = vmax.xlane.f32.xlu0 %v907
    %v909 = vpop.xlane.xlu0 %908
    %v910 = vsel %vm843, %v753, -inf
    %911 = vmax.xlane.f32.xlu0 %v910
    %v912 = vpop.xlane.xlu0 %911
    %v913 = vsel %vm843, %v755, -inf
    %914 = vmax.xlane.f32.xlu0 %v913
    %v915 = vpop.xlane.xlu0 %914
    %v916 = vsel %vm843, %v791, -inf
    %917 = vmax.xlane.f32.xlu0 %v916
    %v918 = vpop.xlane.xlu0 %917
    %v919 = vsel %vm843, %v793, -inf
    %920 = vmax.xlane.f32.xlu0 %v919
    %v921 = vpop.xlane.xlu0 %920
    %v922 = vsel %vm843, %v796, -inf
    %923 = vmax.xlane.f32.xlu0 %v922
    %v924 = vpop.xlane.xlu0 %923
    %v925 = vsel %vm843, %v798, -inf
    %926 = vmax.xlane.f32.xlu0 %v925
    %v927 = vpop.xlane.xlu0 %926
    %v928 = vsel %vm843, %v834, -inf
    %929 = vmax.xlane.f32.xlu0 %v928
    %v930 = vpop.xlane.xlu0 %929
    %v931 = vsel %vm843, %v836, -inf
    %932 = vmax.xlane.f32.xlu0 %v931
    %v933 = vpop.xlane.xlu0 %932
    %v934 = vsel %vm843, %v839, -inf
    %935 = vmax.xlane.f32.xlu0 %v934
    %v936 = vpop.xlane.xlu0 %935
    %v937 = vsel %vm843, %v841, -inf
    %938 = vmax.xlane.f32.xlu0 %v937
    %v939 = vpop.xlane.xlu0 %938
    %v940 = vsub.f32 %v533, %v846
    %v941 = vsub.f32 %v535, %v849
    %v942 = vsub.f32 %v538, %v852
    %v943 = vsub.f32 %v540, %v855
    %v944 = vsub.f32 %v576, %v858
    %v945 = vsub.f32 %v578, %v861
    %v946 = vsub.f32 %v581, %v864
    %v947 = vsub.f32 %v583, %v867
    %v948 = vsub.f32 %v619, %v870
    %v949 = vsub.f32 %v621, %v873
    %v950 = vsub.f32 %v624, %v876
    %v951 = vsub.f32 %v626, %v879
    %v952 = vsub.f32 %v662, %v882
    %v953 = vsub.f32 %v664, %v885
    %v954 = vsub.f32 %v667, %v888
    %v955 = vsub.f32 %v669, %v891
    %v956 = vsub.f32 %v705, %v894
    %v957 = vsub.f32 %v707, %v897
    %v958 = vsub.f32 %v710, %v900
    %v959 = vsub.f32 %v712, %v903
    %v960 = vsub.f32 %v748, %v906
    %v961 = vsub.f32 %v750, %v909
    %v962 = vsub.f32 %v753, %v912
    %v963 = vsub.f32 %v755, %v915
    %v964 = vsub.f32 %v791, %v918
    %v965 = vsub.f32 %v793, %v921
    %v966 = vsub.f32 %v796, %v924
    %v967 = vsub.f32 %v798, %v927
    %v968 = vsub.f32 %v834, %v930
    %v969 = vsub.f32 %v836, %v933
    %v970 = vsub.f32 %v839, %v936
    %v971 = vsub.f32 %v841, %v939
    %v972 = vmul.f32 %v940, 1.442695
    %v973 = vpow.pop %v972
    %v974 = vmul.f32 %v941, 1.442695
    %v975 = vpow.pop %v974
    %v976 = vmul.f32 %v942, 1.442695
    %v977 = vpow.pop %v976
    %v978 = vmul.f32 %v943, 1.442695
    %v979 = vpow.pop %v978
    %v980 = vmul.f32 %v944, 1.442695
    %v981 = vpow.pop %v980
    %v982 = vmul.f32 %v945, 1.442695
    %v983 = vpow.pop %v982
    %v984 = vmul.f32 %v946, 1.442695
    %v985 = vpow.pop %v984
    %v986 = vmul.f32 %v947, 1.442695
    %v987 = vpow.pop %v986
    %v988 = vmul.f32 %v948, 1.442695
    %v989 = vpow.pop %v988
    %v990 = vmul.f32 %v949, 1.442695
    %v991 = vpow.pop %v990
    %v992 = vmul.f32 %v950, 1.442695
    %v993 = vpow.pop %v992
    %v994 = vmul.f32 %v951, 1.442695
    %v995 = vpow.pop %v994
    %v996 = vmul.f32 %v952, 1.442695
    %v997 = vpow.pop %v996
    %v998 = vmul.f32 %v953, 1.442695
    %v999 = vpow.pop %v998
    %v1000 = vmul.f32 %v954, 1.442695
    %v1001 = vpow.pop %v1000
    %v1002 = vmul.f32 %v955, 1.442695
    %v1003 = vpow.pop %v1002
    %v1004 = vmul.f32 %v956, 1.442695
    %v1005 = vpow.pop %v1004
    %v1006 = vmul.f32 %v957, 1.442695
    %v1007 = vpow.pop %v1006
    %v1008 = vmul.f32 %v958, 1.442695
    %v1009 = vpow.pop %v1008
    %v1010 = vmul.f32 %v959, 1.442695
    %v1011 = vpow.pop %v1010
    %v1012 = vmul.f32 %v960, 1.442695
    %v1013 = vpow.pop %v1012
    %v1014 = vmul.f32 %v961, 1.442695
    %v1015 = vpow.pop %v1014
    %v1016 = vmul.f32 %v962, 1.442695
    %v1017 = vpow.pop %v1016
    %v1018 = vmul.f32 %v963, 1.442695
    %v1019 = vpow.pop %v1018
    %v1020 = vmul.f32 %v964, 1.442695
    %v1021 = vpow.pop %v1020
    %v1022 = vmul.f32 %v965, 1.442695
    %v1023 = vpow.pop %v1022
    %v1024 = vmul.f32 %v966, 1.442695
    %v1025 = vpow.pop %v1024
    %v1026 = vmul.f32 %v967, 1.442695
    %v1027 = vpow.pop %v1026
    %v1028 = vmul.f32 %v968, 1.442695
    %v1029 = vpow.pop %v1028
    %v1030 = vmul.f32 %v969, 1.442695
    %v1031 = vpow.pop %v1030
    %v1032 = vmul.f32 %v970, 1.442695
    %v1033 = vpow.pop %v1032
    %v1034 = vmul.f32 %v971, 1.442695
    %v1035 = vpow.pop %v1034
    %v1036 = vsel %vm843, %v973, 0.0
    %1037 = vadd.xlane.f32.xlu0 %v1036
    %v1038 = vpop.xlane.xlu0 %1037
    %v1039 = vsel %vm843, %v975, 0.0
    %1040 = vadd.xlane.f32.xlu0 %v1039
    %v1041 = vpop.xlane.xlu0 %1040
    %v1042 = vsel %vm843, %v977, 0.0
    %1043 = vadd.xlane.f32.xlu0 %v1042
    %v1044 = vpop.xlane.xlu0 %1043
    %v1045 = vsel %vm843, %v979, 0.0
    %1046 = vadd.xlane.f32.xlu0 %v1045
    %v1047 = vpop.xlane.xlu0 %1046
    %v1048 = vsel %vm843, %v981, 0.0
    %1049 = vadd.xlane.f32.xlu0 %v1048
    %v1050 = vpop.xlane.xlu0 %1049
    %v1051 = vsel %vm843, %v983, 0.0
    %1052 = vadd.xlane.f32.xlu0 %v1051
    %v1053 = vpop.xlane.xlu0 %1052
    %v1054 = vsel %vm843, %v985, 0.0
    %1055 = vadd.xlane.f32.xlu0 %v1054
    %v1056 = vpop.xlane.xlu0 %1055
    %v1057 = vsel %vm843, %v987, 0.0
    %1058 = vadd.xlane.f32.xlu0 %v1057
    %v1059 = vpop.xlane.xlu0 %1058
    %v1060 = vsel %vm843, %v989, 0.0
    %1061 = vadd.xlane.f32.xlu0 %v1060
    %v1062 = vpop.xlane.xlu0 %1061
    %v1063 = vsel %vm843, %v991, 0.0
    %1064 = vadd.xlane.f32.xlu0 %v1063
    %v1065 = vpop.xlane.xlu0 %1064
    %v1066 = vsel %vm843, %v993, 0.0
    %1067 = vadd.xlane.f32.xlu0 %v1066
    %v1068 = vpop.xlane.xlu0 %1067
    %v1069 = vsel %vm843, %v995, 0.0
    %1070 = vadd.xlane.f32.xlu0 %v1069
    %v1071 = vpop.xlane.xlu0 %1070
    %v1072 = vsel %vm843, %v997, 0.0
    %1073 = vadd.xlane.f32.xlu0 %v1072
    %v1074 = vpop.xlane.xlu0 %1073
    %v1075 = vsel %vm843, %v999, 0.0
    %1076 = vadd.xlane.f32.xlu0 %v1075
    %v1077 = vpop.xlane.xlu0 %1076
    %v1078 = vsel %vm843, %v1001, 0.0
    %1079 = vadd.xlane.f32.xlu0 %v1078
    %v1080 = vpop.xlane.xlu0 %1079
    %v1081 = vsel %vm843, %v1003, 0.0
    %1082 = vadd.xlane.f32.xlu0 %v1081
    %v1083 = vpop.xlane.xlu0 %1082
    %v1084 = vsel %vm843, %v1005, 0.0
    %1085 = vadd.xlane.f32.xlu0 %v1084
    %v1086 = vpop.xlane.xlu0 %1085
    %v1087 = vsel %vm843, %v1007, 0.0
    %1088 = vadd.xlane.f32.xlu0 %v1087
    %v1089 = vpop.xlane.xlu0 %1088
    %v1090 = vsel %vm843, %v1009, 0.0
    %1091 = vadd.xlane.f32.xlu0 %v1090
    %v1092 = vpop.xlane.xlu0 %1091
    %v1093 = vsel %vm843, %v1011, 0.0
    %1094 = vadd.xlane.f32.xlu0 %v1093
    %v1095 = vpop.xlane.xlu0 %1094
    %v1096 = vsel %vm843, %v1013, 0.0
    %1097 = vadd.xlane.f32.xlu0 %v1096
    %v1098 = vpop.xlane.xlu0 %1097
    %v1099 = vsel %vm843, %v1015, 0.0
    %1100 = vadd.xlane.f32.xlu0 %v1099
    %v1101 = vpop.xlane.xlu0 %1100
    %v1102 = vsel %vm843, %v1017, 0.0
    %1103 = vadd.xlane.f32.xlu0 %v1102
    %v1104 = vpop.xlane.xlu0 %1103
    %v1105 = vsel %vm843, %v1019, 0.0
    %1106 = vadd.xlane.f32.xlu0 %v1105
    %v1107 = vpop.xlane.xlu0 %1106
    %v1108 = vsel %vm843, %v1021, 0.0
    %1109 = vadd.xlane.f32.xlu0 %v1108
    %v1110 = vpop.xlane.xlu0 %1109
    %v1111 = vsel %vm843, %v1023, 0.0
    %1112 = vadd.xlane.f32.xlu0 %v1111
    %v1113 = vpop.xlane.xlu0 %1112
    %v1114 = vsel %vm843, %v1025, 0.0
    %1115 = vadd.xlane.f32.xlu0 %v1114
    %v1116 = vpop.xlane.xlu0 %1115
    %v1117 = vsel %vm843, %v1027, 0.0
    %1118 = vadd.xlane.f32.xlu0 %v1117
    %v1119 = vpop.xlane.xlu0 %1118
    %v1120 = vsel %vm843, %v1029, 0.0
    %1121 = vadd.xlane.f32.xlu0 %v1120
    %v1122 = vpop.xlane.xlu0 %1121
    %v1123 = vsel %vm843, %v1031, 0.0
    %1124 = vadd.xlane.f32.xlu0 %v1123
    %v1125 = vpop.xlane.xlu0 %1124
    %v1126 = vsel %vm843, %v1033, 0.0
    %1127 = vadd.xlane.f32.xlu0 %v1126
    %v1128 = vpop.xlane.xlu0 %1127
    %v1129 = vsel %vm843, %v1035, 0.0
    %1130 = vadd.xlane.f32.xlu0 %v1129
    %v1131 = vpop.xlane.xlu0 %1130
    %v1132 = vrcp.pop %v1038
    %v1133 = vrcp.pop %v1041
    %v1134 = vrcp.pop %v1044
    %v1135 = vrcp.pop %v1047
    %v1136 = vrcp.pop %v1050
    %v1137 = vrcp.pop %v1053
    %v1138 = vrcp.pop %v1056
    %v1139 = vrcp.pop %v1059
    %v1140 = vrcp.pop %v1062
    %v1141 = vrcp.pop %v1065
    %v1142 = vrcp.pop %v1068
    %v1143 = vrcp.pop %v1071
    %v1144 = vrcp.pop %v1074
    %v1145 = vrcp.pop %v1077
    %v1146 = vrcp.pop %v1080
    %v1147 = vrcp.pop %v1083
    %v1148 = vrcp.pop %v1086
    %v1149 = vrcp.pop %v1089
    %v1150 = vrcp.pop %v1092
    %v1151 = vrcp.pop %v1095
    %v1152 = vrcp.pop %v1098
    %v1153 = vrcp.pop %v1101
    %v1154 = vrcp.pop %v1104
    %v1155 = vrcp.pop %v1107
    %v1156 = vrcp.pop %v1110
    %v1157 = vrcp.pop %v1113
    %v1158 = vrcp.pop %v1116
    %v1159 = vrcp.pop %v1119
    %v1160 = vrcp.pop %v1122
    %v1161 = vrcp.pop %v1125
    %v1162 = vrcp.pop %v1128
    %v1163 = vrcp.pop %v1131
    %v1164 = vmul.f32 %v973, %v1132
    %v1165 = vmul.f32 %v975, %v1133
    %v1166 = vmul.f32 %v977, %v1134
    %v1167 = vmul.f32 %v979, %v1135
    %v1168 = vmul.f32 %v981, %v1136
    %v1169 = vmul.f32 %v983, %v1137
    %v1170 = vmul.f32 %v985, %v1138
    %v1171 = vmul.f32 %v987, %v1139
    %v1172 = vmul.f32 %v989, %v1140
    %v1173 = vmul.f32 %v991, %v1141
    %v1174 = vmul.f32 %v993, %v1142
    %v1175 = vmul.f32 %v995, %v1143
    %v1176 = vmul.f32 %v997, %v1144
    %v1177 = vmul.f32 %v999, %v1145
    %v1178 = vmul.f32 %v1001, %v1146
    %v1179 = vmul.f32 %v1003, %v1147
    %v1180 = vmul.f32 %v1005, %v1148
    %v1181 = vmul.f32 %v1007, %v1149
    %v1182 = vmul.f32 %v1009, %v1150
    %v1183 = vmul.f32 %v1011, %v1151
    %v1184 = vmul.f32 %v1013, %v1152
    %v1185 = vmul.f32 %v1015, %v1153
    %v1186 = vmul.f32 %v1017, %v1154
    %v1187 = vmul.f32 %v1019, %v1155
    %v1188 = vmul.f32 %v1021, %v1156
    %v1189 = vmul.f32 %v1023, %v1157
    %v1190 = vmul.f32 %v1025, %v1158
    %v1191 = vmul.f32 %v1027, %v1159
    %v1192 = vmul.f32 %v1029, %v1160
    %v1193 = vmul.f32 %v1031, %v1161
    %v1194 = vmul.f32 %v1033, %v1162
    %v1195 = vmul.f32 %v1035, %v1163
    %v1196 = vpack.c.bf16 %v1164, %v1164
    %v1197 = vpack.c.bf16 %v1165, %v1165
    %v1198 = vpack.c.bf16 %v1166, %v1166
    %v1199 = vpack.c.bf16 %v1167, %v1167
    %v1200 = vpack.c.bf16 %v1168, %v1168
    %v1201 = vpack.c.bf16 %v1169, %v1169
    %v1202 = vpack.c.bf16 %v1170, %v1170
    %v1203 = vpack.c.bf16 %v1171, %v1171
    %v1204 = vpack.c.bf16 %v1172, %v1172
    %v1205 = vpack.c.bf16 %v1173, %v1173
    %v1206 = vpack.c.bf16 %v1174, %v1174
    %v1207 = vpack.c.bf16 %v1175, %v1175
    %v1208 = vpack.c.bf16 %v1176, %v1176
    %v1209 = vpack.c.bf16 %v1177, %v1177
    %v1210 = vpack.c.bf16 %v1178, %v1178
    %v1211 = vpack.c.bf16 %v1179, %v1179
    %v1212 = vpack.c.bf16 %v1180, %v1180
    %v1213 = vpack.c.bf16 %v1181, %v1181
    %v1214 = vpack.c.bf16 %v1182, %v1182
    %v1215 = vpack.c.bf16 %v1183, %v1183
    %v1216 = vpack.c.bf16 %v1184, %v1184
    %v1217 = vpack.c.bf16 %v1185, %v1185
    %v1218 = vpack.c.bf16 %v1186, %v1186
    %v1219 = vpack.c.bf16 %v1187, %v1187
    %v1220 = vpack.c.bf16 %v1188, %v1188
    %v1221 = vpack.c.bf16 %v1189, %v1189
    %v1222 = vpack.c.bf16 %v1190, %v1190
    %v1223 = vpack.c.bf16 %v1191, %v1191
    %v1224 = vpack.c.bf16 %v1192, %v1192
    %v1225 = vpack.c.bf16 %v1193, %v1193
    %v1226 = vpack.c.bf16 %v1194, %v1194
    %v1227 = vpack.c.bf16 %v1195, %v1195
    %v1232 = vunpack.c.l.b16 %v1196
    %v1233 = vunpack.c.l.b16 %v1197
    %v1234 = vunpack.c.l.b16 %v1198
    %v1235 = vunpack.c.l.b16 %v1199
    %v1236 = vpack.c.b16 %v1233, %v1232
    %v1237 = vpack.c.b16 %v1235, %v1234
    %1238 = vrot.lane.b32.xlu0 %v512, 96
    %v1239 = vpop.permute.xlu0 %1238
    %v1242 = vsel %vm843, %v1236, 0
    %v1245 = vsel %vm843, %v1237, 0
    %1247 = vmatpush.bf16.msra.mxu0 0
    %1248 = vmatpush.bf16.msra.mxu0 0
    %1249 = vmatpush.bf16.msra.mxu0 0
    %1250 = vmatpush.bf16.msra.mxu0 0
    %1251 = vmatpush.bf16.msra.mxu0 0
    %1252 = vmatpush.bf16.msra.mxu0 0
    %1253 = vmatpush.bf16.msra.mxu0 0
    %1254 = vmatpush.bf16.msra.mxu0 %v1239
    %1255 = vmatmul.bf16.gmra.mxu0 %v1242
    %v1256 = vpop.f32.mrf.mxu0
    %v1257 = vadd.f32 0.0, %v1256
    %v1258 = vpop.f32.mrf.mxu0
    %v1259 = vadd.f32 0.0, %v1258
    %1260 = vmatmul.bf16.gmra.mxu0 %v1245
    %v1261 = vpop.f32.mrf.mxu0
    %v1262 = vadd.f32 0.0, %v1261
    %v1263 = vpop.f32.mrf.mxu0
    %v1264 = vadd.f32 0.0, %v1263
    %1265 = vdwg.mxu0
    %v1270 = vunpack.c.l.b16 %v1200
    %v1271 = vunpack.c.l.b16 %v1201
    %v1272 = vunpack.c.l.b16 %v1202
    %v1273 = vunpack.c.l.b16 %v1203
    %v1274 = vpack.c.b16 %v1271, %v1270
    %v1275 = vpack.c.b16 %v1273, %v1272
    %1276 = vrot.lane.b32.xlu0 %v556, 96
    %v1277 = vpop.permute.xlu0 %1276
    %v1280 = vsel %vm843, %v1274, 0
    %v1283 = vsel %vm843, %v1275, 0
    %1285 = vmatpush.bf16.msra.mxu0 0
    %1286 = vmatpush.bf16.msra.mxu0 0
    %1287 = vmatpush.bf16.msra.mxu0 0
    %1288 = vmatpush.bf16.msra.mxu0 0
    %1289 = vmatpush.bf16.msra.mxu0 0
    %1290 = vmatpush.bf16.msra.mxu0 0
    %1291 = vmatpush.bf16.msra.mxu0 0
    %1292 = vmatpush.bf16.msra.mxu0 %v1277
    %1293 = vmatmul.bf16.gmra.mxu0 %v1280
    %v1294 = vpop.f32.mrf.mxu0
    %v1295 = vadd.f32 0.0, %v1294
    %v1296 = vpop.f32.mrf.mxu0
    %v1297 = vadd.f32 0.0, %v1296
    %1298 = vmatmul.bf16.gmra.mxu0 %v1283
    %v1299 = vpop.f32.mrf.mxu0
    %v1300 = vadd.f32 0.0, %v1299
    %v1301 = vpop.f32.mrf.mxu0
    %v1302 = vadd.f32 0.0, %v1301
    %1303 = vdwg.mxu0
    %v1308 = vunpack.c.l.b16 %v1204
    %v1309 = vunpack.c.l.b16 %v1205
    %v1310 = vunpack.c.l.b16 %v1206
    %v1311 = vunpack.c.l.b16 %v1207
    %v1312 = vpack.c.b16 %v1309, %v1308
    %v1313 = vpack.c.b16 %v1311, %v1310
    %1314 = vrot.lane.b32.xlu0 %v599, 96
    %v1315 = vpop.permute.xlu0 %1314
    %v1318 = vsel %vm843, %v1312, 0
    %v1321 = vsel %vm843, %v1313, 0
    %1323 = vmatpush.bf16.msra.mxu0 0
    %1324 = vmatpush.bf16.msra.mxu0 0
    %1325 = vmatpush.bf16.msra.mxu0 0
    %1326 = vmatpush.bf16.msra.mxu0 0
    %1327 = vmatpush.bf16.msra.mxu0 0
    %1328 = vmatpush.bf16.msra.mxu0 0
    %1329 = vmatpush.bf16.msra.mxu0 0
    %1330 = vmatpush.bf16.msra.mxu0 %v1315
    %1331 = vmatmul.bf16.gmra.mxu0 %v1318
    %v1332 = vpop.f32.mrf.mxu0
    %v1333 = vadd.f32 0.0, %v1332
    %v1334 = vpop.f32.mrf.mxu0
    %v1335 = vadd.f32 0.0, %v1334
    %1336 = vmatmul.bf16.gmra.mxu0 %v1321
    %v1337 = vpop.f32.mrf.mxu0
    %v1338 = vadd.f32 0.0, %v1337
    %v1339 = vpop.f32.mrf.mxu0
    %v1340 = vadd.f32 0.0, %v1339
    %1341 = vdwg.mxu0
    %v1346 = vunpack.c.l.b16 %v1208
    %v1347 = vunpack.c.l.b16 %v1209
    %v1348 = vunpack.c.l.b16 %v1210
    %v1349 = vunpack.c.l.b16 %v1211
    %v1350 = vpack.c.b16 %v1347, %v1346
    %v1351 = vpack.c.b16 %v1349, %v1348
    %1352 = vrot.lane.b32.xlu0 %v642, 96
    %v1353 = vpop.permute.xlu0 %1352
    %v1356 = vsel %vm843, %v1350, 0
    %v1359 = vsel %vm843, %v1351, 0
    %1361 = vmatpush.bf16.msra.mxu0 0
    %1362 = vmatpush.bf16.msra.mxu0 0
    %1363 = vmatpush.bf16.msra.mxu0 0
    %1364 = vmatpush.bf16.msra.mxu0 0
    %1365 = vmatpush.bf16.msra.mxu0 0
    %1366 = vmatpush.bf16.msra.mxu0 0
    %1367 = vmatpush.bf16.msra.mxu0 0
    %1368 = vmatpush.bf16.msra.mxu0 %v1353
    %1369 = vmatmul.bf16.gmra.mxu0 %v1356
    %v1370 = vpop.f32.mrf.mxu0
    %v1371 = vadd.f32 0.0, %v1370
    %v1372 = vpop.f32.mrf.mxu0
    %v1373 = vadd.f32 0.0, %v1372
    %1374 = vmatmul.bf16.gmra.mxu0 %v1359
    %v1375 = vpop.f32.mrf.mxu0
    %v1376 = vadd.f32 0.0, %v1375
    %v1377 = vpop.f32.mrf.mxu0
    %v1378 = vadd.f32 0.0, %v1377
    %1379 = vdwg.mxu0
    %v1384 = vunpack.c.l.b16 %v1212
    %v1385 = vunpack.c.l.b16 %v1213
    %v1386 = vunpack.c.l.b16 %v1214
    %v1387 = vunpack.c.l.b16 %v1215
    %v1388 = vpack.c.b16 %v1385, %v1384
    %v1389 = vpack.c.b16 %v1387, %v1386
    %1390 = vrot.lane.b32.xlu0 %v685, 96
    %v1391 = vpop.permute.xlu0 %1390
    %v1394 = vsel %vm843, %v1388, 0
    %v1397 = vsel %vm843, %v1389, 0
    %1399 = vmatpush.bf16.msra.mxu0 0
    %1400 = vmatpush.bf16.msra.mxu0 0
    %1401 = vmatpush.bf16.msra.mxu0 0
    %1402 = vmatpush.bf16.msra.mxu0 0
    %1403 = vmatpush.bf16.msra.mxu0 0
    %1404 = vmatpush.bf16.msra.mxu0 0
    %1405 = vmatpush.bf16.msra.mxu0 0
    %1406 = vmatpush.bf16.msra.mxu0 %v1391
    %1407 = vmatmul.bf16.gmra.mxu0 %v1394
    %v1408 = vpop.f32.mrf.mxu0
    %v1409 = vadd.f32 0.0, %v1408
    %v1410 = vpop.f32.mrf.mxu0
    %v1411 = vadd.f32 0.0, %v1410
    %1412 = vmatmul.bf16.gmra.mxu0 %v1397
    %v1413 = vpop.f32.mrf.mxu0
    %v1414 = vadd.f32 0.0, %v1413
    %v1415 = vpop.f32.mrf.mxu0
    %v1416 = vadd.f32 0.0, %v1415
    %1417 = vdwg.mxu0
    %v1422 = vunpack.c.l.b16 %v1216
    %v1423 = vunpack.c.l.b16 %v1217
    %v1424 = vunpack.c.l.b16 %v1218
    %v1425 = vunpack.c.l.b16 %v1219
    %v1426 = vpack.c.b16 %v1423, %v1422
    %v1427 = vpack.c.b16 %v1425, %v1424
    %1428 = vrot.lane.b32.xlu0 %v728, 96
    %v1429 = vpop.permute.xlu0 %1428
    %v1432 = vsel %vm843, %v1426, 0
    %v1435 = vsel %vm843, %v1427, 0
    %1437 = vmatpush.bf16.msra.mxu0 0
    %1438 = vmatpush.bf16.msra.mxu0 0
    %1439 = vmatpush.bf16.msra.mxu0 0
    %1440 = vmatpush.bf16.msra.mxu0 0
    %1441 = vmatpush.bf16.msra.mxu0 0
    %1442 = vmatpush.bf16.msra.mxu0 0
    %1443 = vmatpush.bf16.msra.mxu0 0
    %1444 = vmatpush.bf16.msra.mxu0 %v1429
    %1445 = vmatmul.bf16.gmra.mxu0 %v1432
    %v1446 = vpop.f32.mrf.mxu0
    %v1447 = vadd.f32 0.0, %v1446
    %v1448 = vpop.f32.mrf.mxu0
    %v1449 = vadd.f32 0.0, %v1448
    %1450 = vmatmul.bf16.gmra.mxu0 %v1435
    %v1451 = vpop.f32.mrf.mxu0
    %v1452 = vadd.f32 0.0, %v1451
    %v1453 = vpop.f32.mrf.mxu0
    %v1454 = vadd.f32 0.0, %v1453
    %1455 = vdwg.mxu0
    %v1460 = vunpack.c.l.b16 %v1220
    %v1461 = vunpack.c.l.b16 %v1221
    %v1462 = vunpack.c.l.b16 %v1222
    %v1463 = vunpack.c.l.b16 %v1223
    %v1464 = vpack.c.b16 %v1461, %v1460
    %v1465 = vpack.c.b16 %v1463, %v1462
    %1466 = vrot.lane.b32.xlu0 %v771, 96
    %v1467 = vpop.permute.xlu0 %1466
    %v1470 = vsel %vm843, %v1464, 0
    %v1473 = vsel %vm843, %v1465, 0
    %1475 = vmatpush.bf16.msra.mxu0 0
    %1476 = vmatpush.bf16.msra.mxu0 0
    %1477 = vmatpush.bf16.msra.mxu0 0
    %1478 = vmatpush.bf16.msra.mxu0 0
    %1479 = vmatpush.bf16.msra.mxu0 0
    %1480 = vmatpush.bf16.msra.mxu0 0
    %1481 = vmatpush.bf16.msra.mxu0 0
    %1482 = vmatpush.bf16.msra.mxu0 %v1467
    %1483 = vmatmul.bf16.gmra.mxu0 %v1470
    %v1484 = vpop.f32.mrf.mxu0
    %v1485 = vadd.f32 0.0, %v1484
    %v1486 = vpop.f32.mrf.mxu0
    %v1487 = vadd.f32 0.0, %v1486
    %1488 = vmatmul.bf16.gmra.mxu0 %v1473
    %v1489 = vpop.f32.mrf.mxu0
    %v1490 = vadd.f32 0.0, %v1489
    %v1491 = vpop.f32.mrf.mxu0
    %v1492 = vadd.f32 0.0, %v1491
    %1493 = vdwg.mxu0
    %v1498 = vunpack.c.l.b16 %v1224
    %v1499 = vunpack.c.l.b16 %v1225
    %v1500 = vunpack.c.l.b16 %v1226
    %v1501 = vunpack.c.l.b16 %v1227
    %v1502 = vpack.c.b16 %v1499, %v1498
    %v1503 = vpack.c.b16 %v1501, %v1500
    %1504 = vrot.lane.b32.xlu0 %v814, 96
    %v1505 = vpop.permute.xlu0 %1504
    %v1508 = vsel %vm843, %v1502, 0
    %v1511 = vsel %vm843, %v1503, 0
    %1513 = vmatpush.bf16.msra.mxu0 0
    %1514 = vmatpush.bf16.msra.mxu0 0
    %1515 = vmatpush.bf16.msra.mxu0 0
    %1516 = vmatpush.bf16.msra.mxu0 0
    %1517 = vmatpush.bf16.msra.mxu0 0
    %1518 = vmatpush.bf16.msra.mxu0 0
    %1519 = vmatpush.bf16.msra.mxu0 0
    %1520 = vmatpush.bf16.msra.mxu0 %v1505
    %1521 = vmatmul.bf16.gmra.mxu0 %v1508
    %v1522 = vpop.f32.mrf.mxu0
    %v1523 = vadd.f32 0.0, %v1522
    %v1524 = vpop.f32.mrf.mxu0
    %v1525 = vadd.f32 0.0, %v1524
    %1526 = vmatmul.bf16.gmra.mxu0 %v1511
    %v1527 = vpop.f32.mrf.mxu0
    %v1528 = vadd.f32 0.0, %v1527
    %v1529 = vpop.f32.mrf.mxu0
    %v1530 = vadd.f32 0.0, %v1529
    %1531 = vdwg.mxu0
    %s1532 = scalar_lea.vmem %s4, 32
    %v1533 = vld [vmem:[%s1532] sm:$0xff]
    %v1534 = vld [vmem:[%s1532 + $0x8] sm:$0xff]
    %v1535 = vld [vmem:[%s1532 + $0x10] sm:$0xff]
    %v1536 = vld [vmem:[%s1532 + $0x18] sm:$0xff]
    %1537 = vrot.lane.b32.xlu0 %v506, 120
    %v1538 = vpop.permute.xlu0 %1537
    %1539 = vrot.lane.b32.xlu0 %v507, 120
    %v1540 = vpop.permute.xlu0 %1539
    %1541 = vrot.lane.b32.xlu0 %v512, 120
    %v1542 = vpop.permute.xlu0 %1541
    %v1544 = vsel %vm513, %v1538, 0
    %v1547 = vsel %vm513, %v1540, 0
    %v1550 = vsel %vm513, %v1542, 0
    %1552 = vmatpush.bf16.xpose.msra.mxu0 0
    %1553 = vmatpush.bf16.xpose.msra.mxu0 0
    %1554 = vmatpush.bf16.xpose.msra.mxu0 0
    %1555 = vmatpush.bf16.xpose.msra.mxu0 0
    %1556 = vmatpush.bf16.xpose.msra.mxu0 0
    %1557 = vmatpush.bf16.xpose.msra.mxu0 0
    %1558 = vmatpush.bf16.xpose.msra.mxu0 0
    %1559 = vmatpush.bf16.xpose.msra.mxu0 %v1550
    %1560 = vmatmul.bf16.gmra.mxu0 %v1544
    %v1561 = vpop.f32.mrf.mxu0
    %v1562 = vadd.f32 %v1533, %v1561
    %v1563 = vpop.f32.mrf.mxu0
    %v1564 = vadd.f32 %v1534, %v1563
    %1565 = vmatmul.bf16.gmra.mxu0 %v1547
    %v1566 = vpop.f32.mrf.mxu0
    %v1567 = vadd.f32 %v1535, %v1566
    %v1568 = vpop.f32.mrf.mxu0
    %v1569 = vadd.f32 %v1536, %v1568
    %1570 = vdwg.mxu0
    %1571 = vrot.lane.b32.xlu0 %v550, 120
    %v1572 = vpop.permute.xlu0 %1571
    %1573 = vrot.lane.b32.xlu0 %v551, 120
    %v1574 = vpop.permute.xlu0 %1573
    %1575 = vrot.lane.b32.xlu0 %v556, 120
    %v1576 = vpop.permute.xlu0 %1575
    %v1578 = vsel %vm513, %v1572, 0
    %v1581 = vsel %vm513, %v1574, 0
    %v1584 = vsel %vm513, %v1576, 0
    %1586 = vmatpush.bf16.xpose.msra.mxu0 0
    %1587 = vmatpush.bf16.xpose.msra.mxu0 0
    %1588 = vmatpush.bf16.xpose.msra.mxu0 0
    %1589 = vmatpush.bf16.xpose.msra.mxu0 0
    %1590 = vmatpush.bf16.xpose.msra.mxu0 0
    %1591 = vmatpush.bf16.xpose.msra.mxu0 0
    %1592 = vmatpush.bf16.xpose.msra.mxu0 0
    %1593 = vmatpush.bf16.xpose.msra.mxu0 %v1584
    %1594 = vmatmul.bf16.gmra.mxu0 %v1578
    %v1595 = vpop.f32.mrf.mxu0
    %v1596 = vadd.f32 %v1533, %v1595
    %v1597 = vpop.f32.mrf.mxu0
    %v1598 = vadd.f32 %v1534, %v1597
    %1599 = vmatmul.bf16.gmra.mxu0 %v1581
    %v1600 = vpop.f32.mrf.mxu0
    %v1601 = vadd.f32 %v1535, %v1600
    %v1602 = vpop.f32.mrf.mxu0
    %v1603 = vadd.f32 %v1536, %v1602
    %1604 = vdwg.mxu0
    %1605 = vrot.lane.b32.xlu0 %v593, 120
    %v1606 = vpop.permute.xlu0 %1605
    %1607 = vrot.lane.b32.xlu0 %v594, 120
    %v1608 = vpop.permute.xlu0 %1607
    %1609 = vrot.lane.b32.xlu0 %v599, 120
    %v1610 = vpop.permute.xlu0 %1609
    %v1612 = vsel %vm513, %v1606, 0
    %v1615 = vsel %vm513, %v1608, 0
    %v1618 = vsel %vm513, %v1610, 0
    %1620 = vmatpush.bf16.xpose.msra.mxu0 0
    %1621 = vmatpush.bf16.xpose.msra.mxu0 0
    %1622 = vmatpush.bf16.xpose.msra.mxu0 0
    %1623 = vmatpush.bf16.xpose.msra.mxu0 0
    %1624 = vmatpush.bf16.xpose.msra.mxu0 0
    %1625 = vmatpush.bf16.xpose.msra.mxu0 0
    %1626 = vmatpush.bf16.xpose.msra.mxu0 0
    %1627 = vmatpush.bf16.xpose.msra.mxu0 %v1618
    %1628 = vmatmul.bf16.gmra.mxu0 %v1612
    %v1629 = vpop.f32.mrf.mxu0
    %v1630 = vadd.f32 %v1533, %v1629
    %v1631 = vpop.f32.mrf.mxu0
    %v1632 = vadd.f32 %v1534, %v1631
    %1633 = vmatmul.bf16.gmra.mxu0 %v1615
    %v1634 = vpop.f32.mrf.mxu0
    %v1635 = vadd.f32 %v1535, %v1634
    %v1636 = vpop.f32.mrf.mxu0
    %v1637 = vadd.f32 %v1536, %v1636
    %1638 = vdwg.mxu0
    %1639 = vrot.lane.b32.xlu0 %v636, 120
    %v1640 = vpop.permute.xlu0 %1639
    %1641 = vrot.lane.b32.xlu0 %v637, 120
    %v1642 = vpop.permute.xlu0 %1641
    %1643 = vrot.lane.b32.xlu0 %v642, 120
    %v1644 = vpop.permute.xlu0 %1643
    %v1646 = vsel %vm513, %v1640, 0
    %v1649 = vsel %vm513, %v1642, 0
    %v1652 = vsel %vm513, %v1644, 0
    %1654 = vmatpush.bf16.xpose.msra.mxu0 0
    %1655 = vmatpush.bf16.xpose.msra.mxu0 0
    %1656 = vmatpush.bf16.xpose.msra.mxu0 0
    %1657 = vmatpush.bf16.xpose.msra.mxu0 0
    %1658 = vmatpush.bf16.xpose.msra.mxu0 0
    %1659 = vmatpush.bf16.xpose.msra.mxu0 0
    %1660 = vmatpush.bf16.xpose.msra.mxu0 0
    %1661 = vmatpush.bf16.xpose.msra.mxu0 %v1652
    %1662 = vmatmul.bf16.gmra.mxu0 %v1646
    %v1663 = vpop.f32.mrf.mxu0
    %v1664 = vadd.f32 %v1533, %v1663
    %v1665 = vpop.f32.mrf.mxu0
    %v1666 = vadd.f32 %v1534, %v1665
    %1667 = vmatmul.bf16.gmra.mxu0 %v1649
    %v1668 = vpop.f32.mrf.mxu0
    %v1669 = vadd.f32 %v1535, %v1668
    %v1670 = vpop.f32.mrf.mxu0
    %v1671 = vadd.f32 %v1536, %v1670
    %1672 = vdwg.mxu0
    %1673 = vrot.lane.b32.xlu0 %v679, 120
    %v1674 = vpop.permute.xlu0 %1673
    %1675 = vrot.lane.b32.xlu0 %v680, 120
    %v1676 = vpop.permute.xlu0 %1675
    %1677 = vrot.lane.b32.xlu0 %v685, 120
    %v1678 = vpop.permute.xlu0 %1677
    %v1680 = vsel %vm513, %v1674, 0
    %v1683 = vsel %vm513, %v1676, 0
    %v1686 = vsel %vm513, %v1678, 0
    %1688 = vmatpush.bf16.xpose.msra.mxu0 0
    %1689 = vmatpush.bf16.xpose.msra.mxu0 0
    %1690 = vmatpush.bf16.xpose.msra.mxu0 0
    %1691 = vmatpush.bf16.xpose.msra.mxu0 0
    %1692 = vmatpush.bf16.xpose.msra.mxu0 0
    %1693 = vmatpush.bf16.xpose.msra.mxu0 0
    %1694 = vmatpush.bf16.xpose.msra.mxu0 0
    %1695 = vmatpush.bf16.xpose.msra.mxu0 %v1686
    %1696 = vmatmul.bf16.gmra.mxu0 %v1680
    %v1697 = vpop.f32.mrf.mxu0
    %v1698 = vadd.f32 %v1533, %v1697
    %v1699 = vpop.f32.mrf.mxu0
    %v1700 = vadd.f32 %v1534, %v1699
    %1701 = vmatmul.bf16.gmra.mxu0 %v1683
    %v1702 = vpop.f32.mrf.mxu0
    %v1703 = vadd.f32 %v1535, %v1702
    %v1704 = vpop.f32.mrf.mxu0
    %v1705 = vadd.f32 %v1536, %v1704
    %1706 = vdwg.mxu0
    %1707 = vrot.lane.b32.xlu0 %v722, 120
    %v1708 = vpop.permute.xlu0 %1707
    %1709 = vrot.lane.b32.xlu0 %v723, 120
    %v1710 = vpop.permute.xlu0 %1709
    %1711 = vrot.lane.b32.xlu0 %v728, 120
    %v1712 = vpop.permute.xlu0 %1711
    %v1714 = vsel %vm513, %v1708, 0
    %v1717 = vsel %vm513, %v1710, 0
    %v1720 = vsel %vm513, %v1712, 0
    %1722 = vmatpush.bf16.xpose.msra.mxu0 0
    %1723 = vmatpush.bf16.xpose.msra.mxu0 0
    %1724 = vmatpush.bf16.xpose.msra.mxu0 0
    %1725 = vmatpush.bf16.xpose.msra.mxu0 0
    %1726 = vmatpush.bf16.xpose.msra.mxu0 0
    %1727 = vmatpush.bf16.xpose.msra.mxu0 0
    %1728 = vmatpush.bf16.xpose.msra.mxu0 0
    %1729 = vmatpush.bf16.xpose.msra.mxu0 %v1720
    %1730 = vmatmul.bf16.gmra.mxu0 %v1714
    %v1731 = vpop.f32.mrf.mxu0
    %v1732 = vadd.f32 %v1533, %v1731
    %v1733 = vpop.f32.mrf.mxu0
    %v1734 = vadd.f32 %v1534, %v1733
    %1735 = vmatmul.bf16.gmra.mxu0 %v1717
    %v1736 = vpop.f32.mrf.mxu0
    %v1737 = vadd.f32 %v1535, %v1736
    %v1738 = vpop.f32.mrf.mxu0
    %v1739 = vadd.f32 %v1536, %v1738
    %1740 = vdwg.mxu0
    %1741 = vrot.lane.b32.xlu0 %v765, 120
    %v1742 = vpop.permute.xlu0 %1741
    %1743 = vrot.lane.b32.xlu0 %v766, 120
    %v1744 = vpop.permute.xlu0 %1743
    %1745 = vrot.lane.b32.xlu0 %v771, 120
    %v1746 = vpop.permute.xlu0 %1745
    %v1748 = vsel %vm513, %v1742, 0
    %v1751 = vsel %vm513, %v1744, 0
    %v1754 = vsel %vm513, %v1746, 0
    %1756 = vmatpush.bf16.xpose.msra.mxu0 0
    %1757 = vmatpush.bf16.xpose.msra.mxu0 0
    %1758 = vmatpush.bf16.xpose.msra.mxu0 0
    %1759 = vmatpush.bf16.xpose.msra.mxu0 0
    %1760 = vmatpush.bf16.xpose.msra.mxu0 0
    %1761 = vmatpush.bf16.xpose.msra.mxu0 0
    %1762 = vmatpush.bf16.xpose.msra.mxu0 0
    %1763 = vmatpush.bf16.xpose.msra.mxu0 %v1754
    %1764 = vmatmul.bf16.gmra.mxu0 %v1748
    %v1765 = vpop.f32.mrf.mxu0
    %v1766 = vadd.f32 %v1533, %v1765
    %v1767 = vpop.f32.mrf.mxu0
    %v1768 = vadd.f32 %v1534, %v1767
    %1769 = vmatmul.bf16.gmra.mxu0 %v1751
    %v1770 = vpop.f32.mrf.mxu0
    %v1771 = vadd.f32 %v1535, %v1770
    %v1772 = vpop.f32.mrf.mxu0
    %v1773 = vadd.f32 %v1536, %v1772
    %1774 = vdwg.mxu0
    %1775 = vrot.lane.b32.xlu0 %v808, 120
    %v1776 = vpop.permute.xlu0 %1775
    %1777 = vrot.lane.b32.xlu0 %v809, 120
    %v1778 = vpop.permute.xlu0 %1777
    %1779 = vrot.lane.b32.xlu0 %v814, 120
    %v1780 = vpop.permute.xlu0 %1779
    %v1782 = vsel %vm513, %v1776, 0
    %v1785 = vsel %vm513, %v1778, 0
    %v1788 = vsel %vm513, %v1780, 0
    %1790 = vmatpush.bf16.xpose.msra.mxu0 0
    %1791 = vmatpush.bf16.xpose.msra.mxu0 0
    %1792 = vmatpush.bf16.xpose.msra.mxu0 0
    %1793 = vmatpush.bf16.xpose.msra.mxu0 0
    %1794 = vmatpush.bf16.xpose.msra.mxu0 0
    %1795 = vmatpush.bf16.xpose.msra.mxu0 0
    %1796 = vmatpush.bf16.xpose.msra.mxu0 0
    %1797 = vmatpush.bf16.xpose.msra.mxu0 %v1788
    %1798 = vmatmul.bf16.gmra.mxu0 %v1782
    %v1799 = vpop.f32.mrf.mxu0
    %v1800 = vadd.f32 %v1533, %v1799
    %v1801 = vpop.f32.mrf.mxu0
    %v1802 = vadd.f32 %v1534, %v1801
    %1803 = vmatmul.bf16.gmra.mxu0 %v1785
    %v1804 = vpop.f32.mrf.mxu0
    %v1805 = vadd.f32 %v1535, %v1804
    %v1806 = vpop.f32.mrf.mxu0
    %v1807 = vadd.f32 %v1536, %v1806
    %1808 = vdwg.mxu0
    %v1809 = vsel %vm843, %v1562, -inf
    %1810 = vmax.xlane.f32.xlu0 %v1809
    %v1811 = vpop.xlane.xlu0 %1810
    %v1812 = vsel %vm843, %v1564, -inf
    %1813 = vmax.xlane.f32.xlu0 %v1812
    %v1814 = vpop.xlane.xlu0 %1813
    %v1815 = vsel %vm843, %v1567, -inf
    %1816 = vmax.xlane.f32.xlu0 %v1815
    %v1817 = vpop.xlane.xlu0 %1816
    %v1818 = vsel %vm843, %v1569, -inf
    %1819 = vmax.xlane.f32.xlu0 %v1818
    %v1820 = vpop.xlane.xlu0 %1819
    %v1821 = vsel %vm843, %v1596, -inf
    %1822 = vmax.xlane.f32.xlu0 %v1821
    %v1823 = vpop.xlane.xlu0 %1822
    %v1824 = vsel %vm843, %v1598, -inf
    %1825 = vmax.xlane.f32.xlu0 %v1824
    %v1826 = vpop.xlane.xlu0 %1825
    %v1827 = vsel %vm843, %v1601, -inf
    %1828 = vmax.xlane.f32.xlu0 %v1827
    %v1829 = vpop.xlane.xlu0 %1828
    %v1830 = vsel %vm843, %v1603, -inf
    %1831 = vmax.xlane.f32.xlu0 %v1830
    %v1832 = vpop.xlane.xlu0 %1831
    %v1833 = vsel %vm843, %v1630, -inf
    %1834 = vmax.xlane.f32.xlu0 %v1833
    %v1835 = vpop.xlane.xlu0 %1834
    %v1836 = vsel %vm843, %v1632, -inf
    %1837 = vmax.xlane.f32.xlu0 %v1836
    %v1838 = vpop.xlane.xlu0 %1837
    %v1839 = vsel %vm843, %v1635, -inf
    %1840 = vmax.xlane.f32.xlu0 %v1839
    %v1841 = vpop.xlane.xlu0 %1840
    %v1842 = vsel %vm843, %v1637, -inf
    %1843 = vmax.xlane.f32.xlu0 %v1842
    %v1844 = vpop.xlane.xlu0 %1843
    %v1845 = vsel %vm843, %v1664, -inf
    %1846 = vmax.xlane.f32.xlu0 %v1845
    %v1847 = vpop.xlane.xlu0 %1846
    %v1848 = vsel %vm843, %v1666, -inf
    %1849 = vmax.xlane.f32.xlu0 %v1848
    %v1850 = vpop.xlane.xlu0 %1849
    %v1851 = vsel %vm843, %v1669, -inf
    %1852 = vmax.xlane.f32.xlu0 %v1851
    %v1853 = vpop.xlane.xlu0 %1852
    %v1854 = vsel %vm843, %v1671, -inf
    %1855 = vmax.xlane.f32.xlu0 %v1854
    %v1856 = vpop.xlane.xlu0 %1855
    %v1857 = vsel %vm843, %v1698, -inf
    %1858 = vmax.xlane.f32.xlu0 %v1857
    %v1859 = vpop.xlane.xlu0 %1858
    %v1860 = vsel %vm843, %v1700, -inf
    %1861 = vmax.xlane.f32.xlu0 %v1860
    %v1862 = vpop.xlane.xlu0 %1861
    %v1863 = vsel %vm843, %v1703, -inf
    %1864 = vmax.xlane.f32.xlu0 %v1863
    %v1865 = vpop.xlane.xlu0 %1864
    %v1866 = vsel %vm843, %v1705, -inf
    %1867 = vmax.xlane.f32.xlu0 %v1866
    %v1868 = vpop.xlane.xlu0 %1867
    %v1869 = vsel %vm843, %v1732, -inf
    %1870 = vmax.xlane.f32.xlu0 %v1869
    %v1871 = vpop.xlane.xlu0 %1870
    %v1872 = vsel %vm843, %v1734, -inf
    %1873 = vmax.xlane.f32.xlu0 %v1872
    %v1874 = vpop.xlane.xlu0 %1873
    %v1875 = vsel %vm843, %v1737, -inf
    %1876 = vmax.xlane.f32.xlu0 %v1875
    %v1877 = vpop.xlane.xlu0 %1876
    %v1878 = vsel %vm843, %v1739, -inf
    %1879 = vmax.xlane.f32.xlu0 %v1878
    %v1880 = vpop.xlane.xlu0 %1879
    %v1881 = vsel %vm843, %v1766, -inf
    %1882 = vmax.xlane.f32.xlu0 %v1881
    %v1883 = vpop.xlane.xlu0 %1882
    %v1884 = vsel %vm843, %v1768, -inf
    %1885 = vmax.xlane.f32.xlu0 %v1884
    %v1886 = vpop.xlane.xlu0 %1885
    %v1887 = vsel %vm843, %v1771, -inf
    %1888 = vmax.xlane.f32.xlu0 %v1887
    %v1889 = vpop.xlane.xlu0 %1888
    %v1890 = vsel %vm843, %v1773, -inf
    %1891 = vmax.xlane.f32.xlu0 %v1890
    %v1892 = vpop.xlane.xlu0 %1891
    %v1893 = vsel %vm843, %v1800, -inf
    %1894 = vmax.xlane.f32.xlu0 %v1893
    %v1895 = vpop.xlane.xlu0 %1894
    %v1896 = vsel %vm843, %v1802, -inf
    %1897 = vmax.xlane.f32.xlu0 %v1896
    %v1898 = vpop.xlane.xlu0 %1897
    %v1899 = vsel %vm843, %v1805, -inf
    %1900 = vmax.xlane.f32.xlu0 %v1899
    %v1901 = vpop.xlane.xlu0 %1900
    %v1902 = vsel %vm843, %v1807, -inf
    %1903 = vmax.xlane.f32.xlu0 %v1902
    %v1904 = vpop.xlane.xlu0 %1903
    %v1905 = vsub.f32 %v1562, %v1811
    %v1906 = vsub.f32 %v1564, %v1814
    %v1907 = vsub.f32 %v1567, %v1817
    %v1908 = vsub.f32 %v1569, %v1820
    %v1909 = vsub.f32 %v1596, %v1823
    %v1910 = vsub.f32 %v1598, %v1826
    %v1911 = vsub.f32 %v1601, %v1829
    %v1912 = vsub.f32 %v1603, %v1832
    %v1913 = vsub.f32 %v1630, %v1835
    %v1914 = vsub.f32 %v1632, %v1838
    %v1915 = vsub.f32 %v1635, %v1841
    %v1916 = vsub.f32 %v1637, %v1844
    %v1917 = vsub.f32 %v1664, %v1847
    %v1918 = vsub.f32 %v1666, %v1850
    %v1919 = vsub.f32 %v1669, %v1853
    %v1920 = vsub.f32 %v1671, %v1856
    %v1921 = vsub.f32 %v1698, %v1859
    %v1922 = vsub.f32 %v1700, %v1862
    %v1923 = vsub.f32 %v1703, %v1865
    %v1924 = vsub.f32 %v1705, %v1868
    %v1925 = vsub.f32 %v1732, %v1871
    %v1926 = vsub.f32 %v1734, %v1874
    %v1927 = vsub.f32 %v1737, %v1877
    %v1928 = vsub.f32 %v1739, %v1880
    %v1929 = vsub.f32 %v1766, %v1883
    %v1930 = vsub.f32 %v1768, %v1886
    %v1931 = vsub.f32 %v1771, %v1889
    %v1932 = vsub.f32 %v1773, %v1892
    %v1933 = vsub.f32 %v1800, %v1895
    %v1934 = vsub.f32 %v1802, %v1898
    %v1935 = vsub.f32 %v1805, %v1901
    %v1936 = vsub.f32 %v1807, %v1904
    %v1937 = vmul.f32 %v1905, 1.442695
    %v1938 = vpow.pop %v1937
    %v1939 = vmul.f32 %v1906, 1.442695
    %v1940 = vpow.pop %v1939
    %v1941 = vmul.f32 %v1907, 1.442695
    %v1942 = vpow.pop %v1941
    %v1943 = vmul.f32 %v1908, 1.442695
    %v1944 = vpow.pop %v1943
    %v1945 = vmul.f32 %v1909, 1.442695
    %v1946 = vpow.pop %v1945
    %v1947 = vmul.f32 %v1910, 1.442695
    %v1948 = vpow.pop %v1947
    %v1949 = vmul.f32 %v1911, 1.442695
    %v1950 = vpow.pop %v1949
    %v1951 = vmul.f32 %v1912, 1.442695
    %v1952 = vpow.pop %v1951
    %v1953 = vmul.f32 %v1913, 1.442695
    %v1954 = vpow.pop %v1953
    %v1955 = vmul.f32 %v1914, 1.442695
    %v1956 = vpow.pop %v1955
    %v1957 = vmul.f32 %v1915, 1.442695
    %v1958 = vpow.pop %v1957
    %v1959 = vmul.f32 %v1916, 1.442695
    %v1960 = vpow.pop %v1959
    %v1961 = vmul.f32 %v1917, 1.442695
    %v1962 = vpow.pop %v1961
    %v1963 = vmul.f32 %v1918, 1.442695
    %v1964 = vpow.pop %v1963
    %v1965 = vmul.f32 %v1919, 1.442695
    %v1966 = vpow.pop %v1965
    %v1967 = vmul.f32 %v1920, 1.442695
    %v1968 = vpow.pop %v1967
    %v1969 = vmul.f32 %v1921, 1.442695
    %v1970 = vpow.pop %v1969
    %v1971 = vmul.f32 %v1922, 1.442695
    %v1972 = vpow.pop %v1971
    %v1973 = vmul.f32 %v1923, 1.442695
    %v1974 = vpow.pop %v1973
    %v1975 = vmul.f32 %v1924, 1.442695
    %v1976 = vpow.pop %v1975
    %v1977 = vmul.f32 %v1925, 1.442695
    %v1978 = vpow.pop %v1977
    %v1979 = vmul.f32 %v1926, 1.442695
    %v1980 = vpow.pop %v1979
    %v1981 = vmul.f32 %v1927, 1.442695
    %v1982 = vpow.pop %v1981
    %v1983 = vmul.f32 %v1928, 1.442695
    %v1984 = vpow.pop %v1983
    %v1985 = vmul.f32 %v1929, 1.442695
    %v1986 = vpow.pop %v1985
    %v1987 = vmul.f32 %v1930, 1.442695
    %v1988 = vpow.pop %v1987
    %v1989 = vmul.f32 %v1931, 1.442695
    %v1990 = vpow.pop %v1989
    %v1991 = vmul.f32 %v1932, 1.442695
    %v1992 = vpow.pop %v1991
    %v1993 = vmul.f32 %v1933, 1.442695
    %v1994 = vpow.pop %v1993
    %v1995 = vmul.f32 %v1934, 1.442695
    %v1996 = vpow.pop %v1995
    %v1997 = vmul.f32 %v1935, 1.442695
    %v1998 = vpow.pop %v1997
    %v1999 = vmul.f32 %v1936, 1.442695
    %v2000 = vpow.pop %v1999
    %v2001 = vsel %vm843, %v1938, 0.0
    %2002 = vadd.xlane.f32.xlu0 %v2001
    %v2003 = vpop.xlane.xlu0 %2002
    %v2004 = vsel %vm843, %v1940, 0.0
    %2005 = vadd.xlane.f32.xlu0 %v2004
    %v2006 = vpop.xlane.xlu0 %2005
    %v2007 = vsel %vm843, %v1942, 0.0
    %2008 = vadd.xlane.f32.xlu0 %v2007
    %v2009 = vpop.xlane.xlu0 %2008
    %v2010 = vsel %vm843, %v1944, 0.0
    %2011 = vadd.xlane.f32.xlu0 %v2010
    %v2012 = vpop.xlane.xlu0 %2011
    %v2013 = vsel %vm843, %v1946, 0.0
    %2014 = vadd.xlane.f32.xlu0 %v2013
    %v2015 = vpop.xlane.xlu0 %2014
    %v2016 = vsel %vm843, %v1948, 0.0
    %2017 = vadd.xlane.f32.xlu0 %v2016
    %v2018 = vpop.xlane.xlu0 %2017
    %v2019 = vsel %vm843, %v1950, 0.0
    %2020 = vadd.xlane.f32.xlu0 %v2019
    %v2021 = vpop.xlane.xlu0 %2020
    %v2022 = vsel %vm843, %v1952, 0.0
    %2023 = vadd.xlane.f32.xlu0 %v2022
    %v2024 = vpop.xlane.xlu0 %2023
    %v2025 = vsel %vm843, %v1954, 0.0
    %2026 = vadd.xlane.f32.xlu0 %v2025
    %v2027 = vpop.xlane.xlu0 %2026
    %v2028 = vsel %vm843, %v1956, 0.0
    %2029 = vadd.xlane.f32.xlu0 %v2028
    %v2030 = vpop.xlane.xlu0 %2029
    %v2031 = vsel %vm843, %v1958, 0.0
    %2032 = vadd.xlane.f32.xlu0 %v2031
    %v2033 = vpop.xlane.xlu0 %2032
    %v2034 = vsel %vm843, %v1960, 0.0
    %2035 = vadd.xlane.f32.xlu0 %v2034
    %v2036 = vpop.xlane.xlu0 %2035
    %v2037 = vsel %vm843, %v1962, 0.0
    %2038 = vadd.xlane.f32.xlu0 %v2037
    %v2039 = vpop.xlane.xlu0 %2038
    %v2040 = vsel %vm843, %v1964, 0.0
    %2041 = vadd.xlane.f32.xlu0 %v2040
    %v2042 = vpop.xlane.xlu0 %2041
    %v2043 = vsel %vm843, %v1966, 0.0
    %2044 = vadd.xlane.f32.xlu0 %v2043
    %v2045 = vpop.xlane.xlu0 %2044
    %v2046 = vsel %vm843, %v1968, 0.0
    %2047 = vadd.xlane.f32.xlu0 %v2046
    %v2048 = vpop.xlane.xlu0 %2047
    %v2049 = vsel %vm843, %v1970, 0.0
    %2050 = vadd.xlane.f32.xlu0 %v2049
    %v2051 = vpop.xlane.xlu0 %2050
    %v2052 = vsel %vm843, %v1972, 0.0
    %2053 = vadd.xlane.f32.xlu0 %v2052
    %v2054 = vpop.xlane.xlu0 %2053
    %v2055 = vsel %vm843, %v1974, 0.0
    %2056 = vadd.xlane.f32.xlu0 %v2055
    %v2057 = vpop.xlane.xlu0 %2056
    %v2058 = vsel %vm843, %v1976, 0.0
    %2059 = vadd.xlane.f32.xlu0 %v2058
    %v2060 = vpop.xlane.xlu0 %2059
    %v2061 = vsel %vm843, %v1978, 0.0
    %2062 = vadd.xlane.f32.xlu0 %v2061
    %v2063 = vpop.xlane.xlu0 %2062
    %v2064 = vsel %vm843, %v1980, 0.0
    %2065 = vadd.xlane.f32.xlu0 %v2064
    %v2066 = vpop.xlane.xlu0 %2065
    %v2067 = vsel %vm843, %v1982, 0.0
    %2068 = vadd.xlane.f32.xlu0 %v2067
    %v2069 = vpop.xlane.xlu0 %2068
    %v2070 = vsel %vm843, %v1984, 0.0
    %2071 = vadd.xlane.f32.xlu0 %v2070
    %v2072 = vpop.xlane.xlu0 %2071
    %v2073 = vsel %vm843, %v1986, 0.0
    %2074 = vadd.xlane.f32.xlu0 %v2073
    %v2075 = vpop.xlane.xlu0 %2074
    %v2076 = vsel %vm843, %v1988, 0.0
    %2077 = vadd.xlane.f32.xlu0 %v2076
    %v2078 = vpop.xlane.xlu0 %2077
    %v2079 = vsel %vm843, %v1990, 0.0
    %2080 = vadd.xlane.f32.xlu0 %v2079
    %v2081 = vpop.xlane.xlu0 %2080
    %v2082 = vsel %vm843, %v1992, 0.0
    %2083 = vadd.xlane.f32.xlu0 %v2082
    %v2084 = vpop.xlane.xlu0 %2083
    %v2085 = vsel %vm843, %v1994, 0.0
    %2086 = vadd.xlane.f32.xlu0 %v2085
    %v2087 = vpop.xlane.xlu0 %2086
    %v2088 = vsel %vm843, %v1996, 0.0
    %2089 = vadd.xlane.f32.xlu0 %v2088
    %v2090 = vpop.xlane.xlu0 %2089
    %v2091 = vsel %vm843, %v1998, 0.0
    %2092 = vadd.xlane.f32.xlu0 %v2091
    %v2093 = vpop.xlane.xlu0 %2092
    %v2094 = vsel %vm843, %v2000, 0.0
    %2095 = vadd.xlane.f32.xlu0 %v2094
    %v2096 = vpop.xlane.xlu0 %2095
    %v2097 = vrcp.pop %v2003
    %v2098 = vrcp.pop %v2006
    %v2099 = vrcp.pop %v2009
    %v2100 = vrcp.pop %v2012
    %v2101 = vrcp.pop %v2015
    %v2102 = vrcp.pop %v2018
    %v2103 = vrcp.pop %v2021
    %v2104 = vrcp.pop %v2024
    %v2105 = vrcp.pop %v2027
    %v2106 = vrcp.pop %v2030
    %v2107 = vrcp.pop %v2033
    %v2108 = vrcp.pop %v2036
    %v2109 = vrcp.pop %v2039
    %v2110 = vrcp.pop %v2042
    %v2111 = vrcp.pop %v2045
    %v2112 = vrcp.pop %v2048
    %v2113 = vrcp.pop %v2051
    %v2114 = vrcp.pop %v2054
    %v2115 = vrcp.pop %v2057
    %v2116 = vrcp.pop %v2060
    %v2117 = vrcp.pop %v2063
    %v2118 = vrcp.pop %v2066
    %v2119 = vrcp.pop %v2069
    %v2120 = vrcp.pop %v2072
    %v2121 = vrcp.pop %v2075
    %v2122 = vrcp.pop %v2078
    %v2123 = vrcp.pop %v2081
    %v2124 = vrcp.pop %v2084
    %v2125 = vrcp.pop %v2087
    %v2126 = vrcp.pop %v2090
    %v2127 = vrcp.pop %v2093
    %v2128 = vrcp.pop %v2096
    %v2129 = vmul.f32 %v1938, %v2097
    %v2130 = vmul.f32 %v1940, %v2098
    %v2131 = vmul.f32 %v1942, %v2099
    %v2132 = vmul.f32 %v1944, %v2100
    %v2133 = vmul.f32 %v1946, %v2101
    %v2134 = vmul.f32 %v1948, %v2102
    %v2135 = vmul.f32 %v1950, %v2103
    %v2136 = vmul.f32 %v1952, %v2104
    %v2137 = vmul.f32 %v1954, %v2105
    %v2138 = vmul.f32 %v1956, %v2106
    %v2139 = vmul.f32 %v1958, %v2107
    %v2140 = vmul.f32 %v1960, %v2108
    %v2141 = vmul.f32 %v1962, %v2109
    %v2142 = vmul.f32 %v1964, %v2110
    %v2143 = vmul.f32 %v1966, %v2111
    %v2144 = vmul.f32 %v1968, %v2112
    %v2145 = vmul.f32 %v1970, %v2113
    %v2146 = vmul.f32 %v1972, %v2114
    %v2147 = vmul.f32 %v1974, %v2115
    %v2148 = vmul.f32 %v1976, %v2116
    %v2149 = vmul.f32 %v1978, %v2117
    %v2150 = vmul.f32 %v1980, %v2118
    %v2151 = vmul.f32 %v1982, %v2119
    %v2152 = vmul.f32 %v1984, %v2120
    %v2153 = vmul.f32 %v1986, %v2121
    %v2154 = vmul.f32 %v1988, %v2122
    %v2155 = vmul.f32 %v1990, %v2123
    %v2156 = vmul.f32 %v1992, %v2124
    %v2157 = vmul.f32 %v1994, %v2125
    %v2158 = vmul.f32 %v1996, %v2126
    %v2159 = vmul.f32 %v1998, %v2127
    %v2160 = vmul.f32 %v2000, %v2128
    %v2161 = vpack.c.bf16 %v2129, %v2129
    %v2162 = vpack.c.bf16 %v2130, %v2130
    %v2163 = vpack.c.bf16 %v2131, %v2131
    %v2164 = vpack.c.bf16 %v2132, %v2132
    %v2165 = vpack.c.bf16 %v2133, %v2133
    %v2166 = vpack.c.bf16 %v2134, %v2134
    %v2167 = vpack.c.bf16 %v2135, %v2135
    %v2168 = vpack.c.bf16 %v2136, %v2136
    %v2169 = vpack.c.bf16 %v2137, %v2137
    %v2170 = vpack.c.bf16 %v2138, %v2138
    %v2171 = vpack.c.bf16 %v2139, %v2139
    %v2172 = vpack.c.bf16 %v2140, %v2140
    %v2173 = vpack.c.bf16 %v2141, %v2141
    %v2174 = vpack.c.bf16 %v2142, %v2142
    %v2175 = vpack.c.bf16 %v2143, %v2143
    %v2176 = vpack.c.bf16 %v2144, %v2144
    %v2177 = vpack.c.bf16 %v2145, %v2145
    %v2178 = vpack.c.bf16 %v2146, %v2146
    %v2179 = vpack.c.bf16 %v2147, %v2147
    %v2180 = vpack.c.bf16 %v2148, %v2148
    %v2181 = vpack.c.bf16 %v2149, %v2149
    %v2182 = vpack.c.bf16 %v2150, %v2150
    %v2183 = vpack.c.bf16 %v2151, %v2151
    %v2184 = vpack.c.bf16 %v2152, %v2152
    %v2185 = vpack.c.bf16 %v2153, %v2153
    %v2186 = vpack.c.bf16 %v2154, %v2154
    %v2187 = vpack.c.bf16 %v2155, %v2155
    %v2188 = vpack.c.bf16 %v2156, %v2156
    %v2189 = vpack.c.bf16 %v2157, %v2157
    %v2190 = vpack.c.bf16 %v2158, %v2158
    %v2191 = vpack.c.bf16 %v2159, %v2159
    %v2192 = vpack.c.bf16 %v2160, %v2160
    %v2197 = vunpack.c.l.b16 %v2161
    %v2198 = vunpack.c.l.b16 %v2162
    %v2199 = vunpack.c.l.b16 %v2163
    %v2200 = vunpack.c.l.b16 %v2164
    %v2201 = vpack.c.b16 %v2198, %v2197
    %v2202 = vpack.c.b16 %v2200, %v2199
    %2203 = vrot.lane.b32.xlu0 %v512, 88
    %v2204 = vpop.permute.xlu0 %2203
    %v2207 = vsel %vm843, %v2201, 0
    %v2210 = vsel %vm843, %v2202, 0
    %2212 = vmatpush.bf16.msra.mxu0 0
    %2213 = vmatpush.bf16.msra.mxu0 0
    %2214 = vmatpush.bf16.msra.mxu0 0
    %2215 = vmatpush.bf16.msra.mxu0 0
    %2216 = vmatpush.bf16.msra.mxu0 0
    %2217 = vmatpush.bf16.msra.mxu0 0
    %2218 = vmatpush.bf16.msra.mxu0 0
    %2219 = vmatpush.bf16.msra.mxu0 %v2204
    %2220 = vmatmul.bf16.gmra.mxu0 %v2207
    %v2221 = vpop.f32.mrf.mxu0
    %v2222 = vadd.f32 0.0, %v2221
    %v2223 = vpop.f32.mrf.mxu0
    %v2224 = vadd.f32 0.0, %v2223
    %2225 = vmatmul.bf16.gmra.mxu0 %v2210
    %v2226 = vpop.f32.mrf.mxu0
    %v2227 = vadd.f32 0.0, %v2226
    %v2228 = vpop.f32.mrf.mxu0
    %v2229 = vadd.f32 0.0, %v2228
    %2230 = vdwg.mxu0
    %v2235 = vunpack.c.l.b16 %v2165
    %v2236 = vunpack.c.l.b16 %v2166
    %v2237 = vunpack.c.l.b16 %v2167
    %v2238 = vunpack.c.l.b16 %v2168
    %v2239 = vpack.c.b16 %v2236, %v2235
    %v2240 = vpack.c.b16 %v2238, %v2237
    %2241 = vrot.lane.b32.xlu0 %v556, 88
    %v2242 = vpop.permute.xlu0 %2241
    %v2245 = vsel %vm843, %v2239, 0
    %v2248 = vsel %vm843, %v2240, 0
    %2250 = vmatpush.bf16.msra.mxu0 0
    %2251 = vmatpush.bf16.msra.mxu0 0
    %2252 = vmatpush.bf16.msra.mxu0 0
    %2253 = vmatpush.bf16.msra.mxu0 0
    %2254 = vmatpush.bf16.msra.mxu0 0
    %2255 = vmatpush.bf16.msra.mxu0 0
    %2256 = vmatpush.bf16.msra.mxu0 0
    %2257 = vmatpush.bf16.msra.mxu0 %v2242
    %2258 = vmatmul.bf16.gmra.mxu0 %v2245
    %v2259 = vpop.f32.mrf.mxu0
    %v2260 = vadd.f32 0.0, %v2259
    %v2261 = vpop.f32.mrf.mxu0
    %v2262 = vadd.f32 0.0, %v2261
    %2263 = vmatmul.bf16.gmra.mxu0 %v2248
    %v2264 = vpop.f32.mrf.mxu0
    %v2265 = vadd.f32 0.0, %v2264
    %v2266 = vpop.f32.mrf.mxu0
    %v2267 = vadd.f32 0.0, %v2266
    %2268 = vdwg.mxu0
    %v2273 = vunpack.c.l.b16 %v2169
    %v2274 = vunpack.c.l.b16 %v2170
    %v2275 = vunpack.c.l.b16 %v2171
    %v2276 = vunpack.c.l.b16 %v2172
    %v2277 = vpack.c.b16 %v2274, %v2273
    %v2278 = vpack.c.b16 %v2276, %v2275
    %2279 = vrot.lane.b32.xlu0 %v599, 88
    %v2280 = vpop.permute.xlu0 %2279
    %v2283 = vsel %vm843, %v2277, 0
    %v2286 = vsel %vm843, %v2278, 0
    %2288 = vmatpush.bf16.msra.mxu0 0
    %2289 = vmatpush.bf16.msra.mxu0 0
    %2290 = vmatpush.bf16.msra.mxu0 0
    %2291 = vmatpush.bf16.msra.mxu0 0
    %2292 = vmatpush.bf16.msra.mxu0 0
    %2293 = vmatpush.bf16.msra.mxu0 0
    %2294 = vmatpush.bf16.msra.mxu0 0
    %2295 = vmatpush.bf16.msra.mxu0 %v2280
    %2296 = vmatmul.bf16.gmra.mxu0 %v2283
    %v2297 = vpop.f32.mrf.mxu0
    %v2298 = vadd.f32 0.0, %v2297
    %v2299 = vpop.f32.mrf.mxu0
    %v2300 = vadd.f32 0.0, %v2299
    %2301 = vmatmul.bf16.gmra.mxu0 %v2286
    %v2302 = vpop.f32.mrf.mxu0
    %v2303 = vadd.f32 0.0, %v2302
    %v2304 = vpop.f32.mrf.mxu0
    %v2305 = vadd.f32 0.0, %v2304
    %2306 = vdwg.mxu0
    %v2311 = vunpack.c.l.b16 %v2173
    %v2312 = vunpack.c.l.b16 %v2174
    %v2313 = vunpack.c.l.b16 %v2175
    %v2314 = vunpack.c.l.b16 %v2176
    %v2315 = vpack.c.b16 %v2312, %v2311
    %v2316 = vpack.c.b16 %v2314, %v2313
    %2317 = vrot.lane.b32.xlu0 %v642, 88
    %v2318 = vpop.permute.xlu0 %2317
    %v2321 = vsel %vm843, %v2315, 0
    %v2324 = vsel %vm843, %v2316, 0
    %2326 = vmatpush.bf16.msra.mxu0 0
    %2327 = vmatpush.bf16.msra.mxu0 0
    %2328 = vmatpush.bf16.msra.mxu0 0
    %2329 = vmatpush.bf16.msra.mxu0 0
    %2330 = vmatpush.bf16.msra.mxu0 0
    %2331 = vmatpush.bf16.msra.mxu0 0
    %2332 = vmatpush.bf16.msra.mxu0 0
    %2333 = vmatpush.bf16.msra.mxu0 %v2318
    %2334 = vmatmul.bf16.gmra.mxu0 %v2321
    %v2335 = vpop.f32.mrf.mxu0
    %v2336 = vadd.f32 0.0, %v2335
    %v2337 = vpop.f32.mrf.mxu0
    %v2338 = vadd.f32 0.0, %v2337
    %2339 = vmatmul.bf16.gmra.mxu0 %v2324
    %v2340 = vpop.f32.mrf.mxu0
    %v2341 = vadd.f32 0.0, %v2340
    %v2342 = vpop.f32.mrf.mxu0
    %v2343 = vadd.f32 0.0, %v2342
    %2344 = vdwg.mxu0
    %v2349 = vunpack.c.l.b16 %v2177
    %v2350 = vunpack.c.l.b16 %v2178
    %v2351 = vunpack.c.l.b16 %v2179
    %v2352 = vunpack.c.l.b16 %v2180
    %v2353 = vpack.c.b16 %v2350, %v2349
    %v2354 = vpack.c.b16 %v2352, %v2351
    %2355 = vrot.lane.b32.xlu0 %v685, 88
    %v2356 = vpop.permute.xlu0 %2355
    %v2359 = vsel %vm843, %v2353, 0
    %v2362 = vsel %vm843, %v2354, 0
    %2364 = vmatpush.bf16.msra.mxu0 0
    %2365 = vmatpush.bf16.msra.mxu0 0
    %2366 = vmatpush.bf16.msra.mxu0 0
    %2367 = vmatpush.bf16.msra.mxu0 0
    %2368 = vmatpush.bf16.msra.mxu0 0
    %2369 = vmatpush.bf16.msra.mxu0 0
    %2370 = vmatpush.bf16.msra.mxu0 0
    %2371 = vmatpush.bf16.msra.mxu0 %v2356
    %2372 = vmatmul.bf16.gmra.mxu0 %v2359
    %v2373 = vpop.f32.mrf.mxu0
    %v2374 = vadd.f32 0.0, %v2373
    %v2375 = vpop.f32.mrf.mxu0
    %v2376 = vadd.f32 0.0, %v2375
    %2377 = vmatmul.bf16.gmra.mxu0 %v2362
    %v2378 = vpop.f32.mrf.mxu0
    %v2379 = vadd.f32 0.0, %v2378
    %v2380 = vpop.f32.mrf.mxu0
    %v2381 = vadd.f32 0.0, %v2380
    %2382 = vdwg.mxu0
    %v2387 = vunpack.c.l.b16 %v2181
    %v2388 = vunpack.c.l.b16 %v2182
    %v2389 = vunpack.c.l.b16 %v2183
    %v2390 = vunpack.c.l.b16 %v2184
    %v2391 = vpack.c.b16 %v2388, %v2387
    %v2392 = vpack.c.b16 %v2390, %v2389
    %2393 = vrot.lane.b32.xlu0 %v728, 88
    %v2394 = vpop.permute.xlu0 %2393
    %v2397 = vsel %vm843, %v2391, 0
    %v2400 = vsel %vm843, %v2392, 0
    %2402 = vmatpush.bf16.msra.mxu0 0
    %2403 = vmatpush.bf16.msra.mxu0 0
    %2404 = vmatpush.bf16.msra.mxu0 0
    %2405 = vmatpush.bf16.msra.mxu0 0
    %2406 = vmatpush.bf16.msra.mxu0 0
    %2407 = vmatpush.bf16.msra.mxu0 0
    %2408 = vmatpush.bf16.msra.mxu0 0
    %2409 = vmatpush.bf16.msra.mxu0 %v2394
    %2410 = vmatmul.bf16.gmra.mxu0 %v2397
    %v2411 = vpop.f32.mrf.mxu0
    %v2412 = vadd.f32 0.0, %v2411
    %v2413 = vpop.f32.mrf.mxu0
    %v2414 = vadd.f32 0.0, %v2413
    %2415 = vmatmul.bf16.gmra.mxu0 %v2400
    %v2416 = vpop.f32.mrf.mxu0
    %v2417 = vadd.f32 0.0, %v2416
    %v2418 = vpop.f32.mrf.mxu0
    %v2419 = vadd.f32 0.0, %v2418
    %2420 = vdwg.mxu0
    %v2425 = vunpack.c.l.b16 %v2185
    %v2426 = vunpack.c.l.b16 %v2186
    %v2427 = vunpack.c.l.b16 %v2187
    %v2428 = vunpack.c.l.b16 %v2188
    %v2429 = vpack.c.b16 %v2426, %v2425
    %v2430 = vpack.c.b16 %v2428, %v2427
    %2431 = vrot.lane.b32.xlu0 %v771, 88
    %v2432 = vpop.permute.xlu0 %2431
    %v2435 = vsel %vm843, %v2429, 0
    %v2438 = vsel %vm843, %v2430, 0
    %2440 = vmatpush.bf16.msra.mxu0 0
    %2441 = vmatpush.bf16.msra.mxu0 0
    %2442 = vmatpush.bf16.msra.mxu0 0
    %2443 = vmatpush.bf16.msra.mxu0 0
    %2444 = vmatpush.bf16.msra.mxu0 0
    %2445 = vmatpush.bf16.msra.mxu0 0
    %2446 = vmatpush.bf16.msra.mxu0 0
    %2447 = vmatpush.bf16.msra.mxu0 %v2432
    %2448 = vmatmul.bf16.gmra.mxu0 %v2435
    %v2449 = vpop.f32.mrf.mxu0
    %v2450 = vadd.f32 0.0, %v2449
    %v2451 = vpop.f32.mrf.mxu0
    %v2452 = vadd.f32 0.0, %v2451
    %2453 = vmatmul.bf16.gmra.mxu0 %v2438
    %v2454 = vpop.f32.mrf.mxu0
    %v2455 = vadd.f32 0.0, %v2454
    %v2456 = vpop.f32.mrf.mxu0
    %v2457 = vadd.f32 0.0, %v2456
    %2458 = vdwg.mxu0
    %v2463 = vunpack.c.l.b16 %v2189
    %v2464 = vunpack.c.l.b16 %v2190
    %v2465 = vunpack.c.l.b16 %v2191
    %v2466 = vunpack.c.l.b16 %v2192
    %v2467 = vpack.c.b16 %v2464, %v2463
    %v2468 = vpack.c.b16 %v2466, %v2465
    %2469 = vrot.lane.b32.xlu0 %v814, 88
    %v2470 = vpop.permute.xlu0 %2469
    %v2473 = vsel %vm843, %v2467, 0
    %v2476 = vsel %vm843, %v2468, 0
    %2478 = vmatpush.bf16.msra.mxu0 0
    %2479 = vmatpush.bf16.msra.mxu0 0
    %2480 = vmatpush.bf16.msra.mxu0 0
    %2481 = vmatpush.bf16.msra.mxu0 0
    %2482 = vmatpush.bf16.msra.mxu0 0
    %2483 = vmatpush.bf16.msra.mxu0 0
    %2484 = vmatpush.bf16.msra.mxu0 0
    %2485 = vmatpush.bf16.msra.mxu0 %v2470
    %2486 = vmatmul.bf16.gmra.mxu0 %v2473
    %v2487 = vpop.f32.mrf.mxu0
    %v2488 = vadd.f32 0.0, %v2487
    %v2489 = vpop.f32.mrf.mxu0
    %v2490 = vadd.f32 0.0, %v2489
    %2491 = vmatmul.bf16.gmra.mxu0 %v2476
    %v2492 = vpop.f32.mrf.mxu0
    %v2493 = vadd.f32 0.0, %v2492
    %v2494 = vpop.f32.mrf.mxu0
    %v2495 = vadd.f32 0.0, %v2494
    %2496 = vdwg.mxu0
    %s2497 = scalar_lea.vmem %s4, 64
    %v2498 = vld [vmem:[%s2497] sm:$0xff]
    %v2499 = vld [vmem:[%s2497 + $0x8] sm:$0xff]
    %v2500 = vld [vmem:[%s2497 + $0x10] sm:$0xff]
    %v2501 = vld [vmem:[%s2497 + $0x18] sm:$0xff]
    %2502 = vrot.lane.b32.xlu0 %v506, 112
    %v2503 = vpop.permute.xlu0 %2502
    %2504 = vrot.lane.b32.xlu0 %v507, 112
    %v2505 = vpop.permute.xlu0 %2504
    %2506 = vrot.lane.b32.xlu0 %v512, 112
    %v2507 = vpop.permute.xlu0 %2506
    %v2509 = vsel %vm513, %v2503, 0
    %v2512 = vsel %vm513, %v2505, 0
    %v2515 = vsel %vm513, %v2507, 0
    %2517 = vmatpush.bf16.xpose.msra.mxu0 0
    %2518 = vmatpush.bf16.xpose.msra.mxu0 0
    %2519 = vmatpush.bf16.xpose.msra.mxu0 0
    %2520 = vmatpush.bf16.xpose.msra.mxu0 0
    %2521 = vmatpush.bf16.xpose.msra.mxu0 0
    %2522 = vmatpush.bf16.xpose.msra.mxu0 0
    %2523 = vmatpush.bf16.xpose.msra.mxu0 0
    %2524 = vmatpush.bf16.xpose.msra.mxu0 %v2515
    %2525 = vmatmul.bf16.gmra.mxu0 %v2509
    %v2526 = vpop.f32.mrf.mxu0
    %v2527 = vadd.f32 %v2498, %v2526
    %v2528 = vpop.f32.mrf.mxu0
    %v2529 = vadd.f32 %v2499, %v2528
    %2530 = vmatmul.bf16.gmra.mxu0 %v2512
    %v2531 = vpop.f32.mrf.mxu0
    %v2532 = vadd.f32 %v2500, %v2531
    %v2533 = vpop.f32.mrf.mxu0
    %v2534 = vadd.f32 %v2501, %v2533
    %2535 = vdwg.mxu0
    %2536 = vrot.lane.b32.xlu0 %v550, 112
    %v2537 = vpop.permute.xlu0 %2536
    %2538 = vrot.lane.b32.xlu0 %v551, 112
    %v2539 = vpop.permute.xlu0 %2538
    %2540 = vrot.lane.b32.xlu0 %v556, 112
    %v2541 = vpop.permute.xlu0 %2540
    %v2543 = vsel %vm513, %v2537, 0
    %v2546 = vsel %vm513, %v2539, 0
    %v2549 = vsel %vm513, %v2541, 0
    %2551 = vmatpush.bf16.xpose.msra.mxu0 0
    %2552 = vmatpush.bf16.xpose.msra.mxu0 0
    %2553 = vmatpush.bf16.xpose.msra.mxu0 0
    %2554 = vmatpush.bf16.xpose.msra.mxu0 0
    %2555 = vmatpush.bf16.xpose.msra.mxu0 0
    %2556 = vmatpush.bf16.xpose.msra.mxu0 0
    %2557 = vmatpush.bf16.xpose.msra.mxu0 0
    %2558 = vmatpush.bf16.xpose.msra.mxu0 %v2549
    %2559 = vmatmul.bf16.gmra.mxu0 %v2543
    %v2560 = vpop.f32.mrf.mxu0
    %v2561 = vadd.f32 %v2498, %v2560
    %v2562 = vpop.f32.mrf.mxu0
    %v2563 = vadd.f32 %v2499, %v2562
    %2564 = vmatmul.bf16.gmra.mxu0 %v2546
    %v2565 = vpop.f32.mrf.mxu0
    %v2566 = vadd.f32 %v2500, %v2565
    %v2567 = vpop.f32.mrf.mxu0
    %v2568 = vadd.f32 %v2501, %v2567
    %2569 = vdwg.mxu0
    %2570 = vrot.lane.b32.xlu0 %v593, 112
    %v2571 = vpop.permute.xlu0 %2570
    %2572 = vrot.lane.b32.xlu0 %v594, 112
    %v2573 = vpop.permute.xlu0 %2572
    %2574 = vrot.lane.b32.xlu0 %v599, 112
    %v2575 = vpop.permute.xlu0 %2574
    %v2577 = vsel %vm513, %v2571, 0
    %v2580 = vsel %vm513, %v2573, 0
    %v2583 = vsel %vm513, %v2575, 0
    %2585 = vmatpush.bf16.xpose.msra.mxu0 0
    %2586 = vmatpush.bf16.xpose.msra.mxu0 0
    %2587 = vmatpush.bf16.xpose.msra.mxu0 0
    %2588 = vmatpush.bf16.xpose.msra.mxu0 0
    %2589 = vmatpush.bf16.xpose.msra.mxu0 0
    %2590 = vmatpush.bf16.xpose.msra.mxu0 0
    %2591 = vmatpush.bf16.xpose.msra.mxu0 0
    %2592 = vmatpush.bf16.xpose.msra.mxu0 %v2583
    %2593 = vmatmul.bf16.gmra.mxu0 %v2577
    %v2594 = vpop.f32.mrf.mxu0
    %v2595 = vadd.f32 %v2498, %v2594
    %v2596 = vpop.f32.mrf.mxu0
    %v2597 = vadd.f32 %v2499, %v2596
    %2598 = vmatmul.bf16.gmra.mxu0 %v2580
    %v2599 = vpop.f32.mrf.mxu0
    %v2600 = vadd.f32 %v2500, %v2599
    %v2601 = vpop.f32.mrf.mxu0
    %v2602 = vadd.f32 %v2501, %v2601
    %2603 = vdwg.mxu0
    %2604 = vrot.lane.b32.xlu0 %v636, 112
    %v2605 = vpop.permute.xlu0 %2604
    %2606 = vrot.lane.b32.xlu0 %v637, 112
    %v2607 = vpop.permute.xlu0 %2606
    %2608 = vrot.lane.b32.xlu0 %v642, 112
    %v2609 = vpop.permute.xlu0 %2608
    %v2611 = vsel %vm513, %v2605, 0
    %v2614 = vsel %vm513, %v2607, 0
    %v2617 = vsel %vm513, %v2609, 0
    %2619 = vmatpush.bf16.xpose.msra.mxu0 0
    %2620 = vmatpush.bf16.xpose.msra.mxu0 0
    %2621 = vmatpush.bf16.xpose.msra.mxu0 0
    %2622 = vmatpush.bf16.xpose.msra.mxu0 0
    %2623 = vmatpush.bf16.xpose.msra.mxu0 0
    %2624 = vmatpush.bf16.xpose.msra.mxu0 0
    %2625 = vmatpush.bf16.xpose.msra.mxu0 0
    %2626 = vmatpush.bf16.xpose.msra.mxu0 %v2617
    %2627 = vmatmul.bf16.gmra.mxu0 %v2611
    %v2628 = vpop.f32.mrf.mxu0
    %v2629 = vadd.f32 %v2498, %v2628
    %v2630 = vpop.f32.mrf.mxu0
    %v2631 = vadd.f32 %v2499, %v2630
    %2632 = vmatmul.bf16.gmra.mxu0 %v2614
    %v2633 = vpop.f32.mrf.mxu0
    %v2634 = vadd.f32 %v2500, %v2633
    %v2635 = vpop.f32.mrf.mxu0
    %v2636 = vadd.f32 %v2501, %v2635
    %2637 = vdwg.mxu0
    %2638 = vrot.lane.b32.xlu0 %v679, 112
    %v2639 = vpop.permute.xlu0 %2638
    %2640 = vrot.lane.b32.xlu0 %v680, 112
    %v2641 = vpop.permute.xlu0 %2640
    %2642 = vrot.lane.b32.xlu0 %v685, 112
    %v2643 = vpop.permute.xlu0 %2642
    %v2645 = vsel %vm513, %v2639, 0
    %v2648 = vsel %vm513, %v2641, 0
    %v2651 = vsel %vm513, %v2643, 0
    %2653 = vmatpush.bf16.xpose.msra.mxu0 0
    %2654 = vmatpush.bf16.xpose.msra.mxu0 0
    %2655 = vmatpush.bf16.xpose.msra.mxu0 0
    %2656 = vmatpush.bf16.xpose.msra.mxu0 0
    %2657 = vmatpush.bf16.xpose.msra.mxu0 0
    %2658 = vmatpush.bf16.xpose.msra.mxu0 0
    %2659 = vmatpush.bf16.xpose.msra.mxu0 0
    %2660 = vmatpush.bf16.xpose.msra.mxu0 %v2651
    %2661 = vmatmul.bf16.gmra.mxu0 %v2645
    %v2662 = vpop.f32.mrf.mxu0
    %v2663 = vadd.f32 %v2498, %v2662
    %v2664 = vpop.f32.mrf.mxu0
    %v2665 = vadd.f32 %v2499, %v2664
    %2666 = vmatmul.bf16.gmra.mxu0 %v2648
    %v2667 = vpop.f32.mrf.mxu0
    %v2668 = vadd.f32 %v2500, %v2667
    %v2669 = vpop.f32.mrf.mxu0
    %v2670 = vadd.f32 %v2501, %v2669
    %2671 = vdwg.mxu0
    %2672 = vrot.lane.b32.xlu0 %v722, 112
    %v2673 = vpop.permute.xlu0 %2672
    %2674 = vrot.lane.b32.xlu0 %v723, 112
    %v2675 = vpop.permute.xlu0 %2674
    %2676 = vrot.lane.b32.xlu0 %v728, 112
    %v2677 = vpop.permute.xlu0 %2676
    %v2679 = vsel %vm513, %v2673, 0
    %v2682 = vsel %vm513, %v2675, 0
    %v2685 = vsel %vm513, %v2677, 0
    %2687 = vmatpush.bf16.xpose.msra.mxu0 0
    %2688 = vmatpush.bf16.xpose.msra.mxu0 0
    %2689 = vmatpush.bf16.xpose.msra.mxu0 0
    %2690 = vmatpush.bf16.xpose.msra.mxu0 0
    %2691 = vmatpush.bf16.xpose.msra.mxu0 0
    %2692 = vmatpush.bf16.xpose.msra.mxu0 0
    %2693 = vmatpush.bf16.xpose.msra.mxu0 0
    %2694 = vmatpush.bf16.xpose.msra.mxu0 %v2685
    %2695 = vmatmul.bf16.gmra.mxu0 %v2679
    %v2696 = vpop.f32.mrf.mxu0
    %v2697 = vadd.f32 %v2498, %v2696
    %v2698 = vpop.f32.mrf.mxu0
    %v2699 = vadd.f32 %v2499, %v2698
    %2700 = vmatmul.bf16.gmra.mxu0 %v2682
    %v2701 = vpop.f32.mrf.mxu0
    %v2702 = vadd.f32 %v2500, %v2701
    %v2703 = vpop.f32.mrf.mxu0
    %v2704 = vadd.f32 %v2501, %v2703
    %2705 = vdwg.mxu0
    %2706 = vrot.lane.b32.xlu0 %v765, 112
    %v2707 = vpop.permute.xlu0 %2706
    %2708 = vrot.lane.b32.xlu0 %v766, 112
    %v2709 = vpop.permute.xlu0 %2708
    %2710 = vrot.lane.b32.xlu0 %v771, 112
    %v2711 = vpop.permute.xlu0 %2710
    %v2713 = vsel %vm513, %v2707, 0
    %v2716 = vsel %vm513, %v2709, 0
    %v2719 = vsel %vm513, %v2711, 0
    %2721 = vmatpush.bf16.xpose.msra.mxu0 0
    %2722 = vmatpush.bf16.xpose.msra.mxu0 0
    %2723 = vmatpush.bf16.xpose.msra.mxu0 0
    %2724 = vmatpush.bf16.xpose.msra.mxu0 0
    %2725 = vmatpush.bf16.xpose.msra.mxu0 0
    %2726 = vmatpush.bf16.xpose.msra.mxu0 0
    %2727 = vmatpush.bf16.xpose.msra.mxu0 0
    %2728 = vmatpush.bf16.xpose.msra.mxu0 %v2719
    %2729 = vmatmul.bf16.gmra.mxu0 %v2713
    %v2730 = vpop.f32.mrf.mxu0
    %v2731 = vadd.f32 %v2498, %v2730
    %v2732 = vpop.f32.mrf.mxu0
    %v2733 = vadd.f32 %v2499, %v2732
    %2734 = vmatmul.bf16.gmra.mxu0 %v2716
    %v2735 = vpop.f32.mrf.mxu0
    %v2736 = vadd.f32 %v2500, %v2735
    %v2737 = vpop.f32.mrf.mxu0
    %v2738 = vadd.f32 %v2501, %v2737
    %2739 = vdwg.mxu0
    %2740 = vrot.lane.b32.xlu0 %v808, 112
    %v2741 = vpop.permute.xlu0 %2740
    %2742 = vrot.lane.b32.xlu0 %v809, 112
    %v2743 = vpop.permute.xlu0 %2742
    %2744 = vrot.lane.b32.xlu0 %v814, 112
    %v2745 = vpop.permute.xlu0 %2744
    %v2747 = vsel %vm513, %v2741, 0
    %v2750 = vsel %vm513, %v2743, 0
    %v2753 = vsel %vm513, %v2745, 0
    %2755 = vmatpush.bf16.xpose.msra.mxu0 0
    %2756 = vmatpush.bf16.xpose.msra.mxu0 0
    %2757 = vmatpush.bf16.xpose.msra.mxu0 0
    %2758 = vmatpush.bf16.xpose.msra.mxu0 0
    %2759 = vmatpush.bf16.xpose.msra.mxu0 0
    %2760 = vmatpush.bf16.xpose.msra.mxu0 0
    %2761 = vmatpush.bf16.xpose.msra.mxu0 0
    %2762 = vmatpush.bf16.xpose.msra.mxu0 %v2753
    %2763 = vmatmul.bf16.gmra.mxu0 %v2747
    %v2764 = vpop.f32.mrf.mxu0
    %v2765 = vadd.f32 %v2498, %v2764
    %v2766 = vpop.f32.mrf.mxu0
    %v2767 = vadd.f32 %v2499, %v2766
    %2768 = vmatmul.bf16.gmra.mxu0 %v2750
    %v2769 = vpop.f32.mrf.mxu0
    %v2770 = vadd.f32 %v2500, %v2769
    %v2771 = vpop.f32.mrf.mxu0
    %v2772 = vadd.f32 %v2501, %v2771
    %2773 = vdwg.mxu0
    %v2774 = vsel %vm843, %v2527, -inf
    %2775 = vmax.xlane.f32.xlu0 %v2774
    %v2776 = vpop.xlane.xlu0 %2775
    %v2777 = vsel %vm843, %v2529, -inf
    %2778 = vmax.xlane.f32.xlu0 %v2777
    %v2779 = vpop.xlane.xlu0 %2778
    %v2780 = vsel %vm843, %v2532, -inf
    %2781 = vmax.xlane.f32.xlu0 %v2780
    %v2782 = vpop.xlane.xlu0 %2781
    %v2783 = vsel %vm843, %v2534, -inf
    %2784 = vmax.xlane.f32.xlu0 %v2783
    %v2785 = vpop.xlane.xlu0 %2784
    %v2786 = vsel %vm843, %v2561, -inf
    %2787 = vmax.xlane.f32.xlu0 %v2786
    %v2788 = vpop.xlane.xlu0 %2787
    %v2789 = vsel %vm843, %v2563, -inf
    %2790 = vmax.xlane.f32.xlu0 %v2789
    %v2791 = vpop.xlane.xlu0 %2790
    %v2792 = vsel %vm843, %v2566, -inf
    %2793 = vmax.xlane.f32.xlu0 %v2792
    %v2794 = vpop.xlane.xlu0 %2793
    %v2795 = vsel %vm843, %v2568, -inf
    %2796 = vmax.xlane.f32.xlu0 %v2795
    %v2797 = vpop.xlane.xlu0 %2796
    %v2798 = vsel %vm843, %v2595, -inf
    %2799 = vmax.xlane.f32.xlu0 %v2798
    %v2800 = vpop.xlane.xlu0 %2799
    %v2801 = vsel %vm843, %v2597, -inf
    %2802 = vmax.xlane.f32.xlu0 %v2801
    %v2803 = vpop.xlane.xlu0 %2802
    %v2804 = vsel %vm843, %v2600, -inf
    %2805 = vmax.xlane.f32.xlu0 %v2804
    %v2806 = vpop.xlane.xlu0 %2805
    %v2807 = vsel %vm843, %v2602, -inf
    %2808 = vmax.xlane.f32.xlu0 %v2807
    %v2809 = vpop.xlane.xlu0 %2808
    %v2810 = vsel %vm843, %v2629, -inf
    %2811 = vmax.xlane.f32.xlu0 %v2810
    %v2812 = vpop.xlane.xlu0 %2811
    %v2813 = vsel %vm843, %v2631, -inf
    %2814 = vmax.xlane.f32.xlu0 %v2813
    %v2815 = vpop.xlane.xlu0 %2814
    %v2816 = vsel %vm843, %v2634, -inf
    %2817 = vmax.xlane.f32.xlu0 %v2816
    %v2818 = vpop.xlane.xlu0 %2817
    %v2819 = vsel %vm843, %v2636, -inf
    %2820 = vmax.xlane.f32.xlu0 %v2819
    %v2821 = vpop.xlane.xlu0 %2820
    %v2822 = vsel %vm843, %v2663, -inf
    %2823 = vmax.xlane.f32.xlu0 %v2822
    %v2824 = vpop.xlane.xlu0 %2823
    %v2825 = vsel %vm843, %v2665, -inf
    %2826 = vmax.xlane.f32.xlu0 %v2825
    %v2827 = vpop.xlane.xlu0 %2826
    %v2828 = vsel %vm843, %v2668, -inf
    %2829 = vmax.xlane.f32.xlu0 %v2828
    %v2830 = vpop.xlane.xlu0 %2829
    %v2831 = vsel %vm843, %v2670, -inf
    %2832 = vmax.xlane.f32.xlu0 %v2831
    %v2833 = vpop.xlane.xlu0 %2832
    %v2834 = vsel %vm843, %v2697, -inf
    %2835 = vmax.xlane.f32.xlu0 %v2834
    %v2836 = vpop.xlane.xlu0 %2835
    %v2837 = vsel %vm843, %v2699, -inf
    %2838 = vmax.xlane.f32.xlu0 %v2837
    %v2839 = vpop.xlane.xlu0 %2838
    %v2840 = vsel %vm843, %v2702, -inf
    %2841 = vmax.xlane.f32.xlu0 %v2840
    %v2842 = vpop.xlane.xlu0 %2841
    %v2843 = vsel %vm843, %v2704, -inf
    %2844 = vmax.xlane.f32.xlu0 %v2843
    %v2845 = vpop.xlane.xlu0 %2844
    %v2846 = vsel %vm843, %v2731, -inf
    %2847 = vmax.xlane.f32.xlu0 %v2846
    %v2848 = vpop.xlane.xlu0 %2847
    %v2849 = vsel %vm843, %v2733, -inf
    %2850 = vmax.xlane.f32.xlu0 %v2849
    %v2851 = vpop.xlane.xlu0 %2850
    %v2852 = vsel %vm843, %v2736, -inf
    %2853 = vmax.xlane.f32.xlu0 %v2852
    %v2854 = vpop.xlane.xlu0 %2853
    %v2855 = vsel %vm843, %v2738, -inf
    %2856 = vmax.xlane.f32.xlu0 %v2855
    %v2857 = vpop.xlane.xlu0 %2856
    %v2858 = vsel %vm843, %v2765, -inf
    %2859 = vmax.xlane.f32.xlu0 %v2858
    %v2860 = vpop.xlane.xlu0 %2859
    %v2861 = vsel %vm843, %v2767, -inf
    %2862 = vmax.xlane.f32.xlu0 %v2861
    %v2863 = vpop.xlane.xlu0 %2862
    %v2864 = vsel %vm843, %v2770, -inf
    %2865 = vmax.xlane.f32.xlu0 %v2864
    %v2866 = vpop.xlane.xlu0 %2865
    %v2867 = vsel %vm843, %v2772, -inf
    %2868 = vmax.xlane.f32.xlu0 %v2867
    %v2869 = vpop.xlane.xlu0 %2868
    %v2870 = vsub.f32 %v2527, %v2776
    %v2871 = vsub.f32 %v2529, %v2779
    %v2872 = vsub.f32 %v2532, %v2782
    %v2873 = vsub.f32 %v2534, %v2785
    %v2874 = vsub.f32 %v2561, %v2788
    %v2875 = vsub.f32 %v2563, %v2791
    %v2876 = vsub.f32 %v2566, %v2794
    %v2877 = vsub.f32 %v2568, %v2797
    %v2878 = vsub.f32 %v2595, %v2800
    %v2879 = vsub.f32 %v2597, %v2803
    %v2880 = vsub.f32 %v2600, %v2806
    %v2881 = vsub.f32 %v2602, %v2809
    %v2882 = vsub.f32 %v2629, %v2812
    %v2883 = vsub.f32 %v2631, %v2815
    %v2884 = vsub.f32 %v2634, %v2818
    %v2885 = vsub.f32 %v2636, %v2821
    %v2886 = vsub.f32 %v2663, %v2824
    %v2887 = vsub.f32 %v2665, %v2827
    %v2888 = vsub.f32 %v2668, %v2830
    %v2889 = vsub.f32 %v2670, %v2833
    %v2890 = vsub.f32 %v2697, %v2836
    %v2891 = vsub.f32 %v2699, %v2839
    %v2892 = vsub.f32 %v2702, %v2842
    %v2893 = vsub.f32 %v2704, %v2845
    %v2894 = vsub.f32 %v2731, %v2848
    %v2895 = vsub.f32 %v2733, %v2851
    %v2896 = vsub.f32 %v2736, %v2854
    %v2897 = vsub.f32 %v2738, %v2857
    %v2898 = vsub.f32 %v2765, %v2860
    %v2899 = vsub.f32 %v2767, %v2863
    %v2900 = vsub.f32 %v2770, %v2866
    %v2901 = vsub.f32 %v2772, %v2869
    %v2902 = vmul.f32 %v2870, 1.442695
    %v2903 = vpow.pop %v2902
    %v2904 = vmul.f32 %v2871, 1.442695
    %v2905 = vpow.pop %v2904
    %v2906 = vmul.f32 %v2872, 1.442695
    %v2907 = vpow.pop %v2906
    %v2908 = vmul.f32 %v2873, 1.442695
    %v2909 = vpow.pop %v2908
    %v2910 = vmul.f32 %v2874, 1.442695
    %v2911 = vpow.pop %v2910
    %v2912 = vmul.f32 %v2875, 1.442695
    %v2913 = vpow.pop %v2912
    %v2914 = vmul.f32 %v2876, 1.442695
    %v2915 = vpow.pop %v2914
    %v2916 = vmul.f32 %v2877, 1.442695
    %v2917 = vpow.pop %v2916
    %v2918 = vmul.f32 %v2878, 1.442695
    %v2919 = vpow.pop %v2918
    %v2920 = vmul.f32 %v2879, 1.442695
    %v2921 = vpow.pop %v2920
    %v2922 = vmul.f32 %v2880, 1.442695
    %v2923 = vpow.pop %v2922
    %v2924 = vmul.f32 %v2881, 1.442695
    %v2925 = vpow.pop %v2924
    %v2926 = vmul.f32 %v2882, 1.442695
    %v2927 = vpow.pop %v2926
    %v2928 = vmul.f32 %v2883, 1.442695
    %v2929 = vpow.pop %v2928
    %v2930 = vmul.f32 %v2884, 1.442695
    %v2931 = vpow.pop %v2930
    %v2932 = vmul.f32 %v2885, 1.442695
    %v2933 = vpow.pop %v2932
    %v2934 = vmul.f32 %v2886, 1.442695
    %v2935 = vpow.pop %v2934
    %v2936 = vmul.f32 %v2887, 1.442695
    %v2937 = vpow.pop %v2936
    %v2938 = vmul.f32 %v2888, 1.442695
    %v2939 = vpow.pop %v2938
    %v2940 = vmul.f32 %v2889, 1.442695
    %v2941 = vpow.pop %v2940
    %v2942 = vmul.f32 %v2890, 1.442695
    %v2943 = vpow.pop %v2942
    %v2944 = vmul.f32 %v2891, 1.442695
    %v2945 = vpow.pop %v2944
    %v2946 = vmul.f32 %v2892, 1.442695
    %v2947 = vpow.pop %v2946
    %v2948 = vmul.f32 %v2893, 1.442695
    %v2949 = vpow.pop %v2948
    %v2950 = vmul.f32 %v2894, 1.442695
    %v2951 = vpow.pop %v2950
    %v2952 = vmul.f32 %v2895, 1.442695
    %v2953 = vpow.pop %v2952
    %v2954 = vmul.f32 %v2896, 1.442695
    %v2955 = vpow.pop %v2954
    %v2956 = vmul.f32 %v2897, 1.442695
    %v2957 = vpow.pop %v2956
    %v2958 = vmul.f32 %v2898, 1.442695
    %v2959 = vpow.pop %v2958
    %v2960 = vmul.f32 %v2899, 1.442695
    %v2961 = vpow.pop %v2960
    %v2962 = vmul.f32 %v2900, 1.442695
    %v2963 = vpow.pop %v2962
    %v2964 = vmul.f32 %v2901, 1.442695
    %v2965 = vpow.pop %v2964
    %v2966 = vsel %vm843, %v2903, 0.0
    %2967 = vadd.xlane.f32.xlu0 %v2966
    %v2968 = vpop.xlane.xlu0 %2967
    %v2969 = vsel %vm843, %v2905, 0.0
    %2970 = vadd.xlane.f32.xlu0 %v2969
    %v2971 = vpop.xlane.xlu0 %2970
    %v2972 = vsel %vm843, %v2907, 0.0
    %2973 = vadd.xlane.f32.xlu0 %v2972
    %v2974 = vpop.xlane.xlu0 %2973
    %v2975 = vsel %vm843, %v2909, 0.0
    %2976 = vadd.xlane.f32.xlu0 %v2975
    %v2977 = vpop.xlane.xlu0 %2976
    %v2978 = vsel %vm843, %v2911, 0.0
    %2979 = vadd.xlane.f32.xlu0 %v2978
    %v2980 = vpop.xlane.xlu0 %2979
    %v2981 = vsel %vm843, %v2913, 0.0
    %2982 = vadd.xlane.f32.xlu0 %v2981
    %v2983 = vpop.xlane.xlu0 %2982
    %v2984 = vsel %vm843, %v2915, 0.0
    %2985 = vadd.xlane.f32.xlu0 %v2984
    %v2986 = vpop.xlane.xlu0 %2985
    %v2987 = vsel %vm843, %v2917, 0.0
    %2988 = vadd.xlane.f32.xlu0 %v2987
    %v2989 = vpop.xlane.xlu0 %2988
    %v2990 = vsel %vm843, %v2919, 0.0
    %2991 = vadd.xlane.f32.xlu0 %v2990
    %v2992 = vpop.xlane.xlu0 %2991
    %v2993 = vsel %vm843, %v2921, 0.0
    %2994 = vadd.xlane.f32.xlu0 %v2993
    %v2995 = vpop.xlane.xlu0 %2994
    %v2996 = vsel %vm843, %v2923, 0.0
    %2997 = vadd.xlane.f32.xlu0 %v2996
    %v2998 = vpop.xlane.xlu0 %2997
    %v2999 = vsel %vm843, %v2925, 0.0
    %3000 = vadd.xlane.f32.xlu0 %v2999
    %v3001 = vpop.xlane.xlu0 %3000
    %v3002 = vsel %vm843, %v2927, 0.0
    %3003 = vadd.xlane.f32.xlu0 %v3002
    %v3004 = vpop.xlane.xlu0 %3003
    %v3005 = vsel %vm843, %v2929, 0.0
    %3006 = vadd.xlane.f32.xlu0 %v3005
    %v3007 = vpop.xlane.xlu0 %3006
    %v3008 = vsel %vm843, %v2931, 0.0
    %3009 = vadd.xlane.f32.xlu0 %v3008
    %v3010 = vpop.xlane.xlu0 %3009
    %v3011 = vsel %vm843, %v2933, 0.0
    %3012 = vadd.xlane.f32.xlu0 %v3011
    %v3013 = vpop.xlane.xlu0 %3012
    %v3014 = vsel %vm843, %v2935, 0.0
    %3015 = vadd.xlane.f32.xlu0 %v3014
    %v3016 = vpop.xlane.xlu0 %3015
    %v3017 = vsel %vm843, %v2937, 0.0
    %3018 = vadd.xlane.f32.xlu0 %v3017
    %v3019 = vpop.xlane.xlu0 %3018
    %v3020 = vsel %vm843, %v2939, 0.0
    %3021 = vadd.xlane.f32.xlu0 %v3020
    %v3022 = vpop.xlane.xlu0 %3021
    %v3023 = vsel %vm843, %v2941, 0.0
    %3024 = vadd.xlane.f32.xlu0 %v3023
    %v3025 = vpop.xlane.xlu0 %3024
    %v3026 = vsel %vm843, %v2943, 0.0
    %3027 = vadd.xlane.f32.xlu0 %v3026
    %v3028 = vpop.xlane.xlu0 %3027
    %v3029 = vsel %vm843, %v2945, 0.0
    %3030 = vadd.xlane.f32.xlu0 %v3029
    %v3031 = vpop.xlane.xlu0 %3030
    %v3032 = vsel %vm843, %v2947, 0.0
    %3033 = vadd.xlane.f32.xlu0 %v3032
    %v3034 = vpop.xlane.xlu0 %3033
    %v3035 = vsel %vm843, %v2949, 0.0
    %3036 = vadd.xlane.f32.xlu0 %v3035
    %v3037 = vpop.xlane.xlu0 %3036
    %v3038 = vsel %vm843, %v2951, 0.0
    %3039 = vadd.xlane.f32.xlu0 %v3038
    %v3040 = vpop.xlane.xlu0 %3039
    %v3041 = vsel %vm843, %v2953, 0.0
    %3042 = vadd.xlane.f32.xlu0 %v3041
    %v3043 = vpop.xlane.xlu0 %3042
    %v3044 = vsel %vm843, %v2955, 0.0
    %3045 = vadd.xlane.f32.xlu0 %v3044
    %v3046 = vpop.xlane.xlu0 %3045
    %v3047 = vsel %vm843, %v2957, 0.0
    %3048 = vadd.xlane.f32.xlu0 %v3047
    %v3049 = vpop.xlane.xlu0 %3048
    %v3050 = vsel %vm843, %v2959, 0.0
    %3051 = vadd.xlane.f32.xlu0 %v3050
    %v3052 = vpop.xlane.xlu0 %3051
    %v3053 = vsel %vm843, %v2961, 0.0
    %3054 = vadd.xlane.f32.xlu0 %v3053
    %v3055 = vpop.xlane.xlu0 %3054
    %v3056 = vsel %vm843, %v2963, 0.0
    %3057 = vadd.xlane.f32.xlu0 %v3056
    %v3058 = vpop.xlane.xlu0 %3057
    %v3059 = vsel %vm843, %v2965, 0.0
    %3060 = vadd.xlane.f32.xlu0 %v3059
    %v3061 = vpop.xlane.xlu0 %3060
    %v3062 = vrcp.pop %v2968
    %v3063 = vrcp.pop %v2971
    %v3064 = vrcp.pop %v2974
    %v3065 = vrcp.pop %v2977
    %v3066 = vrcp.pop %v2980
    %v3067 = vrcp.pop %v2983
    %v3068 = vrcp.pop %v2986
    %v3069 = vrcp.pop %v2989
    %v3070 = vrcp.pop %v2992
    %v3071 = vrcp.pop %v2995
    %v3072 = vrcp.pop %v2998
    %v3073 = vrcp.pop %v3001
    %v3074 = vrcp.pop %v3004
    %v3075 = vrcp.pop %v3007
    %v3076 = vrcp.pop %v3010
    %v3077 = vrcp.pop %v3013
    %v3078 = vrcp.pop %v3016
    %v3079 = vrcp.pop %v3019
    %v3080 = vrcp.pop %v3022
    %v3081 = vrcp.pop %v3025
    %v3082 = vrcp.pop %v3028
    %v3083 = vrcp.pop %v3031
    %v3084 = vrcp.pop %v3034
    %v3085 = vrcp.pop %v3037
    %v3086 = vrcp.pop %v3040
    %v3087 = vrcp.pop %v3043
    %v3088 = vrcp.pop %v3046
    %v3089 = vrcp.pop %v3049
    %v3090 = vrcp.pop %v3052
    %v3091 = vrcp.pop %v3055
    %v3092 = vrcp.pop %v3058
    %v3093 = vrcp.pop %v3061
    %v3094 = vmul.f32 %v2903, %v3062
    %v3095 = vmul.f32 %v2905, %v3063
    %v3096 = vmul.f32 %v2907, %v3064
    %v3097 = vmul.f32 %v2909, %v3065
    %v3098 = vmul.f32 %v2911, %v3066
    %v3099 = vmul.f32 %v2913, %v3067
    %v3100 = vmul.f32 %v2915, %v3068
    %v3101 = vmul.f32 %v2917, %v3069
    %v3102 = vmul.f32 %v2919, %v3070
    %v3103 = vmul.f32 %v2921, %v3071
    %v3104 = vmul.f32 %v2923, %v3072
    %v3105 = vmul.f32 %v2925, %v3073
    %v3106 = vmul.f32 %v2927, %v3074
    %v3107 = vmul.f32 %v2929, %v3075
    %v3108 = vmul.f32 %v2931, %v3076
    %v3109 = vmul.f32 %v2933, %v3077
    %v3110 = vmul.f32 %v2935, %v3078
    %v3111 = vmul.f32 %v2937, %v3079
    %v3112 = vmul.f32 %v2939, %v3080
    %v3113 = vmul.f32 %v2941, %v3081
    %v3114 = vmul.f32 %v2943, %v3082
    %v3115 = vmul.f32 %v2945, %v3083
    %v3116 = vmul.f32 %v2947, %v3084
    %v3117 = vmul.f32 %v2949, %v3085
    %v3118 = vmul.f32 %v2951, %v3086
    %v3119 = vmul.f32 %v2953, %v3087
    %v3120 = vmul.f32 %v2955, %v3088
    %v3121 = vmul.f32 %v2957, %v3089
    %v3122 = vmul.f32 %v2959, %v3090
    %v3123 = vmul.f32 %v2961, %v3091
    %v3124 = vmul.f32 %v2963, %v3092
    %v3125 = vmul.f32 %v2965, %v3093
    %v3126 = vpack.c.bf16 %v3094, %v3094
    %v3127 = vpack.c.bf16 %v3095, %v3095
    %v3128 = vpack.c.bf16 %v3096, %v3096
    %v3129 = vpack.c.bf16 %v3097, %v3097
    %v3130 = vpack.c.bf16 %v3098, %v3098
    %v3131 = vpack.c.bf16 %v3099, %v3099
    %v3132 = vpack.c.bf16 %v3100, %v3100
    %v3133 = vpack.c.bf16 %v3101, %v3101
    %v3134 = vpack.c.bf16 %v3102, %v3102
    %v3135 = vpack.c.bf16 %v3103, %v3103
    %v3136 = vpack.c.bf16 %v3104, %v3104
    %v3137 = vpack.c.bf16 %v3105, %v3105
    %v3138 = vpack.c.bf16 %v3106, %v3106
    %v3139 = vpack.c.bf16 %v3107, %v3107
    %v3140 = vpack.c.bf16 %v3108, %v3108
    %v3141 = vpack.c.bf16 %v3109, %v3109
    %v3142 = vpack.c.bf16 %v3110, %v3110
    %v3143 = vpack.c.bf16 %v3111, %v3111
    %v3144 = vpack.c.bf16 %v3112, %v3112
    %v3145 = vpack.c.bf16 %v3113, %v3113
    %v3146 = vpack.c.bf16 %v3114, %v3114
    %v3147 = vpack.c.bf16 %v3115, %v3115
    %v3148 = vpack.c.bf16 %v3116, %v3116
    %v3149 = vpack.c.bf16 %v3117, %v3117
    %v3150 = vpack.c.bf16 %v3118, %v3118
    %v3151 = vpack.c.bf16 %v3119, %v3119
    %v3152 = vpack.c.bf16 %v3120, %v3120
    %v3153 = vpack.c.bf16 %v3121, %v3121
    %v3154 = vpack.c.bf16 %v3122, %v3122
    %v3155 = vpack.c.bf16 %v3123, %v3123
    %v3156 = vpack.c.bf16 %v3124, %v3124
    %v3157 = vpack.c.bf16 %v3125, %v3125
    %v3162 = vunpack.c.l.b16 %v3126
    %v3163 = vunpack.c.l.b16 %v3127
    %v3164 = vunpack.c.l.b16 %v3128
    %v3165 = vunpack.c.l.b16 %v3129
    %v3166 = vpack.c.b16 %v3163, %v3162
    %v3167 = vpack.c.b16 %v3165, %v3164
    %3168 = vrot.lane.b32.xlu0 %v512, 80
    %v3169 = vpop.permute.xlu0 %3168
    %v3172 = vsel %vm843, %v3166, 0
    %v3175 = vsel %vm843, %v3167, 0
    %3177 = vmatpush.bf16.msra.mxu0 0
    %3178 = vmatpush.bf16.msra.mxu0 0
    %3179 = vmatpush.bf16.msra.mxu0 0
    %3180 = vmatpush.bf16.msra.mxu0 0
    %3181 = vmatpush.bf16.msra.mxu0 0
    %3182 = vmatpush.bf16.msra.mxu0 0
    %3183 = vmatpush.bf16.msra.mxu0 0
    %3184 = vmatpush.bf16.msra.mxu0 %v3169
    %3185 = vmatmul.bf16.gmra.mxu0 %v3172
    %v3186 = vpop.f32.mrf.mxu0
    %v3187 = vadd.f32 0.0, %v3186
    %v3188 = vpop.f32.mrf.mxu0
    %v3189 = vadd.f32 0.0, %v3188
    %3190 = vmatmul.bf16.gmra.mxu0 %v3175
    %v3191 = vpop.f32.mrf.mxu0
    %v3192 = vadd.f32 0.0, %v3191
    %v3193 = vpop.f32.mrf.mxu0
    %v3194 = vadd.f32 0.0, %v3193
    %3195 = vdwg.mxu0
    %v3200 = vunpack.c.l.b16 %v3130
    %v3201 = vunpack.c.l.b16 %v3131
    %v3202 = vunpack.c.l.b16 %v3132
    %v3203 = vunpack.c.l.b16 %v3133
    %v3204 = vpack.c.b16 %v3201, %v3200
    %v3205 = vpack.c.b16 %v3203, %v3202
    %3206 = vrot.lane.b32.xlu0 %v556, 80
    %v3207 = vpop.permute.xlu0 %3206
    %v3210 = vsel %vm843, %v3204, 0
    %v3213 = vsel %vm843, %v3205, 0
    %3215 = vmatpush.bf16.msra.mxu0 0
    %3216 = vmatpush.bf16.msra.mxu0 0
    %3217 = vmatpush.bf16.msra.mxu0 0
    %3218 = vmatpush.bf16.msra.mxu0 0
    %3219 = vmatpush.bf16.msra.mxu0 0
    %3220 = vmatpush.bf16.msra.mxu0 0
    %3221 = vmatpush.bf16.msra.mxu0 0
    %3222 = vmatpush.bf16.msra.mxu0 %v3207
    %3223 = vmatmul.bf16.gmra.mxu0 %v3210
    %v3224 = vpop.f32.mrf.mxu0
    %v3225 = vadd.f32 0.0, %v3224
    %v3226 = vpop.f32.mrf.mxu0
    %v3227 = vadd.f32 0.0, %v3226
    %3228 = vmatmul.bf16.gmra.mxu0 %v3213
    %v3229 = vpop.f32.mrf.mxu0
    %v3230 = vadd.f32 0.0, %v3229
    %v3231 = vpop.f32.mrf.mxu0
    %v3232 = vadd.f32 0.0, %v3231
    %3233 = vdwg.mxu0
    %v3238 = vunpack.c.l.b16 %v3134
    %v3239 = vunpack.c.l.b16 %v3135
    %v3240 = vunpack.c.l.b16 %v3136
    %v3241 = vunpack.c.l.b16 %v3137
    %v3242 = vpack.c.b16 %v3239, %v3238
    %v3243 = vpack.c.b16 %v3241, %v3240
    %3244 = vrot.lane.b32.xlu0 %v599, 80
    %v3245 = vpop.permute.xlu0 %3244
    %v3248 = vsel %vm843, %v3242, 0
    %v3251 = vsel %vm843, %v3243, 0
    %3253 = vmatpush.bf16.msra.mxu0 0
    %3254 = vmatpush.bf16.msra.mxu0 0
    %3255 = vmatpush.bf16.msra.mxu0 0
    %3256 = vmatpush.bf16.msra.mxu0 0
    %3257 = vmatpush.bf16.msra.mxu0 0
    %3258 = vmatpush.bf16.msra.mxu0 0
    %3259 = vmatpush.bf16.msra.mxu0 0
    %3260 = vmatpush.bf16.msra.mxu0 %v3245
    %3261 = vmatmul.bf16.gmra.mxu0 %v3248
    %v3262 = vpop.f32.mrf.mxu0
    %v3263 = vadd.f32 0.0, %v3262
    %v3264 = vpop.f32.mrf.mxu0
    %v3265 = vadd.f32 0.0, %v3264
    %3266 = vmatmul.bf16.gmra.mxu0 %v3251
    %v3267 = vpop.f32.mrf.mxu0
    %v3268 = vadd.f32 0.0, %v3267
    %v3269 = vpop.f32.mrf.mxu0
    %v3270 = vadd.f32 0.0, %v3269
    %3271 = vdwg.mxu0
    %v3276 = vunpack.c.l.b16 %v3138
    %v3277 = vunpack.c.l.b16 %v3139
    %v3278 = vunpack.c.l.b16 %v3140
    %v3279 = vunpack.c.l.b16 %v3141
    %v3280 = vpack.c.b16 %v3277, %v3276
    %v3281 = vpack.c.b16 %v3279, %v3278
    %3282 = vrot.lane.b32.xlu0 %v642, 80
    %v3283 = vpop.permute.xlu0 %3282
    %v3286 = vsel %vm843, %v3280, 0
    %v3289 = vsel %vm843, %v3281, 0
    %3291 = vmatpush.bf16.msra.mxu0 0
    %3292 = vmatpush.bf16.msra.mxu0 0
    %3293 = vmatpush.bf16.msra.mxu0 0
    %3294 = vmatpush.bf16.msra.mxu0 0
    %3295 = vmatpush.bf16.msra.mxu0 0
    %3296 = vmatpush.bf16.msra.mxu0 0
    %3297 = vmatpush.bf16.msra.mxu0 0
    %3298 = vmatpush.bf16.msra.mxu0 %v3283
    %3299 = vmatmul.bf16.gmra.mxu0 %v3286
    %v3300 = vpop.f32.mrf.mxu0
    %v3301 = vadd.f32 0.0, %v3300
    %v3302 = vpop.f32.mrf.mxu0
    %v3303 = vadd.f32 0.0, %v3302
    %3304 = vmatmul.bf16.gmra.mxu0 %v3289
    %v3305 = vpop.f32.mrf.mxu0
    %v3306 = vadd.f32 0.0, %v3305
    %v3307 = vpop.f32.mrf.mxu0
    %v3308 = vadd.f32 0.0, %v3307
    %3309 = vdwg.mxu0
    %v3314 = vunpack.c.l.b16 %v3142
    %v3315 = vunpack.c.l.b16 %v3143
    %v3316 = vunpack.c.l.b16 %v3144
    %v3317 = vunpack.c.l.b16 %v3145
    %v3318 = vpack.c.b16 %v3315, %v3314
    %v3319 = vpack.c.b16 %v3317, %v3316
    %3320 = vrot.lane.b32.xlu0 %v685, 80
    %v3321 = vpop.permute.xlu0 %3320
    %v3324 = vsel %vm843, %v3318, 0
    %v3327 = vsel %vm843, %v3319, 0
    %3329 = vmatpush.bf16.msra.mxu0 0
    %3330 = vmatpush.bf16.msra.mxu0 0
    %3331 = vmatpush.bf16.msra.mxu0 0
    %3332 = vmatpush.bf16.msra.mxu0 0
    %3333 = vmatpush.bf16.msra.mxu0 0
    %3334 = vmatpush.bf16.msra.mxu0 0
    %3335 = vmatpush.bf16.msra.mxu0 0
    %3336 = vmatpush.bf16.msra.mxu0 %v3321
    %3337 = vmatmul.bf16.gmra.mxu0 %v3324
    %v3338 = vpop.f32.mrf.mxu0
    %v3339 = vadd.f32 0.0, %v3338
    %v3340 = vpop.f32.mrf.mxu0
    %v3341 = vadd.f32 0.0, %v3340
    %3342 = vmatmul.bf16.gmra.mxu0 %v3327
    %v3343 = vpop.f32.mrf.mxu0
    %v3344 = vadd.f32 0.0, %v3343
    %v3345 = vpop.f32.mrf.mxu0
    %v3346 = vadd.f32 0.0, %v3345
    %3347 = vdwg.mxu0
    %v3352 = vunpack.c.l.b16 %v3146
    %v3353 = vunpack.c.l.b16 %v3147
    %v3354 = vunpack.c.l.b16 %v3148
    %v3355 = vunpack.c.l.b16 %v3149
    %v3356 = vpack.c.b16 %v3353, %v3352
    %v3357 = vpack.c.b16 %v3355, %v3354
    %3358 = vrot.lane.b32.xlu0 %v728, 80
    %v3359 = vpop.permute.xlu0 %3358
    %v3362 = vsel %vm843, %v3356, 0
    %v3365 = vsel %vm843, %v3357, 0
    %3367 = vmatpush.bf16.msra.mxu0 0
    %3368 = vmatpush.bf16.msra.mxu0 0
    %3369 = vmatpush.bf16.msra.mxu0 0
    %3370 = vmatpush.bf16.msra.mxu0 0
    %3371 = vmatpush.bf16.msra.mxu0 0
    %3372 = vmatpush.bf16.msra.mxu0 0
    %3373 = vmatpush.bf16.msra.mxu0 0
    %3374 = vmatpush.bf16.msra.mxu0 %v3359
    %3375 = vmatmul.bf16.gmra.mxu0 %v3362
    %v3376 = vpop.f32.mrf.mxu0
    %v3377 = vadd.f32 0.0, %v3376
    %v3378 = vpop.f32.mrf.mxu0
    %v3379 = vadd.f32 0.0, %v3378
    %3380 = vmatmul.bf16.gmra.mxu0 %v3365
    %v3381 = vpop.f32.mrf.mxu0
    %v3382 = vadd.f32 0.0, %v3381
    %v3383 = vpop.f32.mrf.mxu0
    %v3384 = vadd.f32 0.0, %v3383
    %3385 = vdwg.mxu0
    %v3390 = vunpack.c.l.b16 %v3150
    %v3391 = vunpack.c.l.b16 %v3151
    %v3392 = vunpack.c.l.b16 %v3152
    %v3393 = vunpack.c.l.b16 %v3153
    %v3394 = vpack.c.b16 %v3391, %v3390
    %v3395 = vpack.c.b16 %v3393, %v3392
    %3396 = vrot.lane.b32.xlu0 %v771, 80
    %v3397 = vpop.permute.xlu0 %3396
    %v3400 = vsel %vm843, %v3394, 0
    %v3403 = vsel %vm843, %v3395, 0
    %3405 = vmatpush.bf16.msra.mxu0 0
    %3406 = vmatpush.bf16.msra.mxu0 0
    %3407 = vmatpush.bf16.msra.mxu0 0
    %3408 = vmatpush.bf16.msra.mxu0 0
    %3409 = vmatpush.bf16.msra.mxu0 0
    %3410 = vmatpush.bf16.msra.mxu0 0
    %3411 = vmatpush.bf16.msra.mxu0 0
    %3412 = vmatpush.bf16.msra.mxu0 %v3397
    %3413 = vmatmul.bf16.gmra.mxu0 %v3400
    %v3414 = vpop.f32.mrf.mxu0
    %v3415 = vadd.f32 0.0, %v3414
    %v3416 = vpop.f32.mrf.mxu0
    %v3417 = vadd.f32 0.0, %v3416
    %3418 = vmatmul.bf16.gmra.mxu0 %v3403
    %v3419 = vpop.f32.mrf.mxu0
    %v3420 = vadd.f32 0.0, %v3419
    %v3421 = vpop.f32.mrf.mxu0
    %v3422 = vadd.f32 0.0, %v3421
    %3423 = vdwg.mxu0
    %v3428 = vunpack.c.l.b16 %v3154
    %v3429 = vunpack.c.l.b16 %v3155
    %v3430 = vunpack.c.l.b16 %v3156
    %v3431 = vunpack.c.l.b16 %v3157
    %v3432 = vpack.c.b16 %v3429, %v3428
    %v3433 = vpack.c.b16 %v3431, %v3430
    %3434 = vrot.lane.b32.xlu0 %v814, 80
    %v3435 = vpop.permute.xlu0 %3434
    %v3438 = vsel %vm843, %v3432, 0
    %v3441 = vsel %vm843, %v3433, 0
    %3443 = vmatpush.bf16.msra.mxu0 0
    %3444 = vmatpush.bf16.msra.mxu0 0
    %3445 = vmatpush.bf16.msra.mxu0 0
    %3446 = vmatpush.bf16.msra.mxu0 0
    %3447 = vmatpush.bf16.msra.mxu0 0
    %3448 = vmatpush.bf16.msra.mxu0 0
    %3449 = vmatpush.bf16.msra.mxu0 0
    %3450 = vmatpush.bf16.msra.mxu0 %v3435
    %3451 = vmatmul.bf16.gmra.mxu0 %v3438
    %v3452 = vpop.f32.mrf.mxu0
    %v3453 = vadd.f32 0.0, %v3452
    %v3454 = vpop.f32.mrf.mxu0
    %v3455 = vadd.f32 0.0, %v3454
    %3456 = vmatmul.bf16.gmra.mxu0 %v3441
    %v3457 = vpop.f32.mrf.mxu0
    %v3458 = vadd.f32 0.0, %v3457
    %v3459 = vpop.f32.mrf.mxu0
    %v3460 = vadd.f32 0.0, %v3459
    %3461 = vdwg.mxu0
    %s3462 = scalar_lea.vmem %s4, 96
    %v3463 = vld [vmem:[%s3462] sm:$0xff]
    %v3464 = vld [vmem:[%s3462 + $0x8] sm:$0xff]
    %v3465 = vld [vmem:[%s3462 + $0x10] sm:$0xff]
    %v3466 = vld [vmem:[%s3462 + $0x18] sm:$0xff]
    %3467 = vrot.lane.b32.xlu0 %v506, 104
    %v3468 = vpop.permute.xlu0 %3467
    %3469 = vrot.lane.b32.xlu0 %v507, 104
    %v3470 = vpop.permute.xlu0 %3469
    %3471 = vrot.lane.b32.xlu0 %v512, 104
    %v3472 = vpop.permute.xlu0 %3471
    %v3474 = vsel %vm513, %v3468, 0
    %v3477 = vsel %vm513, %v3470, 0
    %v3480 = vsel %vm513, %v3472, 0
    %3482 = vmatpush.bf16.xpose.msra.mxu0 0
    %3483 = vmatpush.bf16.xpose.msra.mxu0 0
    %3484 = vmatpush.bf16.xpose.msra.mxu0 0
    %3485 = vmatpush.bf16.xpose.msra.mxu0 0
    %3486 = vmatpush.bf16.xpose.msra.mxu0 0
    %3487 = vmatpush.bf16.xpose.msra.mxu0 0
    %3488 = vmatpush.bf16.xpose.msra.mxu0 0
    %3489 = vmatpush.bf16.xpose.msra.mxu0 %v3480
    %3490 = vmatmul.bf16.gmra.mxu0 %v3474
    %v3491 = vpop.f32.mrf.mxu0
    %v3492 = vadd.f32 %v3463, %v3491
    %v3493 = vpop.f32.mrf.mxu0
    %v3494 = vadd.f32 %v3464, %v3493
    %3495 = vmatmul.bf16.gmra.mxu0 %v3477
    %v3496 = vpop.f32.mrf.mxu0
    %v3497 = vadd.f32 %v3465, %v3496
    %v3498 = vpop.f32.mrf.mxu0
    %v3499 = vadd.f32 %v3466, %v3498
    %3500 = vdwg.mxu0
    %3501 = vrot.lane.b32.xlu0 %v550, 104
    %v3502 = vpop.permute.xlu0 %3501
    %3503 = vrot.lane.b32.xlu0 %v551, 104
    %v3504 = vpop.permute.xlu0 %3503
    %3505 = vrot.lane.b32.xlu0 %v556, 104
    %v3506 = vpop.permute.xlu0 %3505
    %v3508 = vsel %vm513, %v3502, 0
    %v3511 = vsel %vm513, %v3504, 0
    %v3514 = vsel %vm513, %v3506, 0
    %3516 = vmatpush.bf16.xpose.msra.mxu0 0
    %3517 = vmatpush.bf16.xpose.msra.mxu0 0
    %3518 = vmatpush.bf16.xpose.msra.mxu0 0
    %3519 = vmatpush.bf16.xpose.msra.mxu0 0
    %3520 = vmatpush.bf16.xpose.msra.mxu0 0
    %3521 = vmatpush.bf16.xpose.msra.mxu0 0
    %3522 = vmatpush.bf16.xpose.msra.mxu0 0
    %3523 = vmatpush.bf16.xpose.msra.mxu0 %v3514
    %3524 = vmatmul.bf16.gmra.mxu0 %v3508
    %v3525 = vpop.f32.mrf.mxu0
    %v3526 = vadd.f32 %v3463, %v3525
    %v3527 = vpop.f32.mrf.mxu0
    %v3528 = vadd.f32 %v3464, %v3527
    %3529 = vmatmul.bf16.gmra.mxu0 %v3511
    %v3530 = vpop.f32.mrf.mxu0
    %v3531 = vadd.f32 %v3465, %v3530
    %v3532 = vpop.f32.mrf.mxu0
    %v3533 = vadd.f32 %v3466, %v3532
    %3534 = vdwg.mxu0
    %3535 = vrot.lane.b32.xlu0 %v593, 104
    %v3536 = vpop.permute.xlu0 %3535
    %3537 = vrot.lane.b32.xlu0 %v594, 104
    %v3538 = vpop.permute.xlu0 %3537
    %3539 = vrot.lane.b32.xlu0 %v599, 104
    %v3540 = vpop.permute.xlu0 %3539
    %v3542 = vsel %vm513, %v3536, 0
    %v3545 = vsel %vm513, %v3538, 0
    %v3548 = vsel %vm513, %v3540, 0
    %3550 = vmatpush.bf16.xpose.msra.mxu0 0
    %3551 = vmatpush.bf16.xpose.msra.mxu0 0
    %3552 = vmatpush.bf16.xpose.msra.mxu0 0
    %3553 = vmatpush.bf16.xpose.msra.mxu0 0
    %3554 = vmatpush.bf16.xpose.msra.mxu0 0
    %3555 = vmatpush.bf16.xpose.msra.mxu0 0
    %3556 = vmatpush.bf16.xpose.msra.mxu0 0
    %3557 = vmatpush.bf16.xpose.msra.mxu0 %v3548
    %3558 = vmatmul.bf16.gmra.mxu0 %v3542
    %v3559 = vpop.f32.mrf.mxu0
    %v3560 = vadd.f32 %v3463, %v3559
    %v3561 = vpop.f32.mrf.mxu0
    %v3562 = vadd.f32 %v3464, %v3561
    %3563 = vmatmul.bf16.gmra.mxu0 %v3545
    %v3564 = vpop.f32.mrf.mxu0
    %v3565 = vadd.f32 %v3465, %v3564
    %v3566 = vpop.f32.mrf.mxu0
    %v3567 = vadd.f32 %v3466, %v3566
    %3568 = vdwg.mxu0
    %3569 = vrot.lane.b32.xlu0 %v636, 104
    %v3570 = vpop.permute.xlu0 %3569
    %3571 = vrot.lane.b32.xlu0 %v637, 104
    %v3572 = vpop.permute.xlu0 %3571
    %3573 = vrot.lane.b32.xlu0 %v642, 104
    %v3574 = vpop.permute.xlu0 %3573
    %v3576 = vsel %vm513, %v3570, 0
    %v3579 = vsel %vm513, %v3572, 0
    %v3582 = vsel %vm513, %v3574, 0
    %3584 = vmatpush.bf16.xpose.msra.mxu0 0
    %3585 = vmatpush.bf16.xpose.msra.mxu0 0
    %3586 = vmatpush.bf16.xpose.msra.mxu0 0
    %3587 = vmatpush.bf16.xpose.msra.mxu0 0
    %3588 = vmatpush.bf16.xpose.msra.mxu0 0
    %3589 = vmatpush.bf16.xpose.msra.mxu0 0
    %3590 = vmatpush.bf16.xpose.msra.mxu0 0
    %3591 = vmatpush.bf16.xpose.msra.mxu0 %v3582
    %3592 = vmatmul.bf16.gmra.mxu0 %v3576
    %v3593 = vpop.f32.mrf.mxu0
    %v3594 = vadd.f32 %v3463, %v3593
    %v3595 = vpop.f32.mrf.mxu0
    %v3596 = vadd.f32 %v3464, %v3595
    %3597 = vmatmul.bf16.gmra.mxu0 %v3579
    %v3598 = vpop.f32.mrf.mxu0
    %v3599 = vadd.f32 %v3465, %v3598
    %v3600 = vpop.f32.mrf.mxu0
    %v3601 = vadd.f32 %v3466, %v3600
    %3602 = vdwg.mxu0
    %3603 = vrot.lane.b32.xlu0 %v679, 104
    %v3604 = vpop.permute.xlu0 %3603
    %3605 = vrot.lane.b32.xlu0 %v680, 104
    %v3606 = vpop.permute.xlu0 %3605
    %3607 = vrot.lane.b32.xlu0 %v685, 104
    %v3608 = vpop.permute.xlu0 %3607
    %v3610 = vsel %vm513, %v3604, 0
    %v3613 = vsel %vm513, %v3606, 0
    %v3616 = vsel %vm513, %v3608, 0
    %3618 = vmatpush.bf16.xpose.msra.mxu0 0
    %3619 = vmatpush.bf16.xpose.msra.mxu0 0
    %3620 = vmatpush.bf16.xpose.msra.mxu0 0
    %3621 = vmatpush.bf16.xpose.msra.mxu0 0
    %3622 = vmatpush.bf16.xpose.msra.mxu0 0
    %3623 = vmatpush.bf16.xpose.msra.mxu0 0
    %3624 = vmatpush.bf16.xpose.msra.mxu0 0
    %3625 = vmatpush.bf16.xpose.msra.mxu0 %v3616
    %3626 = vmatmul.bf16.gmra.mxu0 %v3610
    %v3627 = vpop.f32.mrf.mxu0
    %v3628 = vadd.f32 %v3463, %v3627
    %v3629 = vpop.f32.mrf.mxu0
    %v3630 = vadd.f32 %v3464, %v3629
    %3631 = vmatmul.bf16.gmra.mxu0 %v3613
    %v3632 = vpop.f32.mrf.mxu0
    %v3633 = vadd.f32 %v3465, %v3632
    %v3634 = vpop.f32.mrf.mxu0
    %v3635 = vadd.f32 %v3466, %v3634
    %3636 = vdwg.mxu0
    %3637 = vrot.lane.b32.xlu0 %v722, 104
    %v3638 = vpop.permute.xlu0 %3637
    %3639 = vrot.lane.b32.xlu0 %v723, 104
    %v3640 = vpop.permute.xlu0 %3639
    %3641 = vrot.lane.b32.xlu0 %v728, 104
    %v3642 = vpop.permute.xlu0 %3641
    %v3644 = vsel %vm513, %v3638, 0
    %v3647 = vsel %vm513, %v3640, 0
    %v3650 = vsel %vm513, %v3642, 0
    %3652 = vmatpush.bf16.xpose.msra.mxu0 0
    %3653 = vmatpush.bf16.xpose.msra.mxu0 0
    %3654 = vmatpush.bf16.xpose.msra.mxu0 0
    %3655 = vmatpush.bf16.xpose.msra.mxu0 0
    %3656 = vmatpush.bf16.xpose.msra.mxu0 0
    %3657 = vmatpush.bf16.xpose.msra.mxu0 0
    %3658 = vmatpush.bf16.xpose.msra.mxu0 0
    %3659 = vmatpush.bf16.xpose.msra.mxu0 %v3650
    %3660 = vmatmul.bf16.gmra.mxu0 %v3644
    %v3661 = vpop.f32.mrf.mxu0
    %v3662 = vadd.f32 %v3463, %v3661
    %v3663 = vpop.f32.mrf.mxu0
    %v3664 = vadd.f32 %v3464, %v3663
    %3665 = vmatmul.bf16.gmra.mxu0 %v3647
    %v3666 = vpop.f32.mrf.mxu0
    %v3667 = vadd.f32 %v3465, %v3666
    %v3668 = vpop.f32.mrf.mxu0
    %v3669 = vadd.f32 %v3466, %v3668
    %3670 = vdwg.mxu0
    %3671 = vrot.lane.b32.xlu0 %v765, 104
    %v3672 = vpop.permute.xlu0 %3671
    %3673 = vrot.lane.b32.xlu0 %v766, 104
    %v3674 = vpop.permute.xlu0 %3673
    %3675 = vrot.lane.b32.xlu0 %v771, 104
    %v3676 = vpop.permute.xlu0 %3675
    %v3678 = vsel %vm513, %v3672, 0
    %v3681 = vsel %vm513, %v3674, 0
    %v3684 = vsel %vm513, %v3676, 0
    %3686 = vmatpush.bf16.xpose.msra.mxu0 0
    %3687 = vmatpush.bf16.xpose.msra.mxu0 0
    %3688 = vmatpush.bf16.xpose.msra.mxu0 0
    %3689 = vmatpush.bf16.xpose.msra.mxu0 0
    %3690 = vmatpush.bf16.xpose.msra.mxu0 0
    %3691 = vmatpush.bf16.xpose.msra.mxu0 0
    %3692 = vmatpush.bf16.xpose.msra.mxu0 0
    %3693 = vmatpush.bf16.xpose.msra.mxu0 %v3684
    %3694 = vmatmul.bf16.gmra.mxu0 %v3678
    %v3695 = vpop.f32.mrf.mxu0
    %v3696 = vadd.f32 %v3463, %v3695
    %v3697 = vpop.f32.mrf.mxu0
    %v3698 = vadd.f32 %v3464, %v3697
    %3699 = vmatmul.bf16.gmra.mxu0 %v3681
    %v3700 = vpop.f32.mrf.mxu0
    %v3701 = vadd.f32 %v3465, %v3700
    %v3702 = vpop.f32.mrf.mxu0
    %v3703 = vadd.f32 %v3466, %v3702
    %3704 = vdwg.mxu0
    %3705 = vrot.lane.b32.xlu0 %v808, 104
    %v3706 = vpop.permute.xlu0 %3705
    %3707 = vrot.lane.b32.xlu0 %v809, 104
    %v3708 = vpop.permute.xlu0 %3707
    %3709 = vrot.lane.b32.xlu0 %v814, 104
    %v3710 = vpop.permute.xlu0 %3709
    %v3712 = vsel %vm513, %v3706, 0
    %v3715 = vsel %vm513, %v3708, 0
    %v3718 = vsel %vm513, %v3710, 0
    %3720 = vmatpush.bf16.xpose.msra.mxu0 0
    %3721 = vmatpush.bf16.xpose.msra.mxu0 0
    %3722 = vmatpush.bf16.xpose.msra.mxu0 0
    %3723 = vmatpush.bf16.xpose.msra.mxu0 0
    %3724 = vmatpush.bf16.xpose.msra.mxu0 0
    %3725 = vmatpush.bf16.xpose.msra.mxu0 0
    %3726 = vmatpush.bf16.xpose.msra.mxu0 0
    %3727 = vmatpush.bf16.xpose.msra.mxu0 %v3718
    %3728 = vmatmul.bf16.gmra.mxu0 %v3712
    %v3729 = vpop.f32.mrf.mxu0
    %v3730 = vadd.f32 %v3463, %v3729
    %v3731 = vpop.f32.mrf.mxu0
    %v3732 = vadd.f32 %v3464, %v3731
    %3733 = vmatmul.bf16.gmra.mxu0 %v3715
    %v3734 = vpop.f32.mrf.mxu0
    %v3735 = vadd.f32 %v3465, %v3734
    %v3736 = vpop.f32.mrf.mxu0
    %v3737 = vadd.f32 %v3466, %v3736
    %3738 = vdwg.mxu0
    %v3739 = vsel %vm843, %v3492, -inf
    %3740 = vmax.xlane.f32.xlu0 %v3739
    %v3741 = vpop.xlane.xlu0 %3740
    %v3742 = vsel %vm843, %v3494, -inf
    %3743 = vmax.xlane.f32.xlu0 %v3742
    %v3744 = vpop.xlane.xlu0 %3743
    %v3745 = vsel %vm843, %v3497, -inf
    %3746 = vmax.xlane.f32.xlu0 %v3745
    %v3747 = vpop.xlane.xlu0 %3746
    %v3748 = vsel %vm843, %v3499, -inf
    %3749 = vmax.xlane.f32.xlu0 %v3748
    %v3750 = vpop.xlane.xlu0 %3749
    %v3751 = vsel %vm843, %v3526, -inf
    %3752 = vmax.xlane.f32.xlu0 %v3751
    %v3753 = vpop.xlane.xlu0 %3752
    %v3754 = vsel %vm843, %v3528, -inf
    %3755 = vmax.xlane.f32.xlu0 %v3754
    %v3756 = vpop.xlane.xlu0 %3755
    %v3757 = vsel %vm843, %v3531, -inf
    %3758 = vmax.xlane.f32.xlu0 %v3757
    %v3759 = vpop.xlane.xlu0 %3758
    %v3760 = vsel %vm843, %v3533, -inf
    %3761 = vmax.xlane.f32.xlu0 %v3760
    %v3762 = vpop.xlane.xlu0 %3761
    %v3763 = vsel %vm843, %v3560, -inf
    %3764 = vmax.xlane.f32.xlu0 %v3763
    %v3765 = vpop.xlane.xlu0 %3764
    %v3766 = vsel %vm843, %v3562, -inf
    %3767 = vmax.xlane.f32.xlu0 %v3766
    %v3768 = vpop.xlane.xlu0 %3767
    %v3769 = vsel %vm843, %v3565, -inf
    %3770 = vmax.xlane.f32.xlu0 %v3769
    %v3771 = vpop.xlane.xlu0 %3770
    %v3772 = vsel %vm843, %v3567, -inf
    %3773 = vmax.xlane.f32.xlu0 %v3772
    %v3774 = vpop.xlane.xlu0 %3773
    %v3775 = vsel %vm843, %v3594, -inf
    %3776 = vmax.xlane.f32.xlu0 %v3775
    %v3777 = vpop.xlane.xlu0 %3776
    %v3778 = vsel %vm843, %v3596, -inf
    %3779 = vmax.xlane.f32.xlu0 %v3778
    %v3780 = vpop.xlane.xlu0 %3779
    %v3781 = vsel %vm843, %v3599, -inf
    %3782 = vmax.xlane.f32.xlu0 %v3781
    %v3783 = vpop.xlane.xlu0 %3782
    %v3784 = vsel %vm843, %v3601, -inf
    %3785 = vmax.xlane.f32.xlu0 %v3784
    %v3786 = vpop.xlane.xlu0 %3785
    %v3787 = vsel %vm843, %v3628, -inf
    %3788 = vmax.xlane.f32.xlu0 %v3787
    %v3789 = vpop.xlane.xlu0 %3788
    %v3790 = vsel %vm843, %v3630, -inf
    %3791 = vmax.xlane.f32.xlu0 %v3790
    %v3792 = vpop.xlane.xlu0 %3791
    %v3793 = vsel %vm843, %v3633, -inf
    %3794 = vmax.xlane.f32.xlu0 %v3793
    %v3795 = vpop.xlane.xlu0 %3794
    %v3796 = vsel %vm843, %v3635, -inf
    %3797 = vmax.xlane.f32.xlu0 %v3796
    %v3798 = vpop.xlane.xlu0 %3797
    %v3799 = vsel %vm843, %v3662, -inf
    %3800 = vmax.xlane.f32.xlu0 %v3799
    %v3801 = vpop.xlane.xlu0 %3800
    %v3802 = vsel %vm843, %v3664, -inf
    %3803 = vmax.xlane.f32.xlu0 %v3802
    %v3804 = vpop.xlane.xlu0 %3803
    %v3805 = vsel %vm843, %v3667, -inf
    %3806 = vmax.xlane.f32.xlu0 %v3805
    %v3807 = vpop.xlane.xlu0 %3806
    %v3808 = vsel %vm843, %v3669, -inf
    %3809 = vmax.xlane.f32.xlu0 %v3808
    %v3810 = vpop.xlane.xlu0 %3809
    %v3811 = vsel %vm843, %v3696, -inf
    %3812 = vmax.xlane.f32.xlu0 %v3811
    %v3813 = vpop.xlane.xlu0 %3812
    %v3814 = vsel %vm843, %v3698, -inf
    %3815 = vmax.xlane.f32.xlu0 %v3814
    %v3816 = vpop.xlane.xlu0 %3815
    %v3817 = vsel %vm843, %v3701, -inf
    %3818 = vmax.xlane.f32.xlu0 %v3817
    %v3819 = vpop.xlane.xlu0 %3818
    %v3820 = vsel %vm843, %v3703, -inf
    %3821 = vmax.xlane.f32.xlu0 %v3820
    %v3822 = vpop.xlane.xlu0 %3821
    %v3823 = vsel %vm843, %v3730, -inf
    %3824 = vmax.xlane.f32.xlu0 %v3823
    %v3825 = vpop.xlane.xlu0 %3824
    %v3826 = vsel %vm843, %v3732, -inf
    %3827 = vmax.xlane.f32.xlu0 %v3826
    %v3828 = vpop.xlane.xlu0 %3827
    %v3829 = vsel %vm843, %v3735, -inf
    %3830 = vmax.xlane.f32.xlu0 %v3829
    %v3831 = vpop.xlane.xlu0 %3830
    %v3832 = vsel %vm843, %v3737, -inf
    %3833 = vmax.xlane.f32.xlu0 %v3832
    %v3834 = vpop.xlane.xlu0 %3833
    %v3835 = vsub.f32 %v3492, %v3741
    %v3836 = vsub.f32 %v3494, %v3744
    %v3837 = vsub.f32 %v3497, %v3747
    %v3838 = vsub.f32 %v3499, %v3750
    %v3839 = vsub.f32 %v3526, %v3753
    %v3840 = vsub.f32 %v3528, %v3756
    %v3841 = vsub.f32 %v3531, %v3759
    %v3842 = vsub.f32 %v3533, %v3762
    %v3843 = vsub.f32 %v3560, %v3765
    %v3844 = vsub.f32 %v3562, %v3768
    %v3845 = vsub.f32 %v3565, %v3771
    %v3846 = vsub.f32 %v3567, %v3774
    %v3847 = vsub.f32 %v3594, %v3777
    %v3848 = vsub.f32 %v3596, %v3780
    %v3849 = vsub.f32 %v3599, %v3783
    %v3850 = vsub.f32 %v3601, %v3786
    %v3851 = vsub.f32 %v3628, %v3789
    %v3852 = vsub.f32 %v3630, %v3792
    %v3853 = vsub.f32 %v3633, %v3795
    %v3854 = vsub.f32 %v3635, %v3798
    %v3855 = vsub.f32 %v3662, %v3801
    %v3856 = vsub.f32 %v3664, %v3804
    %v3857 = vsub.f32 %v3667, %v3807
    %v3858 = vsub.f32 %v3669, %v3810
    %v3859 = vsub.f32 %v3696, %v3813
    %v3860 = vsub.f32 %v3698, %v3816
    %v3861 = vsub.f32 %v3701, %v3819
    %v3862 = vsub.f32 %v3703, %v3822
    %v3863 = vsub.f32 %v3730, %v3825
    %v3864 = vsub.f32 %v3732, %v3828
    %v3865 = vsub.f32 %v3735, %v3831
    %v3866 = vsub.f32 %v3737, %v3834
    %v3867 = vmul.f32 %v3835, 1.442695
    %v3868 = vpow.pop %v3867
    %v3869 = vmul.f32 %v3836, 1.442695
    %v3870 = vpow.pop %v3869
    %v3871 = vmul.f32 %v3837, 1.442695
    %v3872 = vpow.pop %v3871
    %v3873 = vmul.f32 %v3838, 1.442695
    %v3874 = vpow.pop %v3873
    %v3875 = vmul.f32 %v3839, 1.442695
    %v3876 = vpow.pop %v3875
    %v3877 = vmul.f32 %v3840, 1.442695
    %v3878 = vpow.pop %v3877
    %v3879 = vmul.f32 %v3841, 1.442695
    %v3880 = vpow.pop %v3879
    %v3881 = vmul.f32 %v3842, 1.442695
    %v3882 = vpow.pop %v3881
    %v3883 = vmul.f32 %v3843, 1.442695
    %v3884 = vpow.pop %v3883
    %v3885 = vmul.f32 %v3844, 1.442695
    %v3886 = vpow.pop %v3885
    %v3887 = vmul.f32 %v3845, 1.442695
    %v3888 = vpow.pop %v3887
    %v3889 = vmul.f32 %v3846, 1.442695
    %v3890 = vpow.pop %v3889
    %v3891 = vmul.f32 %v3847, 1.442695
    %v3892 = vpow.pop %v3891
    %v3893 = vmul.f32 %v3848, 1.442695
    %v3894 = vpow.pop %v3893
    %v3895 = vmul.f32 %v3849, 1.442695
    %v3896 = vpow.pop %v3895
    %v3897 = vmul.f32 %v3850, 1.442695
    %v3898 = vpow.pop %v3897
    %v3899 = vmul.f32 %v3851, 1.442695
    %v3900 = vpow.pop %v3899
    %v3901 = vmul.f32 %v3852, 1.442695
    %v3902 = vpow.pop %v3901
    %v3903 = vmul.f32 %v3853, 1.442695
    %v3904 = vpow.pop %v3903
    %v3905 = vmul.f32 %v3854, 1.442695
    %v3906 = vpow.pop %v3905
    %v3907 = vmul.f32 %v3855, 1.442695
    %v3908 = vpow.pop %v3907
    %v3909 = vmul.f32 %v3856, 1.442695
    %v3910 = vpow.pop %v3909
    %v3911 = vmul.f32 %v3857, 1.442695
    %v3912 = vpow.pop %v3911
    %v3913 = vmul.f32 %v3858, 1.442695
    %v3914 = vpow.pop %v3913
    %v3915 = vmul.f32 %v3859, 1.442695
    %v3916 = vpow.pop %v3915
    %v3917 = vmul.f32 %v3860, 1.442695
    %v3918 = vpow.pop %v3917
    %v3919 = vmul.f32 %v3861, 1.442695
    %v3920 = vpow.pop %v3919
    %v3921 = vmul.f32 %v3862, 1.442695
    %v3922 = vpow.pop %v3921
    %v3923 = vmul.f32 %v3863, 1.442695
    %v3924 = vpow.pop %v3923
    %v3925 = vmul.f32 %v3864, 1.442695
    %v3926 = vpow.pop %v3925
    %v3927 = vmul.f32 %v3865, 1.442695
    %v3928 = vpow.pop %v3927
    %v3929 = vmul.f32 %v3866, 1.442695
    %v3930 = vpow.pop %v3929
    %v3931 = vsel %vm843, %v3868, 0.0
    %3932 = vadd.xlane.f32.xlu0 %v3931
    %v3933 = vpop.xlane.xlu0 %3932
    %v3934 = vsel %vm843, %v3870, 0.0
    %3935 = vadd.xlane.f32.xlu0 %v3934
    %v3936 = vpop.xlane.xlu0 %3935
    %v3937 = vsel %vm843, %v3872, 0.0
    %3938 = vadd.xlane.f32.xlu0 %v3937
    %v3939 = vpop.xlane.xlu0 %3938
    %v3940 = vsel %vm843, %v3874, 0.0
    %3941 = vadd.xlane.f32.xlu0 %v3940
    %v3942 = vpop.xlane.xlu0 %3941
    %v3943 = vsel %vm843, %v3876, 0.0
    %3944 = vadd.xlane.f32.xlu0 %v3943
    %v3945 = vpop.xlane.xlu0 %3944
    %v3946 = vsel %vm843, %v3878, 0.0
    %3947 = vadd.xlane.f32.xlu0 %v3946
    %v3948 = vpop.xlane.xlu0 %3947
    %v3949 = vsel %vm843, %v3880, 0.0
    %3950 = vadd.xlane.f32.xlu0 %v3949
    %v3951 = vpop.xlane.xlu0 %3950
    %v3952 = vsel %vm843, %v3882, 0.0
    %3953 = vadd.xlane.f32.xlu0 %v3952
    %v3954 = vpop.xlane.xlu0 %3953
    %v3955 = vsel %vm843, %v3884, 0.0
    %3956 = vadd.xlane.f32.xlu0 %v3955
    %v3957 = vpop.xlane.xlu0 %3956
    %v3958 = vsel %vm843, %v3886, 0.0
    %3959 = vadd.xlane.f32.xlu0 %v3958
    %v3960 = vpop.xlane.xlu0 %3959
    %v3961 = vsel %vm843, %v3888, 0.0
    %3962 = vadd.xlane.f32.xlu0 %v3961
    %v3963 = vpop.xlane.xlu0 %3962
    %v3964 = vsel %vm843, %v3890, 0.0
    %3965 = vadd.xlane.f32.xlu0 %v3964
    %v3966 = vpop.xlane.xlu0 %3965
    %v3967 = vsel %vm843, %v3892, 0.0
    %3968 = vadd.xlane.f32.xlu0 %v3967
    %v3969 = vpop.xlane.xlu0 %3968
    %v3970 = vsel %vm843, %v3894, 0.0
    %3971 = vadd.xlane.f32.xlu0 %v3970
    %v3972 = vpop.xlane.xlu0 %3971
    %v3973 = vsel %vm843, %v3896, 0.0
    %3974 = vadd.xlane.f32.xlu0 %v3973
    %v3975 = vpop.xlane.xlu0 %3974
    %v3976 = vsel %vm843, %v3898, 0.0
    %3977 = vadd.xlane.f32.xlu0 %v3976
    %v3978 = vpop.xlane.xlu0 %3977
    %v3979 = vsel %vm843, %v3900, 0.0
    %3980 = vadd.xlane.f32.xlu0 %v3979
    %v3981 = vpop.xlane.xlu0 %3980
    %v3982 = vsel %vm843, %v3902, 0.0
    %3983 = vadd.xlane.f32.xlu0 %v3982
    %v3984 = vpop.xlane.xlu0 %3983
    %v3985 = vsel %vm843, %v3904, 0.0
    %3986 = vadd.xlane.f32.xlu0 %v3985
    %v3987 = vpop.xlane.xlu0 %3986
    %v3988 = vsel %vm843, %v3906, 0.0
    %3989 = vadd.xlane.f32.xlu0 %v3988
    %v3990 = vpop.xlane.xlu0 %3989
    %v3991 = vsel %vm843, %v3908, 0.0
    %3992 = vadd.xlane.f32.xlu0 %v3991
    %v3993 = vpop.xlane.xlu0 %3992
    %v3994 = vsel %vm843, %v3910, 0.0
    %3995 = vadd.xlane.f32.xlu0 %v3994
    %v3996 = vpop.xlane.xlu0 %3995
    %v3997 = vsel %vm843, %v3912, 0.0
    %3998 = vadd.xlane.f32.xlu0 %v3997
    %v3999 = vpop.xlane.xlu0 %3998
    %v4000 = vsel %vm843, %v3914, 0.0
    %4001 = vadd.xlane.f32.xlu0 %v4000
    %v4002 = vpop.xlane.xlu0 %4001
    %v4003 = vsel %vm843, %v3916, 0.0
    %4004 = vadd.xlane.f32.xlu0 %v4003
    %v4005 = vpop.xlane.xlu0 %4004
    %v4006 = vsel %vm843, %v3918, 0.0
    %4007 = vadd.xlane.f32.xlu0 %v4006
    %v4008 = vpop.xlane.xlu0 %4007
    %v4009 = vsel %vm843, %v3920, 0.0
    %4010 = vadd.xlane.f32.xlu0 %v4009
    %v4011 = vpop.xlane.xlu0 %4010
    %v4012 = vsel %vm843, %v3922, 0.0
    %4013 = vadd.xlane.f32.xlu0 %v4012
    %v4014 = vpop.xlane.xlu0 %4013
    %v4015 = vsel %vm843, %v3924, 0.0
    %4016 = vadd.xlane.f32.xlu0 %v4015
    %v4017 = vpop.xlane.xlu0 %4016
    %v4018 = vsel %vm843, %v3926, 0.0
    %4019 = vadd.xlane.f32.xlu0 %v4018
    %v4020 = vpop.xlane.xlu0 %4019
    %v4021 = vsel %vm843, %v3928, 0.0
    %4022 = vadd.xlane.f32.xlu0 %v4021
    %v4023 = vpop.xlane.xlu0 %4022
    %v4024 = vsel %vm843, %v3930, 0.0
    %4025 = vadd.xlane.f32.xlu0 %v4024
    %v4026 = vpop.xlane.xlu0 %4025
    %v4027 = vrcp.pop %v3933
    %v4028 = vrcp.pop %v3936
    %v4029 = vrcp.pop %v3939
    %v4030 = vrcp.pop %v3942
    %v4031 = vrcp.pop %v3945
    %v4032 = vrcp.pop %v3948
    %v4033 = vrcp.pop %v3951
    %v4034 = vrcp.pop %v3954
    %v4035 = vrcp.pop %v3957
    %v4036 = vrcp.pop %v3960
    %v4037 = vrcp.pop %v3963
    %v4038 = vrcp.pop %v3966
    %v4039 = vrcp.pop %v3969
    %v4040 = vrcp.pop %v3972
    %v4041 = vrcp.pop %v3975
    %v4042 = vrcp.pop %v3978
    %v4043 = vrcp.pop %v3981
    %v4044 = vrcp.pop %v3984
    %v4045 = vrcp.pop %v3987
    %v4046 = vrcp.pop %v3990
    %v4047 = vrcp.pop %v3993
    %v4048 = vrcp.pop %v3996
    %v4049 = vrcp.pop %v3999
    %v4050 = vrcp.pop %v4002
    %v4051 = vrcp.pop %v4005
    %v4052 = vrcp.pop %v4008
    %v4053 = vrcp.pop %v4011
    %v4054 = vrcp.pop %v4014
    %v4055 = vrcp.pop %v4017
    %v4056 = vrcp.pop %v4020
    %v4057 = vrcp.pop %v4023
    %v4058 = vrcp.pop %v4026
    %v4059 = vmul.f32 %v3868, %v4027
    %v4060 = vmul.f32 %v3870, %v4028
    %v4061 = vmul.f32 %v3872, %v4029
    %v4062 = vmul.f32 %v3874, %v4030
    %v4063 = vmul.f32 %v3876, %v4031
    %v4064 = vmul.f32 %v3878, %v4032
    %v4065 = vmul.f32 %v3880, %v4033
    %v4066 = vmul.f32 %v3882, %v4034
    %v4067 = vmul.f32 %v3884, %v4035
    %v4068 = vmul.f32 %v3886, %v4036
    %v4069 = vmul.f32 %v3888, %v4037
    %v4070 = vmul.f32 %v3890, %v4038
    %v4071 = vmul.f32 %v3892, %v4039
    %v4072 = vmul.f32 %v3894, %v4040
    %v4073 = vmul.f32 %v3896, %v4041
    %v4074 = vmul.f32 %v3898, %v4042
    %v4075 = vmul.f32 %v3900, %v4043
    %v4076 = vmul.f32 %v3902, %v4044
    %v4077 = vmul.f32 %v3904, %v4045
    %v4078 = vmul.f32 %v3906, %v4046
    %v4079 = vmul.f32 %v3908, %v4047
    %v4080 = vmul.f32 %v3910, %v4048
    %v4081 = vmul.f32 %v3912, %v4049
    %v4082 = vmul.f32 %v3914, %v4050
    %v4083 = vmul.f32 %v3916, %v4051
    %v4084 = vmul.f32 %v3918, %v4052
    %v4085 = vmul.f32 %v3920, %v4053
    %v4086 = vmul.f32 %v3922, %v4054
    %v4087 = vmul.f32 %v3924, %v4055
    %v4088 = vmul.f32 %v3926, %v4056
    %v4089 = vmul.f32 %v3928, %v4057
    %v4090 = vmul.f32 %v3930, %v4058
    %v4091 = vpack.c.bf16 %v4059, %v4059
    %v4092 = vpack.c.bf16 %v4060, %v4060
    %v4093 = vpack.c.bf16 %v4061, %v4061
    %v4094 = vpack.c.bf16 %v4062, %v4062
    %v4095 = vpack.c.bf16 %v4063, %v4063
    %v4096 = vpack.c.bf16 %v4064, %v4064
    %v4097 = vpack.c.bf16 %v4065, %v4065
    %v4098 = vpack.c.bf16 %v4066, %v4066
    %v4099 = vpack.c.bf16 %v4067, %v4067
    %v4100 = vpack.c.bf16 %v4068, %v4068
    %v4101 = vpack.c.bf16 %v4069, %v4069
    %v4102 = vpack.c.bf16 %v4070, %v4070
    %v4103 = vpack.c.bf16 %v4071, %v4071
    %v4104 = vpack.c.bf16 %v4072, %v4072
    %v4105 = vpack.c.bf16 %v4073, %v4073
    %v4106 = vpack.c.bf16 %v4074, %v4074
    %v4107 = vpack.c.bf16 %v4075, %v4075
    %v4108 = vpack.c.bf16 %v4076, %v4076
    %v4109 = vpack.c.bf16 %v4077, %v4077
    %v4110 = vpack.c.bf16 %v4078, %v4078
    %v4111 = vpack.c.bf16 %v4079, %v4079
    %v4112 = vpack.c.bf16 %v4080, %v4080
    %v4113 = vpack.c.bf16 %v4081, %v4081
    %v4114 = vpack.c.bf16 %v4082, %v4082
    %v4115 = vpack.c.bf16 %v4083, %v4083
    %v4116 = vpack.c.bf16 %v4084, %v4084
    %v4117 = vpack.c.bf16 %v4085, %v4085
    %v4118 = vpack.c.bf16 %v4086, %v4086
    %v4119 = vpack.c.bf16 %v4087, %v4087
    %v4120 = vpack.c.bf16 %v4088, %v4088
    %v4121 = vpack.c.bf16 %v4089, %v4089
    %v4122 = vpack.c.bf16 %v4090, %v4090
    %v4127 = vunpack.c.l.b16 %v4091
    %v4128 = vunpack.c.l.b16 %v4092
    %v4129 = vunpack.c.l.b16 %v4093
    %v4130 = vunpack.c.l.b16 %v4094
    %v4131 = vpack.c.b16 %v4128, %v4127
    %v4132 = vpack.c.b16 %v4130, %v4129
    %4133 = vrot.lane.b32.xlu0 %v512, 72
    %v4134 = vpop.permute.xlu0 %4133
    %v4137 = vsel %vm843, %v4131, 0
    %v4140 = vsel %vm843, %v4132, 0
    %4142 = vmatpush.bf16.msra.mxu0 0
    %4143 = vmatpush.bf16.msra.mxu0 0
    %4144 = vmatpush.bf16.msra.mxu0 0
    %4145 = vmatpush.bf16.msra.mxu0 0
    %4146 = vmatpush.bf16.msra.mxu0 0
    %4147 = vmatpush.bf16.msra.mxu0 0
    %4148 = vmatpush.bf16.msra.mxu0 0
    %4149 = vmatpush.bf16.msra.mxu0 %v4134
    %4150 = vmatmul.bf16.gmra.mxu0 %v4137
    %v4151 = vpop.f32.mrf.mxu0
    %v4152 = vadd.f32 0.0, %v4151
    %v4153 = vpop.f32.mrf.mxu0
    %v4154 = vadd.f32 0.0, %v4153
    %4155 = vmatmul.bf16.gmra.mxu0 %v4140
    %v4156 = vpop.f32.mrf.mxu0
    %v4157 = vadd.f32 0.0, %v4156
    %v4158 = vpop.f32.mrf.mxu0
    %v4159 = vadd.f32 0.0, %v4158
    %4160 = vdwg.mxu0
    %v4165 = vunpack.c.l.b16 %v4095
    %v4166 = vunpack.c.l.b16 %v4096
    %v4167 = vunpack.c.l.b16 %v4097
    %v4168 = vunpack.c.l.b16 %v4098
    %v4169 = vpack.c.b16 %v4166, %v4165
    %v4170 = vpack.c.b16 %v4168, %v4167
    %4171 = vrot.lane.b32.xlu0 %v556, 72
    %v4172 = vpop.permute.xlu0 %4171
    %v4175 = vsel %vm843, %v4169, 0
    %v4178 = vsel %vm843, %v4170, 0
    %4180 = vmatpush.bf16.msra.mxu0 0
    %4181 = vmatpush.bf16.msra.mxu0 0
    %4182 = vmatpush.bf16.msra.mxu0 0
    %4183 = vmatpush.bf16.msra.mxu0 0
    %4184 = vmatpush.bf16.msra.mxu0 0
    %4185 = vmatpush.bf16.msra.mxu0 0
    %4186 = vmatpush.bf16.msra.mxu0 0
    %4187 = vmatpush.bf16.msra.mxu0 %v4172
    %4188 = vmatmul.bf16.gmra.mxu0 %v4175
    %v4189 = vpop.f32.mrf.mxu0
    %v4190 = vadd.f32 0.0, %v4189
    %v4191 = vpop.f32.mrf.mxu0
    %v4192 = vadd.f32 0.0, %v4191
    %4193 = vmatmul.bf16.gmra.mxu0 %v4178
    %v4194 = vpop.f32.mrf.mxu0
    %v4195 = vadd.f32 0.0, %v4194
    %v4196 = vpop.f32.mrf.mxu0
    %v4197 = vadd.f32 0.0, %v4196
    %4198 = vdwg.mxu0
    %v4203 = vunpack.c.l.b16 %v4099
    %v4204 = vunpack.c.l.b16 %v4100
    %v4205 = vunpack.c.l.b16 %v4101
    %v4206 = vunpack.c.l.b16 %v4102
    %v4207 = vpack.c.b16 %v4204, %v4203
    %v4208 = vpack.c.b16 %v4206, %v4205
    %4209 = vrot.lane.b32.xlu0 %v599, 72
    %v4210 = vpop.permute.xlu0 %4209
    %v4213 = vsel %vm843, %v4207, 0
    %v4216 = vsel %vm843, %v4208, 0
    %4218 = vmatpush.bf16.msra.mxu0 0
    %4219 = vmatpush.bf16.msra.mxu0 0
    %4220 = vmatpush.bf16.msra.mxu0 0
    %4221 = vmatpush.bf16.msra.mxu0 0
    %4222 = vmatpush.bf16.msra.mxu0 0
    %4223 = vmatpush.bf16.msra.mxu0 0
    %4224 = vmatpush.bf16.msra.mxu0 0
    %4225 = vmatpush.bf16.msra.mxu0 %v4210
    %4226 = vmatmul.bf16.gmra.mxu0 %v4213
    %v4227 = vpop.f32.mrf.mxu0
    %v4228 = vadd.f32 0.0, %v4227
    %v4229 = vpop.f32.mrf.mxu0
    %v4230 = vadd.f32 0.0, %v4229
    %4231 = vmatmul.bf16.gmra.mxu0 %v4216
    %v4232 = vpop.f32.mrf.mxu0
    %v4233 = vadd.f32 0.0, %v4232
    %v4234 = vpop.f32.mrf.mxu0
    %v4235 = vadd.f32 0.0, %v4234
    %4236 = vdwg.mxu0
    %v4241 = vunpack.c.l.b16 %v4103
    %v4242 = vunpack.c.l.b16 %v4104
    %v4243 = vunpack.c.l.b16 %v4105
    %v4244 = vunpack.c.l.b16 %v4106
    %v4245 = vpack.c.b16 %v4242, %v4241
    %v4246 = vpack.c.b16 %v4244, %v4243
    %4247 = vrot.lane.b32.xlu0 %v642, 72
    %v4248 = vpop.permute.xlu0 %4247
    %v4251 = vsel %vm843, %v4245, 0
    %v4254 = vsel %vm843, %v4246, 0
    %4256 = vmatpush.bf16.msra.mxu0 0
    %4257 = vmatpush.bf16.msra.mxu0 0
    %4258 = vmatpush.bf16.msra.mxu0 0
    %4259 = vmatpush.bf16.msra.mxu0 0
    %4260 = vmatpush.bf16.msra.mxu0 0
    %4261 = vmatpush.bf16.msra.mxu0 0
    %4262 = vmatpush.bf16.msra.mxu0 0
    %4263 = vmatpush.bf16.msra.mxu0 %v4248
    %4264 = vmatmul.bf16.gmra.mxu0 %v4251
    %v4265 = vpop.f32.mrf.mxu0
    %v4266 = vadd.f32 0.0, %v4265
    %v4267 = vpop.f32.mrf.mxu0
    %v4268 = vadd.f32 0.0, %v4267
    %4269 = vmatmul.bf16.gmra.mxu0 %v4254
    %v4270 = vpop.f32.mrf.mxu0
    %v4271 = vadd.f32 0.0, %v4270
    %v4272 = vpop.f32.mrf.mxu0
    %v4273 = vadd.f32 0.0, %v4272
    %4274 = vdwg.mxu0
    %v4279 = vunpack.c.l.b16 %v4107
    %v4280 = vunpack.c.l.b16 %v4108
    %v4281 = vunpack.c.l.b16 %v4109
    %v4282 = vunpack.c.l.b16 %v4110
    %v4283 = vpack.c.b16 %v4280, %v4279
    %v4284 = vpack.c.b16 %v4282, %v4281
    %4285 = vrot.lane.b32.xlu0 %v685, 72
    %v4286 = vpop.permute.xlu0 %4285
    %v4289 = vsel %vm843, %v4283, 0
    %v4292 = vsel %vm843, %v4284, 0
    %4294 = vmatpush.bf16.msra.mxu0 0
    %4295 = vmatpush.bf16.msra.mxu0 0
    %4296 = vmatpush.bf16.msra.mxu0 0
    %4297 = vmatpush.bf16.msra.mxu0 0
    %4298 = vmatpush.bf16.msra.mxu0 0
    %4299 = vmatpush.bf16.msra.mxu0 0
    %4300 = vmatpush.bf16.msra.mxu0 0
    %4301 = vmatpush.bf16.msra.mxu0 %v4286
    %4302 = vmatmul.bf16.gmra.mxu0 %v4289
    %v4303 = vpop.f32.mrf.mxu0
    %v4304 = vadd.f32 0.0, %v4303
    %v4305 = vpop.f32.mrf.mxu0
    %v4306 = vadd.f32 0.0, %v4305
    %4307 = vmatmul.bf16.gmra.mxu0 %v4292
    %v4308 = vpop.f32.mrf.mxu0
    %v4309 = vadd.f32 0.0, %v4308
    %v4310 = vpop.f32.mrf.mxu0
    %v4311 = vadd.f32 0.0, %v4310
    %4312 = vdwg.mxu0
    %v4317 = vunpack.c.l.b16 %v4111
    %v4318 = vunpack.c.l.b16 %v4112
    %v4319 = vunpack.c.l.b16 %v4113
    %v4320 = vunpack.c.l.b16 %v4114
    %v4321 = vpack.c.b16 %v4318, %v4317
    %v4322 = vpack.c.b16 %v4320, %v4319
    %4323 = vrot.lane.b32.xlu0 %v728, 72
    %v4324 = vpop.permute.xlu0 %4323
    %v4327 = vsel %vm843, %v4321, 0
    %v4330 = vsel %vm843, %v4322, 0
    %4332 = vmatpush.bf16.msra.mxu0 0
    %4333 = vmatpush.bf16.msra.mxu0 0
    %4334 = vmatpush.bf16.msra.mxu0 0
    %4335 = vmatpush.bf16.msra.mxu0 0
    %4336 = vmatpush.bf16.msra.mxu0 0
    %4337 = vmatpush.bf16.msra.mxu0 0
    %4338 = vmatpush.bf16.msra.mxu0 0
    %4339 = vmatpush.bf16.msra.mxu0 %v4324
    %4340 = vmatmul.bf16.gmra.mxu0 %v4327
    %v4341 = vpop.f32.mrf.mxu0
    %v4342 = vadd.f32 0.0, %v4341
    %v4343 = vpop.f32.mrf.mxu0
    %v4344 = vadd.f32 0.0, %v4343
    %4345 = vmatmul.bf16.gmra.mxu0 %v4330
    %v4346 = vpop.f32.mrf.mxu0
    %v4347 = vadd.f32 0.0, %v4346
    %v4348 = vpop.f32.mrf.mxu0
    %v4349 = vadd.f32 0.0, %v4348
    %4350 = vdwg.mxu0
    %v4355 = vunpack.c.l.b16 %v4115
    %v4356 = vunpack.c.l.b16 %v4116
    %v4357 = vunpack.c.l.b16 %v4117
    %v4358 = vunpack.c.l.b16 %v4118
    %v4359 = vpack.c.b16 %v4356, %v4355
    %v4360 = vpack.c.b16 %v4358, %v4357
    %4361 = vrot.lane.b32.xlu0 %v771, 72
    %v4362 = vpop.permute.xlu0 %4361
    %v4365 = vsel %vm843, %v4359, 0
    %v4368 = vsel %vm843, %v4360, 0
    %4370 = vmatpush.bf16.msra.mxu0 0
    %4371 = vmatpush.bf16.msra.mxu0 0
    %4372 = vmatpush.bf16.msra.mxu0 0
    %4373 = vmatpush.bf16.msra.mxu0 0
    %4374 = vmatpush.bf16.msra.mxu0 0
    %4375 = vmatpush.bf16.msra.mxu0 0
    %4376 = vmatpush.bf16.msra.mxu0 0
    %4377 = vmatpush.bf16.msra.mxu0 %v4362
    %4378 = vmatmul.bf16.gmra.mxu0 %v4365
    %v4379 = vpop.f32.mrf.mxu0
    %v4380 = vadd.f32 0.0, %v4379
    %v4381 = vpop.f32.mrf.mxu0
    %v4382 = vadd.f32 0.0, %v4381
    %4383 = vmatmul.bf16.gmra.mxu0 %v4368
    %v4384 = vpop.f32.mrf.mxu0
    %v4385 = vadd.f32 0.0, %v4384
    %v4386 = vpop.f32.mrf.mxu0
    %v4387 = vadd.f32 0.0, %v4386
    %4388 = vdwg.mxu0
    %v4393 = vunpack.c.l.b16 %v4119
    %v4394 = vunpack.c.l.b16 %v4120
    %v4395 = vunpack.c.l.b16 %v4121
    %v4396 = vunpack.c.l.b16 %v4122
    %v4397 = vpack.c.b16 %v4394, %v4393
    %v4398 = vpack.c.b16 %v4396, %v4395
    %4399 = vrot.lane.b32.xlu0 %v814, 72
    %v4400 = vpop.permute.xlu0 %4399
    %v4403 = vsel %vm843, %v4397, 0
    %v4406 = vsel %vm843, %v4398, 0
    %4408 = vmatpush.bf16.msra.mxu0 0
    %4409 = vmatpush.bf16.msra.mxu0 0
    %4410 = vmatpush.bf16.msra.mxu0 0
    %4411 = vmatpush.bf16.msra.mxu0 0
    %4412 = vmatpush.bf16.msra.mxu0 0
    %4413 = vmatpush.bf16.msra.mxu0 0
    %4414 = vmatpush.bf16.msra.mxu0 0
    %4415 = vmatpush.bf16.msra.mxu0 %v4400
    %4416 = vmatmul.bf16.gmra.mxu0 %v4403
    %v4417 = vpop.f32.mrf.mxu0
    %v4418 = vadd.f32 0.0, %v4417
    %v4419 = vpop.f32.mrf.mxu0
    %v4420 = vadd.f32 0.0, %v4419
    %4421 = vmatmul.bf16.gmra.mxu0 %v4406
    %v4422 = vpop.f32.mrf.mxu0
    %v4423 = vadd.f32 0.0, %v4422
    %v4424 = vpop.f32.mrf.mxu0
    %v4425 = vadd.f32 0.0, %v4424
    %4426 = vdwg.mxu0
    %4459 = vrot.lane.b32.xlu0 %v2222, 8
    %v4460 = vpop.permute.xlu0 %4459
    %4461 = vrot.lane.b32.xlu0 %v2224, 8
    %v4462 = vpop.permute.xlu0 %4461
    %4463 = vrot.lane.b32.xlu0 %v2227, 8
    %v4464 = vpop.permute.xlu0 %4463
    %4465 = vrot.lane.b32.xlu0 %v2229, 8
    %v4466 = vpop.permute.xlu0 %4465
    %4467 = vrot.lane.b32.xlu0 %v2260, 8
    %v4468 = vpop.permute.xlu0 %4467
    %4469 = vrot.lane.b32.xlu0 %v2262, 8
    %v4470 = vpop.permute.xlu0 %4469
    %4471 = vrot.lane.b32.xlu0 %v2265, 8
    %v4472 = vpop.permute.xlu0 %4471
    %4473 = vrot.lane.b32.xlu0 %v2267, 8
    %v4474 = vpop.permute.xlu0 %4473
    %4475 = vrot.lane.b32.xlu0 %v2298, 8
    %v4476 = vpop.permute.xlu0 %4475
    %4477 = vrot.lane.b32.xlu0 %v2300, 8
    %v4478 = vpop.permute.xlu0 %4477
    %4479 = vrot.lane.b32.xlu0 %v2303, 8
    %v4480 = vpop.permute.xlu0 %4479
    %4481 = vrot.lane.b32.xlu0 %v2305, 8
    %v4482 = vpop.permute.xlu0 %4481
    %4483 = vrot.lane.b32.xlu0 %v2336, 8
    %v4484 = vpop.permute.xlu0 %4483
    %4485 = vrot.lane.b32.xlu0 %v2338, 8
    %v4486 = vpop.permute.xlu0 %4485
    %4487 = vrot.lane.b32.xlu0 %v2341, 8
    %v4488 = vpop.permute.xlu0 %4487
    %4489 = vrot.lane.b32.xlu0 %v2343, 8
    %v4490 = vpop.permute.xlu0 %4489
    %4491 = vrot.lane.b32.xlu0 %v2374, 8
    %v4492 = vpop.permute.xlu0 %4491
    %4493 = vrot.lane.b32.xlu0 %v2376, 8
    %v4494 = vpop.permute.xlu0 %4493
    %4495 = vrot.lane.b32.xlu0 %v2379, 8
    %v4496 = vpop.permute.xlu0 %4495
    %4497 = vrot.lane.b32.xlu0 %v2381, 8
    %v4498 = vpop.permute.xlu0 %4497
    %4499 = vrot.lane.b32.xlu0 %v2412, 8
    %v4500 = vpop.permute.xlu0 %4499
    %4501 = vrot.lane.b32.xlu0 %v2414, 8
    %v4502 = vpop.permute.xlu0 %4501
    %4503 = vrot.lane.b32.xlu0 %v2417, 8
    %v4504 = vpop.permute.xlu0 %4503
    %4505 = vrot.lane.b32.xlu0 %v2419, 8
    %v4506 = vpop.permute.xlu0 %4505
    %4507 = vrot.lane.b32.xlu0 %v2450, 8
    %v4508 = vpop.permute.xlu0 %4507
    %4509 = vrot.lane.b32.xlu0 %v2452, 8
    %v4510 = vpop.permute.xlu0 %4509
    %4511 = vrot.lane.b32.xlu0 %v2455, 8
    %v4512 = vpop.permute.xlu0 %4511
    %4513 = vrot.lane.b32.xlu0 %v2457, 8
    %v4514 = vpop.permute.xlu0 %4513
    %4515 = vrot.lane.b32.xlu0 %v2488, 8
    %v4516 = vpop.permute.xlu0 %4515
    %4517 = vrot.lane.b32.xlu0 %v2490, 8
    %v4518 = vpop.permute.xlu0 %4517
    %4519 = vrot.lane.b32.xlu0 %v2493, 8
    %v4520 = vpop.permute.xlu0 %4519
    %4521 = vrot.lane.b32.xlu0 %v2495, 8
    %v4522 = vpop.permute.xlu0 %4521
    %4587 = vrot.lane.b32.xlu0 %v3187, 16
    %v4588 = vpop.permute.xlu0 %4587
    %4589 = vrot.lane.b32.xlu0 %v3189, 16
    %v4590 = vpop.permute.xlu0 %4589
    %4591 = vrot.lane.b32.xlu0 %v3192, 16
    %v4592 = vpop.permute.xlu0 %4591
    %4593 = vrot.lane.b32.xlu0 %v3194, 16
    %v4594 = vpop.permute.xlu0 %4593
    %4595 = vrot.lane.b32.xlu0 %v3225, 16
    %v4596 = vpop.permute.xlu0 %4595
    %4597 = vrot.lane.b32.xlu0 %v3227, 16
    %v4598 = vpop.permute.xlu0 %4597
    %4599 = vrot.lane.b32.xlu0 %v3230, 16
    %v4600 = vpop.permute.xlu0 %4599
    %4601 = vrot.lane.b32.xlu0 %v3232, 16
    %v4602 = vpop.permute.xlu0 %4601
    %4603 = vrot.lane.b32.xlu0 %v3263, 16
    %v4604 = vpop.permute.xlu0 %4603
    %4605 = vrot.lane.b32.xlu0 %v3265, 16
    %v4606 = vpop.permute.xlu0 %4605
    %4607 = vrot.lane.b32.xlu0 %v3268, 16
    %v4608 = vpop.permute.xlu0 %4607
    %4609 = vrot.lane.b32.xlu0 %v3270, 16
    %v4610 = vpop.permute.xlu0 %4609
    %4611 = vrot.lane.b32.xlu0 %v3301, 16
    %v4612 = vpop.permute.xlu0 %4611
    %4613 = vrot.lane.b32.xlu0 %v3303, 16
    %v4614 = vpop.permute.xlu0 %4613
    %4615 = vrot.lane.b32.xlu0 %v3306, 16
    %v4616 = vpop.permute.xlu0 %4615
    %4617 = vrot.lane.b32.xlu0 %v3308, 16
    %v4618 = vpop.permute.xlu0 %4617
    %4619 = vrot.lane.b32.xlu0 %v3339, 16
    %v4620 = vpop.permute.xlu0 %4619
    %4621 = vrot.lane.b32.xlu0 %v3341, 16
    %v4622 = vpop.permute.xlu0 %4621
    %4623 = vrot.lane.b32.xlu0 %v3344, 16
    %v4624 = vpop.permute.xlu0 %4623
    %4625 = vrot.lane.b32.xlu0 %v3346, 16
    %v4626 = vpop.permute.xlu0 %4625
    %4627 = vrot.lane.b32.xlu0 %v3377, 16
    %v4628 = vpop.permute.xlu0 %4627
    %4629 = vrot.lane.b32.xlu0 %v3379, 16
    %v4630 = vpop.permute.xlu0 %4629
    %4631 = vrot.lane.b32.xlu0 %v3382, 16
    %v4632 = vpop.permute.xlu0 %4631
    %4633 = vrot.lane.b32.xlu0 %v3384, 16
    %v4634 = vpop.permute.xlu0 %4633
    %4635 = vrot.lane.b32.xlu0 %v3415, 16
    %v4636 = vpop.permute.xlu0 %4635
    %4637 = vrot.lane.b32.xlu0 %v3417, 16
    %v4638 = vpop.permute.xlu0 %4637
    %4639 = vrot.lane.b32.xlu0 %v3420, 16
    %v4640 = vpop.permute.xlu0 %4639
    %4641 = vrot.lane.b32.xlu0 %v3422, 16
    %v4642 = vpop.permute.xlu0 %4641
    %4643 = vrot.lane.b32.xlu0 %v3453, 16
    %v4644 = vpop.permute.xlu0 %4643
    %4645 = vrot.lane.b32.xlu0 %v3455, 16
    %v4646 = vpop.permute.xlu0 %4645
    %4647 = vrot.lane.b32.xlu0 %v3458, 16
    %v4648 = vpop.permute.xlu0 %4647
    %4649 = vrot.lane.b32.xlu0 %v3460, 16
    %v4650 = vpop.permute.xlu0 %4649
    %4715 = vrot.lane.b32.xlu0 %v4152, 24
    %v4716 = vpop.permute.xlu0 %4715
    %4717 = vrot.lane.b32.xlu0 %v4154, 24
    %v4718 = vpop.permute.xlu0 %4717
    %4719 = vrot.lane.b32.xlu0 %v4157, 24
    %v4720 = vpop.permute.xlu0 %4719
    %4721 = vrot.lane.b32.xlu0 %v4159, 24
    %v4722 = vpop.permute.xlu0 %4721
    %4723 = vrot.lane.b32.xlu0 %v4190, 24
    %v4724 = vpop.permute.xlu0 %4723
    %4725 = vrot.lane.b32.xlu0 %v4192, 24
    %v4726 = vpop.permute.xlu0 %4725
    %4727 = vrot.lane.b32.xlu0 %v4195, 24
    %v4728 = vpop.permute.xlu0 %4727
    %4729 = vrot.lane.b32.xlu0 %v4197, 24
    %v4730 = vpop.permute.xlu0 %4729
    %4731 = vrot.lane.b32.xlu0 %v4228, 24
    %v4732 = vpop.permute.xlu0 %4731
    %4733 = vrot.lane.b32.xlu0 %v4230, 24
    %v4734 = vpop.permute.xlu0 %4733
    %4735 = vrot.lane.b32.xlu0 %v4233, 24
    %v4736 = vpop.permute.xlu0 %4735
    %4737 = vrot.lane.b32.xlu0 %v4235, 24
    %v4738 = vpop.permute.xlu0 %4737
    %4739 = vrot.lane.b32.xlu0 %v4266, 24
    %v4740 = vpop.permute.xlu0 %4739
    %4741 = vrot.lane.b32.xlu0 %v4268, 24
    %v4742 = vpop.permute.xlu0 %4741
    %4743 = vrot.lane.b32.xlu0 %v4271, 24
    %v4744 = vpop.permute.xlu0 %4743
    %4745 = vrot.lane.b32.xlu0 %v4273, 24
    %v4746 = vpop.permute.xlu0 %4745
    %4747 = vrot.lane.b32.xlu0 %v4304, 24
    %v4748 = vpop.permute.xlu0 %4747
    %4749 = vrot.lane.b32.xlu0 %v4306, 24
    %v4750 = vpop.permute.xlu0 %4749
    %4751 = vrot.lane.b32.xlu0 %v4309, 24
    %v4752 = vpop.permute.xlu0 %4751
    %4753 = vrot.lane.b32.xlu0 %v4311, 24
    %v4754 = vpop.permute.xlu0 %4753
    %4755 = vrot.lane.b32.xlu0 %v4342, 24
    %v4756 = vpop.permute.xlu0 %4755
    %4757 = vrot.lane.b32.xlu0 %v4344, 24
    %v4758 = vpop.permute.xlu0 %4757
    %4759 = vrot.lane.b32.xlu0 %v4347, 24
    %v4760 = vpop.permute.xlu0 %4759
    %4761 = vrot.lane.b32.xlu0 %v4349, 24
    %v4762 = vpop.permute.xlu0 %4761
    %4763 = vrot.lane.b32.xlu0 %v4380, 24
    %v4764 = vpop.permute.xlu0 %4763
    %4765 = vrot.lane.b32.xlu0 %v4382, 24
    %v4766 = vpop.permute.xlu0 %4765
    %4767 = vrot.lane.b32.xlu0 %v4385, 24
    %v4768 = vpop.permute.xlu0 %4767
    %4769 = vrot.lane.b32.xlu0 %v4387, 24
    %v4770 = vpop.permute.xlu0 %4769
    %4771 = vrot.lane.b32.xlu0 %v4418, 24
    %v4772 = vpop.permute.xlu0 %4771
    %4773 = vrot.lane.b32.xlu0 %v4420, 24
    %v4774 = vpop.permute.xlu0 %4773
    %4775 = vrot.lane.b32.xlu0 %v4423, 24
    %v4776 = vpop.permute.xlu0 %4775
    %4777 = vrot.lane.b32.xlu0 %v4425, 24
    %v4778 = vpop.permute.xlu0 %4777
    %v4811 = vsel %vm513, %v1257, %v4460
    %v4812 = vsel %vm513, %v1259, %v4462
    %v4813 = vsel %vm513, %v1262, %v4464
    %v4814 = vsel %vm513, %v1264, %v4466
    %v4815 = vsel %vm513, %v1295, %v4468
    %v4816 = vsel %vm513, %v1297, %v4470
    %v4817 = vsel %vm513, %v1300, %v4472
    %v4818 = vsel %vm513, %v1302, %v4474
    %v4819 = vsel %vm513, %v1333, %v4476
    %v4820 = vsel %vm513, %v1335, %v4478
    %v4821 = vsel %vm513, %v1338, %v4480
    %v4822 = vsel %vm513, %v1340, %v4482
    %v4823 = vsel %vm513, %v1371, %v4484
    %v4824 = vsel %vm513, %v1373, %v4486
    %v4825 = vsel %vm513, %v1376, %v4488
    %v4826 = vsel %vm513, %v1378, %v4490
    %v4827 = vsel %vm513, %v1409, %v4492
    %v4828 = vsel %vm513, %v1411, %v4494
    %v4829 = vsel %vm513, %v1414, %v4496
    %v4830 = vsel %vm513, %v1416, %v4498
    %v4831 = vsel %vm513, %v1447, %v4500
    %v4832 = vsel %vm513, %v1449, %v4502
    %v4833 = vsel %vm513, %v1452, %v4504
    %v4834 = vsel %vm513, %v1454, %v4506
    %v4835 = vsel %vm513, %v1485, %v4508
    %v4836 = vsel %vm513, %v1487, %v4510
    %v4837 = vsel %vm513, %v1490, %v4512
    %v4838 = vsel %vm513, %v1492, %v4514
    %v4839 = vsel %vm513, %v1523, %v4516
    %v4840 = vsel %vm513, %v1525, %v4518
    %v4841 = vsel %vm513, %v1528, %v4520
    %v4842 = vsel %vm513, %v1530, %v4522
    %v4843 = vsel %vm843, %v4811, %v4588
    %v4844 = vsel %vm843, %v4812, %v4590
    %v4845 = vsel %vm843, %v4813, %v4592
    %v4846 = vsel %vm843, %v4814, %v4594
    %v4847 = vsel %vm843, %v4815, %v4596
    %v4848 = vsel %vm843, %v4816, %v4598
    %v4849 = vsel %vm843, %v4817, %v4600
    %v4850 = vsel %vm843, %v4818, %v4602
    %v4851 = vsel %vm843, %v4819, %v4604
    %v4852 = vsel %vm843, %v4820, %v4606
    %v4853 = vsel %vm843, %v4821, %v4608
    %v4854 = vsel %vm843, %v4822, %v4610
    %v4855 = vsel %vm843, %v4823, %v4612
    %v4856 = vsel %vm843, %v4824, %v4614
    %v4857 = vsel %vm843, %v4825, %v4616
    %v4858 = vsel %vm843, %v4826, %v4618
    %v4859 = vsel %vm843, %v4827, %v4620
    %v4860 = vsel %vm843, %v4828, %v4622
    %v4861 = vsel %vm843, %v4829, %v4624
    %v4862 = vsel %vm843, %v4830, %v4626
    %v4863 = vsel %vm843, %v4831, %v4628
    %v4864 = vsel %vm843, %v4832, %v4630
    %v4865 = vsel %vm843, %v4833, %v4632
    %v4866 = vsel %vm843, %v4834, %v4634
    %v4867 = vsel %vm843, %v4835, %v4636
    %v4868 = vsel %vm843, %v4836, %v4638
    %v4869 = vsel %vm843, %v4837, %v4640
    %v4870 = vsel %vm843, %v4838, %v4642
    %v4871 = vsel %vm843, %v4839, %v4644
    %v4872 = vsel %vm843, %v4840, %v4646
    %v4873 = vsel %vm843, %v4841, %v4648
    %v4874 = vsel %vm843, %v4842, %v4650
    %vm4875 = vcmask 195584
    %v4876 = vsel %vm4875, %v4843, %v4716
    %v4877 = vsel %vm4875, %v4844, %v4718
    %v4878 = vsel %vm4875, %v4845, %v4720
    %v4879 = vsel %vm4875, %v4846, %v4722
    %v4880 = vsel %vm4875, %v4847, %v4724
    %v4881 = vsel %vm4875, %v4848, %v4726
    %v4882 = vsel %vm4875, %v4849, %v4728
    %v4883 = vsel %vm4875, %v4850, %v4730
    %v4884 = vsel %vm4875, %v4851, %v4732
    %v4885 = vsel %vm4875, %v4852, %v4734
    %v4886 = vsel %vm4875, %v4853, %v4736
    %v4887 = vsel %vm4875, %v4854, %v4738
    %v4888 = vsel %vm4875, %v4855, %v4740
    %v4889 = vsel %vm4875, %v4856, %v4742
    %v4890 = vsel %vm4875, %v4857, %v4744
    %v4891 = vsel %vm4875, %v4858, %v4746
    %v4892 = vsel %vm4875, %v4859, %v4748
    %v4893 = vsel %vm4875, %v4860, %v4750
    %v4894 = vsel %vm4875, %v4861, %v4752
    %v4895 = vsel %vm4875, %v4862, %v4754
    %v4896 = vsel %vm4875, %v4863, %v4756
    %v4897 = vsel %vm4875, %v4864, %v4758
    %v4898 = vsel %vm4875, %v4865, %v4760
    %v4899 = vsel %vm4875, %v4866, %v4762
    %v4900 = vsel %vm4875, %v4867, %v4764
    %v4901 = vsel %vm4875, %v4868, %v4766
    %v4902 = vsel %vm4875, %v4869, %v4768
    %v4903 = vsel %vm4875, %v4870, %v4770
    %v4904 = vsel %vm4875, %v4871, %v4772
    %v4905 = vsel %vm4875, %v4872, %v4774
    %v4906 = vsel %vm4875, %v4873, %v4776
    %v4907 = vsel %vm4875, %v4874, %v4778
    %v4908 = vpack.c.bf16 %v4877, %v4876
    %v4909 = vpack.c.bf16 %v4879, %v4878
    %v4910 = vpack.c.bf16 %v4881, %v4880
    %v4911 = vpack.c.bf16 %v4883, %v4882
    %v4912 = vpack.c.bf16 %v4885, %v4884
    %v4913 = vpack.c.bf16 %v4887, %v4886
    %v4914 = vpack.c.bf16 %v4889, %v4888
    %v4915 = vpack.c.bf16 %v4891, %v4890
    %v4916 = vpack.c.bf16 %v4893, %v4892
    %v4917 = vpack.c.bf16 %v4895, %v4894
    %v4918 = vpack.c.bf16 %v4897, %v4896
    %v4919 = vpack.c.bf16 %v4899, %v4898
    %v4920 = vpack.c.bf16 %v4901, %v4900
    %v4921 = vpack.c.bf16 %v4903, %v4902
    %v4922 = vpack.c.bf16 %v4905, %v4904
    %v4923 = vpack.c.bf16 %v4907, %v4906
    %v4924 = vld [vmem:[#allocation2] sm:$0xf]
    %v4925 = vld [vmem:[#allocation2 + $0x4] sm:$0xf]
    %v4926 = vld [vmem:[#allocation2 + $0x8] sm:$0xf]
    %v4927 = vld [vmem:[#allocation2 + $0xc] sm:$0xf]
    %v4928 = vld [vmem:[%s3] sm:$0x1]
    %v4930 = vperm.slane %v4928, 0
    %v4935 = vunpack.c.l.b16 %v4924
    %v4936 = vunpack.c.l.b16 %v4925
    %v4937 = vunpack.c.l.b16 %v4926
    %v4938 = vunpack.c.l.b16 %v4927
    %v4939 = vpack.c.b16 %v4936, %v4935
    %v4940 = vpack.c.b16 %v4938, %v4937
    %4941 = vrot.lane.b32.xlu0 %v4939, 32
    %v4942 = vpop.permute.xlu0 %4941
    %4943 = vrot.lane.b32.xlu0 %v4940, 32
    %v4944 = vpop.permute.xlu0 %4943
    %4947 = vrot.lane.b32.xlu0 %v4930, 32
    %v4948 = vpop.permute.xlu0 %4947
    %v4951 = vsel %vm186, %v4908, 0
    %v4954 = vsel %vm186, %v4909, 0
    %v4957 = vsel %vm186, %v4910, 0
    %v4960 = vsel %vm186, %v4911, 0
    %v4963 = vsel %vm186, %v4912, 0
    %v4966 = vsel %vm186, %v4913, 0
    %v4969 = vsel %vm186, %v4914, 0
    %v4972 = vsel %vm186, %v4915, 0
    %v4975 = vsel %vm186, %v4916, 0
    %v4978 = vsel %vm186, %v4917, 0
    %v4981 = vsel %vm186, %v4918, 0
    %v4984 = vsel %vm186, %v4919, 0
    %v4987 = vsel %vm186, %v4920, 0
    %v4990 = vsel %vm186, %v4921, 0
    %v4993 = vsel %vm186, %v4922, 0
    %v4996 = vsel %vm186, %v4923, 0
    %4998 = vmatpush.bf16.msra.mxu0 0
    %4999 = vmatpush.bf16.msra.mxu0 0
    %5000 = vmatpush.bf16.msra.mxu0 0
    %5001 = vmatpush.bf16.msra.mxu0 0
    %5002 = vmatpush.bf16.msra.mxu0 0
    %5003 = vmatpush.bf16.msra.mxu0 0
    %5004 = vmatpush.bf16.msra.mxu0 %v4944
    %5005 = vmatpush.bf16.msra.mxu0 %v4942
    %5006 = vmatmul.bf16.gmra.mxu0 %v4951
    %v5007 = vpop.f32.mrf.mxu0
    %v5008 = vadd.f32 %v4948, %v5007
    %v5009 = vpop.f32.mrf.mxu0
    %v5010 = vadd.f32 %v4948, %v5009
    %5011 = vmatmul.bf16.gmra.mxu0 %v4954
    %v5012 = vpop.f32.mrf.mxu0
    %v5013 = vadd.f32 %v4948, %v5012
    %v5014 = vpop.f32.mrf.mxu0
    %v5015 = vadd.f32 %v4948, %v5014
    %5016 = vmatmul.bf16.gmra.mxu0 %v4957
    %v5017 = vpop.f32.mrf.mxu0
    %v5018 = vadd.f32 %v4948, %v5017
    %v5019 = vpop.f32.mrf.mxu0
    %v5020 = vadd.f32 %v4948, %v5019
    %5021 = vmatmul.bf16.gmra.mxu0 %v4960
    %v5022 = vpop.f32.mrf.mxu0
    %v5023 = vadd.f32 %v4948, %v5022
    %v5024 = vpop.f32.mrf.mxu0
    %v5025 = vadd.f32 %v4948, %v5024
    %5026 = vmatmul.bf16.gmra.mxu0 %v4963
    %v5027 = vpop.f32.mrf.mxu0
    %v5028 = vadd.f32 %v4948, %v5027
    %v5029 = vpop.f32.mrf.mxu0
    %v5030 = vadd.f32 %v4948, %v5029
    %5031 = vmatmul.bf16.gmra.mxu0 %v4966
    %v5032 = vpop.f32.mrf.mxu0
    %v5033 = vadd.f32 %v4948, %v5032
    %v5034 = vpop.f32.mrf.mxu0
    %v5035 = vadd.f32 %v4948, %v5034
    %5036 = vmatmul.bf16.gmra.mxu0 %v4969
    %v5037 = vpop.f32.mrf.mxu0
    %v5038 = vadd.f32 %v4948, %v5037
    %v5039 = vpop.f32.mrf.mxu0
    %v5040 = vadd.f32 %v4948, %v5039
    %5041 = vmatmul.bf16.gmra.mxu0 %v4972
    %v5042 = vpop.f32.mrf.mxu0
    %v5043 = vadd.f32 %v4948, %v5042
    %v5044 = vpop.f32.mrf.mxu0
    %v5045 = vadd.f32 %v4948, %v5044
    %5046 = vmatmul.bf16.gmra.mxu0 %v4975
    %v5047 = vpop.f32.mrf.mxu0
    %v5048 = vadd.f32 %v4948, %v5047
    %v5049 = vpop.f32.mrf.mxu0
    %v5050 = vadd.f32 %v4948, %v5049
    %5051 = vmatmul.bf16.gmra.mxu0 %v4978
    %v5052 = vpop.f32.mrf.mxu0
    %v5053 = vadd.f32 %v4948, %v5052
    %v5054 = vpop.f32.mrf.mxu0
    %v5055 = vadd.f32 %v4948, %v5054
    %5056 = vmatmul.bf16.gmra.mxu0 %v4981
    %v5057 = vpop.f32.mrf.mxu0
    %v5058 = vadd.f32 %v4948, %v5057
    %v5059 = vpop.f32.mrf.mxu0
    %v5060 = vadd.f32 %v4948, %v5059
    %5061 = vmatmul.bf16.gmra.mxu0 %v4984
    %v5062 = vpop.f32.mrf.mxu0
    %v5063 = vadd.f32 %v4948, %v5062
    %v5064 = vpop.f32.mrf.mxu0
    %v5065 = vadd.f32 %v4948, %v5064
    %5066 = vmatmul.bf16.gmra.mxu0 %v4987
    %v5067 = vpop.f32.mrf.mxu0
    %v5068 = vadd.f32 %v4948, %v5067
    %v5069 = vpop.f32.mrf.mxu0
    %v5070 = vadd.f32 %v4948, %v5069
    %5071 = vmatmul.bf16.gmra.mxu0 %v4990
    %v5072 = vpop.f32.mrf.mxu0
    %v5073 = vadd.f32 %v4948, %v5072
    %v5074 = vpop.f32.mrf.mxu0
    %v5075 = vadd.f32 %v4948, %v5074
    %5076 = vmatmul.bf16.gmra.mxu0 %v4993
    %v5077 = vpop.f32.mrf.mxu0
    %v5078 = vadd.f32 %v4948, %v5077
    %v5079 = vpop.f32.mrf.mxu0
    %v5080 = vadd.f32 %v4948, %v5079
    %5081 = vmatmul.bf16.gmra.mxu0 %v4996
    %v5082 = vpop.f32.mrf.mxu0
    %v5083 = vadd.f32 %v4948, %v5082
    %v5084 = vpop.f32.mrf.mxu0
    %v5085 = vadd.f32 %v4948, %v5084
    %5086 = vdwg.mxu0
    %5087 = vst.msk [vmem:[#allocation5] sm:$0xff] %vm186, %v5008
    %5088 = vst.msk [vmem:[#allocation5 + $0x8] sm:$0xff] %vm186, %v5010
    %5089 = vst.msk [vmem:[#allocation5 + $0x10] sm:$0xff] %vm186, %v5013
    %5090 = vst.msk [vmem:[#allocation5 + $0x18] sm:$0xff] %vm186, %v5015
    %5091 = vst.msk [vmem:[#allocation5 + $0x20] sm:$0xff] %vm186, %v5018
    %5092 = vst.msk [vmem:[#allocation5 + $0x28] sm:$0xff] %vm186, %v5020
    %5093 = vst.msk [vmem:[#allocation5 + $0x30] sm:$0xff] %vm186, %v5023
    %5094 = vst.msk [vmem:[#allocation5 + $0x38] sm:$0xff] %vm186, %v5025
    %5095 = vst.msk [vmem:[#allocation5 + $0x40] sm:$0xff] %vm186, %v5028
    %5096 = vst.msk [vmem:[#allocation5 + $0x48] sm:$0xff] %vm186, %v5030
    %5097 = vst.msk [vmem:[#allocation5 + $0x50] sm:$0xff] %vm186, %v5033
    %5098 = vst.msk [vmem:[#allocation5 + $0x58] sm:$0xff] %vm186, %v5035
    %5099 = vst.msk [vmem:[#allocation5 + $0x60] sm:$0xff] %vm186, %v5038
    %5100 = vst.msk [vmem:[#allocation5 + $0x68] sm:$0xff] %vm186, %v5040
    %5101 = vst.msk [vmem:[#allocation5 + $0x70] sm:$0xff] %vm186, %v5043
    %5102 = vst.msk [vmem:[#allocation5 + $0x78] sm:$0xff] %vm186, %v5045
    %5103 = vst.msk [vmem:[#allocation5 + $0x80] sm:$0xff] %vm186, %v5048
    %5104 = vst.msk [vmem:[#allocation5 + $0x88] sm:$0xff] %vm186, %v5050
    %5105 = vst.msk [vmem:[#allocation5 + $0x90] sm:$0xff] %vm186, %v5053
    %5106 = vst.msk [vmem:[#allocation5 + $0x98] sm:$0xff] %vm186, %v5055
    %5107 = vst.msk [vmem:[#allocation5 + $0xa0] sm:$0xff] %vm186, %v5058
    %5108 = vst.msk [vmem:[#allocation5 + $0xa8] sm:$0xff] %vm186, %v5060
    %5109 = vst.msk [vmem:[#allocation5 + $0xb0] sm:$0xff] %vm186, %v5063
    %5110 = vst.msk [vmem:[#allocation5 + $0xb8] sm:$0xff] %vm186, %v5065
    %5111 = vst.msk [vmem:[#allocation5 + $0xc0] sm:$0xff] %vm186, %v5068
    %5112 = vst.msk [vmem:[#allocation5 + $0xc8] sm:$0xff] %vm186, %v5070
    %5113 = vst.msk [vmem:[#allocation5 + $0xd0] sm:$0xff] %vm186, %v5073
    %5114 = vst.msk [vmem:[#allocation5 + $0xd8] sm:$0xff] %vm186, %v5075
    %5115 = vst.msk [vmem:[#allocation5 + $0xe0] sm:$0xff] %vm186, %v5078
    %5116 = vst.msk [vmem:[#allocation5 + $0xe8] sm:$0xff] %vm186, %v5080
    %5117 = vst.msk [vmem:[#allocation5 + $0xf0] sm:$0xff] %vm186, %v5083
    %5118 = vst.msk [vmem:[#allocation5 + $0xf8] sm:$0xff] %vm186, %v5085
    // Predicated region
    $region26: #{tpu_custom_call.1} parent=1 // pred_check
      _
    $region27: #{tpu_custom_call.1} parent=1 // pred_check_branch
      %5120 = sbr.rel (0) target = $region29
    $region28: #{tpu_custom_call.1} parent=1 // pred_region
      %5122 = vsyncadd [#allocation4], 0
      %s5123 = sshll.u32 [#allocation5], 4
      %s5124 = int_to_ptr.vmem [resolvable:$true] %s5123
      %s5125 = sshll.u32 %s5, 4
      %s5126 = int_to_ptr.hbm [resolvable:$true] %s5125
      %5131 = dma.vmem_to_hbm [thread:$0]  %s5124, 4096, %s5126, [#allocation4], 128, 128, 8
    $region29: #{tpu_custom_call.1} parent=1 // pred_fallthru
      _
    // Predicated region
    $region30: #{tpu_custom_call.1} parent=1 // pred_check
      _
    $region31: #{tpu_custom_call.1} parent=1 // pred_check_branch
      %5133 = sbr.rel (0) target = $region33
    $region32: #{tpu_custom_call.1} parent=1 // pred_region
      %5135 = dma.done [#allocation4], 4096
    $region33: #{tpu_custom_call.1} parent=1 // pred_fallthru
      _
    %5136 = vsyncpa [#allocation3], 1
    %5137 = vsyncpa [#allocation4], 1

</llo_original>
